<compile_context>
chip_gen: v7x
topology: tpu7x:2x2x1
jax: 0.10.0
libtpu: 0.0.40
codegen_flags: <defaults>
</compile_context>

<pallas_src>
import functools

import jax
import jax.numpy as jnp
from jax import lax
from jax.experimental import pallas as pl
from jax.experimental.pallas import tpu as pltpu

# Fits the scoped-VMEM budget on v5e (16 MiB default raised), v6e and v7x
# (64 MiB physical); block sizes below stay well under this when double
# buffered.
_VMEM_LIMIT_BYTES = 32 * 1024 * 1024


# ---------------------------------------------------------------------------
# Stage 1: 1x1 conv + MFM  ==  max(A @ W1 + b1, A @ W2 + b2)
# ---------------------------------------------------------------------------
def _mfm_matmul_kernel(a_ref, w1_ref, w2_ref, b1_ref, b2_ref, o_ref):
    a = a_ref[...]
    h1 = jnp.dot(a, w1_ref[...], preferred_element_type=jnp.float32) + b1_ref[...]
    h2 = jnp.dot(a, w2_ref[...], preferred_element_type=jnp.float32) + b2_ref[...]
    o_ref[...] = jnp.maximum(h1, h2).astype(o_ref.dtype)


def mfm_linear(a, w1, w2, b1, b2, *, tm=512, out_dtype=jnp.bfloat16):
    """a: (M, K) bf16, w1/w2: (K, C) bf16, b1/b2: (C,) f32  ->  (M, C)."""
    M, K = a.shape
    C = w1.shape[1]
    tm = min(tm, M)                       # full-extent block when M is small
    grid_m = pl.cdiv(M, tm)               # ragged tail is masked by Pallas

    return pl.pallas_call(
        _mfm_matmul_kernel,
        out_shape=jax.ShapeDtypeStruct((M, C), out_dtype),
        grid=(grid_m,),
        in_specs=[
            pl.BlockSpec((tm, K), lambda i: (i, 0)),
            pl.BlockSpec((K, C), lambda i: (0, 0)),
            pl.BlockSpec((K, C), lambda i: (0, 0)),
            pl.BlockSpec((1, C), lambda i: (0, 0)),
            pl.BlockSpec((1, C), lambda i: (0, 0)),
        ],
        out_specs=pl.BlockSpec((tm, C), lambda i: (i, 0)),
        compiler_params=pltpu.CompilerParams(
            dimension_semantics=("parallel",),
            vmem_limit_bytes=_VMEM_LIMIT_BYTES),
    )(a, w1, w2, b1.reshape(1, C), b2.reshape(1, C))


# ---------------------------------------------------------------------------
# Stage 2: KxK conv + MFM with im2col fused in-kernel.
# y_ref holds the whole spatially padded image of one batch element (resident
# in VMEM across the row-tile axis); each grid step computes `bh` output rows
# by accumulating the k*k shifted-window matmuls in f32, then applies bias +
# max-feature-map and stores the tile.
# ---------------------------------------------------------------------------
def _mfm_conv_kernel(y_ref, w1_ref, w2_ref, b1_ref, b2_ref, o_ref, *, k, bh, wo):
    cin = y_ref.shape[-1]
    cout = o_ref.shape[-1]
    row0 = pl.program_id(1) * bh          # first output row of this tile

    acc1 = jnp.zeros((bh * wo, cout), jnp.float32)
    acc2 = jnp.zeros((bh * wo, cout), jnp.float32)
    for dh in range(k):
        for dw in range(k):
            r = dh * k + dw
            a = y_ref[0, pl.ds(row0 + dh, bh), dw:dw + wo, :]
            a = a.reshape(bh * wo, cin)
            acc1 = acc1 + jnp.dot(a, w1_ref[r], preferred_element_type=jnp.float32)
            acc2 = acc2 + jnp.dot(a, w2_ref[r], preferred_element_type=jnp.float32)

    z = jnp.maximum(acc1 + b1_ref[...], acc2 + b2_ref[...])
    o_ref[...] = z.reshape(1, bh, wo, cout).astype(o_ref.dtype)


def mfm_conv(y_nhwc, w1, w2, b1, b2, *, kernel_size, stride, padding,
             block_h=64, out_dtype=jnp.float32):
    """y_nhwc: (N, H, W, Cin) bf16; w1/w2: (k*k, Cin, Cout) bf16; b1/b2: (Cout,) f32."""
    N, H, W, Cin = y_nhwc.shape
    k = kernel_size
    Cout = w1.shape[-1]

    Wp = W + 2 * padding
    ho = H + 2 * padding - k + 1          # stride-1 output height
    wo = Wp - k + 1                       # stride-1 output width
    bh = min(block_h, ho)
    n_tiles = pl.cdiv(ho, bh)
    ho_pad = n_tiles * bh

    # Zero padding for the convolution plus extra bottom rows so the last row
    # tile's k*k windows stay in bounds (those rows are sliced away below).
    y_pad = jnp.pad(
        y_nhwc,
        ((0, 0), (padding, padding + (ho_pad - ho)), (padding, padding), (0, 0)))
    hp_pad = ho_pad + k - 1               # padded input height

    kernel = functools.partial(_mfm_conv_kernel, k=k, bh=bh, wo=wo)
    z = pl.pallas_call(
        kernel,
        out_shape=jax.ShapeDtypeStruct((N, ho_pad, wo, Cout), out_dtype),
        grid=(N, n_tiles),
        in_specs=[
            # Whole padded image of batch element n: block index constant in
            # the row-tile axis -> DMA'd once per image, resident in VMEM.
            pl.BlockSpec((1, hp_pad, Wp, Cin), lambda n, i: (n, 0, 0, 0)),
            pl.BlockSpec((k * k, Cin, Cout), lambda n, i: (0, 0, 0)),
            pl.BlockSpec((k * k, Cin, Cout), lambda n, i: (0, 0, 0)),
            pl.BlockSpec((1, Cout), lambda n, i: (0, 0)),
            pl.BlockSpec((1, Cout), lambda n, i: (0, 0)),
        ],
        out_specs=pl.BlockSpec((1, bh, wo, Cout), lambda n, i: (n, i, 0, 0)),
        compiler_params=pltpu.CompilerParams(
            dimension_semantics=("parallel", "parallel"),
            vmem_limit_bytes=_VMEM_LIMIT_BYTES),
    )(y_pad, w1, w2, b1.reshape(1, Cout), b2.reshape(1, Cout))

    z = z[:, :ho]
    if stride > 1:
        # Stride-s conv == stride-1 conv subsampled; this module's typical use
        # (and the test) is stride=1, so the dense compute is not wasted there.
        z = z[:, ::stride, ::stride, :]
    return z


# ---------------------------------------------------------------------------
# group module forward (NCHW in, NCHW out, like the PyTorch module)
# ---------------------------------------------------------------------------
@functools.partial(
    jax.jit,
    static_argnames=("kernel_size", "stride", "padding", "tm", "block_h"))
def group_forward(x_nchw, params, *, kernel_size, stride, padding,
                  tm=512, block_h=64):
    N, Cin, H, W = x_nchw.shape
    Cout = params["b"].shape[0] // 2

    # NCHW -> NHWC, bf16 operands (f32 accumulation inside the kernels).
    x = jnp.transpose(x_nchw, (0, 2, 3, 1)).astype(jnp.bfloat16)

    # --- conv_a: mfm(in, in, k=1, s=1, p=0) ---
    wa = params["wa"].astype(jnp.bfloat16)            # (Cin, 2*Cin)
    y = mfm_linear(x.reshape(N * H * W, Cin),
                   wa[:, :Cin], wa[:, Cin:],
                   params["ba"][:Cin], params["ba"][Cin:],
                   tm=tm, out_dtype=jnp.bfloat16)
    y = y.reshape(N, H, W, Cin)

    # --- conv: mfm(in, out, kernel_size, stride, padding), im2col fused ---
    k = kernel_size
    w = params["w"].astype(jnp.bfloat16)              # (k, k, Cin, 2*Cout)
    w1 = w[..., :Cout].reshape(k * k, Cin, Cout)
    w2 = w[..., Cout:].reshape(k * k, Cin, Cout)
    z = mfm_conv(y, w1, w2, params["b"][:Cout], params["b"][Cout:],
                 kernel_size=k, stride=stride, padding=padding,
                 block_h=block_h, out_dtype=jnp.float32)
    return jnp.transpose(z, (0, 3, 1, 2))             # NHWC -> NCHW


# ---------------------------------------------------------------------------
# Deterministic parameter initialization (shapes match the PyTorch module)
# ---------------------------------------------------------------------------
def init_params(key, in_channels, out_channels, kernel_size):
    k0, k1, k2, k3 = jax.random.split(key, 4)
    wa = jax.random.normal(k0, (in_channels, 2 * in_channels), jnp.float32) * 0.1
    ba = jax.random.normal(k1, (2 * in_channels,), jnp.float32) * 0.1
    w = jax.random.normal(
        k2, (kernel_size, kernel_size, in_channels, 2 * out_channels),
        jnp.float32) * 0.1
    b = jax.random.normal(k3, (2 * out_channels,), jnp.float32) * 0.1
    return {"wa": wa, "ba": ba, "w": w, "b": b}


# ---------------------------------------------------------------------------
# Reference (lax.conv, same bf16 operands / f32 accumulation as the kernels)
# ---------------------------------------------------------------------------
def group_reference(x_nchw, params, *, kernel_size, stride, padding):
    Cin = x_nchw.shape[1]
    Cout = params["b"].shape[0] // 2
    x = x_nchw.astype(jnp.bfloat16)

    wa_oihw = params["wa"].T.reshape(2 * Cin, Cin, 1, 1).astype(jnp.bfloat16)
    y = lax.conv_general_dilated(
        x, wa_oihw, (1, 1), "VALID",
        dimension_numbers=("NCHW", "OIHW", "NCHW"),
        preferred_element_type=jnp.float32)
    y = y + params["ba"][None, :, None, None]
    y = jnp.maximum(y[:, :Cin], y[:, Cin:]).astype(jnp.bfloat16)

    w_oihw = jnp.transpose(params["w"], (3, 2, 0, 1)).astype(jnp.bfloat16)
    z = lax.conv_general_dilated(
        y, w_oihw, (stride, stride),
        [(padding, padding), (padding, padding)],
        dimension_numbers=("NCHW", "OIHW", "NCHW"),
        preferred_element_type=jnp.float32)
    z = z + params["b"][None, :, None, None]
    return jnp.maximum(z[:, :Cout], z[:, Cout:])


if __name__ == "__main__":
    batch, in_channels, out_channels = 2, 4, 8
    H = W = 16
    kernel_size, stride, padding = 3, 1, 1

    key = jax.random.PRNGKey(0)
    kx, kp = jax.random.split(key)
    x = jax.random.normal(kx, (batch, in_channels, H, W), jnp.float32)
    params = init_params(kp, in_channels, out_channels, kernel_size)

    # block_h=8 -> two row tiles per image, exercising the fused-im2col
    # windowing / resident-image path at this toy size.
    out = group_forward(x, params, kernel_size=kernel_size, stride=stride,
                        padding=padding, tm=512, block_h=8)
    out = jax.block_until_ready(out)

    ref = group_reference(x, params, kernel_size=kernel_size, stride=stride,
                          padding=padding)
    assert out.shape == (batch, out_channels, H, W), out.shape
    err = float(jnp.max(jnp.abs(out - ref)))
    assert jnp.allclose(out, ref, atol=2e-2, rtol=2e-2), f"mismatch, max err={err}"

    print("KERNEL_OK")
</pallas_src>

<mosaic_0001>
module attributes {stable_mosaic.version = 11 : i64} {
  func.func @_mfm_matmul_kernel(%arg0: i32, %arg1: memref<512x4xbf16, #tpu.memory_space<vmem>>, %arg2: memref<4x4xbf16, #tpu.memory_space<vmem>>, %arg3: memref<4x4xbf16, #tpu.memory_space<vmem>>, %arg4: memref<1x4xf32, #tpu.memory_space<vmem>>, %arg5: memref<1x4xf32, #tpu.memory_space<vmem>>, %arg6: memref<512x4xbf16, #tpu.memory_space<vmem>>) attributes {dimension_semantics = [#tpu.dimension_semantics<parallel>], iteration_bounds = array<i64: 1>, scalar_prefetch = 0 : i64, scratch_operands = 0 : i64, tpu.core_type = #tpu.core_type<tc>, window_params = [{transform_indices = @transform_0, window_bounds = array<i64: 512, 4>}, {pipeline_mode = #tpu.pipeline_mode<synchronous>, transform_indices = @transform_1, window_bounds = array<i64: 4, 4>}, {pipeline_mode = #tpu.pipeline_mode<synchronous>, transform_indices = @transform_2, window_bounds = array<i64: 4, 4>}, {pipeline_mode = #tpu.pipeline_mode<synchronous>, transform_indices = @transform_3, window_bounds = array<i64: 1, 4>}, {pipeline_mode = #tpu.pipeline_mode<synchronous>, transform_indices = @transform_4, window_bounds = array<i64: 1, 4>}, {transform_indices = @transform_5, window_bounds = array<i64: 512, 4>}]} {
    %c0 = arith.constant 0 : index
    %c0_0 = arith.constant 0 : index
    %0 = vector.load %arg1[%c0, %c0_0] : memref<512x4xbf16, #tpu.memory_space<vmem>>, vector<512x4xbf16>
    %c0_1 = arith.constant 0 : index
    %c0_2 = arith.constant 0 : index
    %1 = vector.load %arg2[%c0_1, %c0_2] : memref<4x4xbf16, #tpu.memory_space<vmem>>, vector<4x4xbf16>
    %cst = arith.constant dense<0.000000e+00> : vector<512x4xf32>
    %2 = tpu.matmul %0, %1, %cst {dimension_numbers = #tpu.dot_dimension_numbers<[1], [0], [0], [1], [0, 0, 1, 1], [], []>} : vector<512x4xbf16>, vector<4x4xbf16>, vector<512x4xf32> -> vector<512x4xf32>
    %c0_3 = arith.constant 0 : index
    %c0_4 = arith.constant 0 : index
    %3 = vector.load %arg4[%c0_3, %c0_4] : memref<1x4xf32, #tpu.memory_space<vmem>>, vector<1x4xf32>
    %4 = vector.broadcast %3 : vector<1x4xf32> to vector<512x4xf32>
    %5 = arith.addf %2, %4 : vector<512x4xf32>
    %c0_5 = arith.constant 0 : index
    %c0_6 = arith.constant 0 : index
    %6 = vector.load %arg3[%c0_5, %c0_6] : memref<4x4xbf16, #tpu.memory_space<vmem>>, vector<4x4xbf16>
    %cst_7 = arith.constant dense<0.000000e+00> : vector<512x4xf32>
    %7 = tpu.matmul %0, %6, %cst_7 {dimension_numbers = #tpu.dot_dimension_numbers<[1], [0], [0], [1], [0, 0, 1, 1], [], []>} : vector<512x4xbf16>, vector<4x4xbf16>, vector<512x4xf32> -> vector<512x4xf32>
    %c0_8 = arith.constant 0 : index
    %c0_9 = arith.constant 0 : index
    %8 = vector.load %arg5[%c0_8, %c0_9] : memref<1x4xf32, #tpu.memory_space<vmem>>, vector<1x4xf32>
    %9 = vector.broadcast %8 : vector<1x4xf32> to vector<512x4xf32>
    %10 = arith.addf %7, %9 : vector<512x4xf32>
    %11 = arith.maximumf %5, %10 : vector<512x4xf32>
    %12 = arith.truncf %11 : vector<512x4xf32> to vector<512x4xbf16>
    %c0_10 = arith.constant 0 : index
    %c0_11 = arith.constant 0 : index
    %13 = vector.load %arg6[%c0_10, %c0_11] : memref<512x4xbf16, #tpu.memory_space<vmem>>, vector<512x4xbf16>
    tpu.vector_store %arg6[%c0_10, %c0_11], %12 {strides = array<i32>} : memref<512x4xbf16, #tpu.memory_space<vmem>>, vector<512x4xbf16>,
    return
  }
  func.func @transform_0(%arg0: i32) -> (i32, i32) {
    %c0_i32 = arith.constant 0 : i32
    %c0_i32_0 = arith.constant 0 : i32
    return %arg0, %c0_i32 : i32, i32
  }
  func.func @transform_1(%arg0: i32) -> (i32, i32) {
    %c0_i32 = arith.constant 0 : i32
    %c0_i32_0 = arith.constant 0 : i32
    %c0_i32_1 = arith.constant 0 : i32
    return %c0_i32, %c0_i32_0 : i32, i32
  }
  func.func @transform_2(%arg0: i32) -> (i32, i32) {
    %c0_i32 = arith.constant 0 : i32
    %c0_i32_0 = arith.constant 0 : i32
    %c0_i32_1 = arith.constant 0 : i32
    return %c0_i32, %c0_i32_0 : i32, i32
  }
  func.func @transform_3(%arg0: i32) -> (i32, i32) {
    %c0_i32 = arith.constant 0 : i32
    %c0_i32_0 = arith.constant 0 : i32
    %c0_i32_1 = arith.constant 0 : i32
    return %c0_i32, %c0_i32_0 : i32, i32
  }
  func.func @transform_4(%arg0: i32) -> (i32, i32) {
    %c0_i32 = arith.constant 0 : i32
    %c0_i32_0 = arith.constant 0 : i32
    %c0_i32_1 = arith.constant 0 : i32
    return %c0_i32, %c0_i32_0 : i32, i32
  }
  func.func @transform_5(%arg0: i32) -> (i32, i32) {
    %c0_i32 = arith.constant 0 : i32
    %c0_i32_0 = arith.constant 0 : i32
    return %arg0, %c0_i32 : i32, i32
  }
}

module attributes {stable_mosaic.version = 11 : i64} {
  func.func @_mfm_conv_kernel(%arg0: i32, %arg1: i32, %arg2: memref<1x18x18x4xbf16, #tpu.memory_space<vmem>>, %arg3: memref<9x4x8xbf16, #tpu.memory_space<vmem>>, %arg4: memref<9x4x8xbf16, #tpu.memory_space<vmem>>, %arg5: memref<1x8xf32, #tpu.memory_space<vmem>>, %arg6: memref<1x8xf32, #tpu.memory_space<vmem>>, %arg7: memref<1x8x16x8xf32, #tpu.memory_space<vmem>>) attributes {dimension_semantics = [#tpu.dimension_semantics<parallel>, #tpu.dimension_semantics<parallel>], iteration_bounds = array<i64: 2, 2>, scalar_prefetch = 0 : i64, scratch_operands = 0 : i64, tpu.core_type = #tpu.core_type<tc>, window_params = [{transform_indices = @transform_0, window_bounds = array<i64: 1, 18, 18, 4>}, {pipeline_mode = #tpu.pipeline_mode<synchronous>, transform_indices = @transform_1, window_bounds = array<i64: 9, 4, 8>}, {pipeline_mode = #tpu.pipeline_mode<synchronous>, transform_indices = @transform_2, window_bounds = array<i64: 9, 4, 8>}, {pipeline_mode = #tpu.pipeline_mode<synchronous>, transform_indices = @transform_3, window_bounds = array<i64: 1, 8>}, {pipeline_mode = #tpu.pipeline_mode<synchronous>, transform_indices = @transform_4, window_bounds = array<i64: 1, 8>}, {transform_indices = @transform_5, window_bounds = array<i64: 1, 8, 16, 8>}]} {
    %c8_i32 = arith.constant 8 : i32
    %0 = arith.muli %arg1, %c8_i32 : i32
    %cst = arith.constant 0.000000e+00 : f32
    %1 = vector.broadcast %cst : f32 to vector<128x8xf32>
    %cst_0 = arith.constant 0.000000e+00 : f32
    %2 = vector.broadcast %cst_0 : f32 to vector<128x8xf32>
    %c0_i32 = arith.constant 0 : i32
    %3 = arith.addi %0, %c0_i32 : i32
    %c0 = arith.constant 0 : index
    %4 = arith.index_cast %3 : i32 to index
    %c0_1 = arith.constant 0 : index
    %c0_2 = arith.constant 0 : index
    %5 = vector.load %arg2[%c0, %4, %c0_1, %c0_2] : memref<1x18x18x4xbf16, #tpu.memory_space<vmem>>, vector<1x8x16x4xbf16>
    %6 = vector.shape_cast %5 : vector<1x8x16x4xbf16> to vector<8x16x4xbf16>
    %7 = vector.shape_cast %6 : vector<8x16x4xbf16> to vector<128x4xbf16>
    %c0_3 = arith.constant 0 : index
    %c0_4 = arith.constant 0 : index
    %c0_5 = arith.constant 0 : index
    %8 = vector.load %arg3[%c0_3, %c0_4, %c0_5] : memref<9x4x8xbf16, #tpu.memory_space<vmem>>, vector<1x4x8xbf16>
    %9 = vector.shape_cast %8 : vector<1x4x8xbf16> to vector<4x8xbf16>
    %cst_6 = arith.constant dense<0.000000e+00> : vector<128x8xf32>
    %10 = tpu.matmul %7, %9, %cst_6 {dimension_numbers = #tpu.dot_dimension_numbers<[1], [0], [0], [1], [0, 0, 1, 1], [], []>} : vector<128x4xbf16>, vector<4x8xbf16>, vector<128x8xf32> -> vector<128x8xf32>
    %11 = arith.addf %1, %10 : vector<128x8xf32>
    %c0_7 = arith.constant 0 : index
    %c0_8 = arith.constant 0 : index
    %c0_9 = arith.constant 0 : index
    %12 = vector.load %arg4[%c0_7, %c0_8, %c0_9] : memref<9x4x8xbf16, #tpu.memory_space<vmem>>, vector<1x4x8xbf16>
    %13 = vector.shape_cast %12 : vector<1x4x8xbf16> to vector<4x8xbf16>
    %cst_10 = arith.constant dense<0.000000e+00> : vector<128x8xf32>
    %14 = tpu.matmul %7, %13, %cst_10 {dimension_numbers = #tpu.dot_dimension_numbers<[1], [0], [0], [1], [0, 0, 1, 1], [], []>} : vector<128x4xbf16>, vector<4x8xbf16>, vector<128x8xf32> -> vector<128x8xf32>
    %15 = arith.addf %2, %14 : vector<128x8xf32>
    %c0_i32_11 = arith.constant 0 : i32
    %16 = arith.addi %0, %c0_i32_11 : i32
    %c0_12 = arith.constant 0 : index
    %17 = arith.index_cast %16 : i32 to index
    %c1 = arith.constant 1 : index
    %c0_13 = arith.constant 0 : index
    %18 = vector.load %arg2[%c0_12, %17, %c1, %c0_13] : memref<1x18x18x4xbf16, #tpu.memory_space<vmem>>, vector<1x8x16x4xbf16>
    %19 = vector.shape_cast %18 : vector<1x8x16x4xbf16> to vector<8x16x4xbf16>
    %20 = vector.shape_cast %19 : vector<8x16x4xbf16> to vector<128x4xbf16>
    %c1_14 = arith.constant 1 : index
    %c0_15 = arith.constant 0 : index
    %c0_16 = arith.constant 0 : index
    %21 = vector.load %arg3[%c1_14, %c0_15, %c0_16] : memref<9x4x8xbf16, #tpu.memory_space<vmem>>, vector<1x4x8xbf16>
    %22 = vector.shape_cast %21 : vector<1x4x8xbf16> to vector<4x8xbf16>
    %cst_17 = arith.constant dense<0.000000e+00> : vector<128x8xf32>
    %23 = tpu.matmul %20, %22, %cst_17 {dimension_numbers = #tpu.dot_dimension_numbers<[1], [0], [0], [1], [0, 0, 1, 1], [], []>} : vector<128x4xbf16>, vector<4x8xbf16>, vector<128x8xf32> -> vector<128x8xf32>
    %24 = arith.addf %11, %23 : vector<128x8xf32>
    %c1_18 = arith.constant 1 : index
    %c0_19 = arith.constant 0 : index
    %c0_20 = arith.constant 0 : index
    %25 = vector.load %arg4[%c1_18, %c0_19, %c0_20] : memref<9x4x8xbf16, #tpu.memory_space<vmem>>, vector<1x4x8xbf16>
    %26 = vector.shape_cast %25 : vector<1x4x8xbf16> to vector<4x8xbf16>
    %cst_21 = arith.constant dense<0.000000e+00> : vector<128x8xf32>
    %27 = tpu.matmul %20, %26, %cst_21 {dimension_numbers = #tpu.dot_dimension_numbers<[1], [0], [0], [1], [0, 0, 1, 1], [], []>} : vector<128x4xbf16>, vector<4x8xbf16>, vector<128x8xf32> -> vector<128x8xf32>
    %28 = arith.addf %15, %27 : vector<128x8xf32>
    %c0_i32_22 = arith.constant 0 : i32
    %29 = arith.addi %0, %c0_i32_22 : i32
    %c0_23 = arith.constant 0 : index
    %30 = arith.index_cast %29 : i32 to index
    %c2 = arith.constant 2 : index
    %c0_24 = arith.constant 0 : index
    %31 = vector.load %arg2[%c0_23, %30, %c2, %c0_24] : memref<1x18x18x4xbf16, #tpu.memory_space<vmem>>, vector<1x8x16x4xbf16>
    %32 = vector.shape_cast %31 : vector<1x8x16x4xbf16> to vector<8x16x4xbf16>
    %33 = vector.shape_cast %32 : vector<8x16x4xbf16> to vector<128x4xbf16>
    %c2_25 = arith.constant 2 : index
    %c0_26 = arith.constant 0 : index
    %c0_27 = arith.constant 0 : index
    %34 = vector.load %arg3[%c2_25, %c0_26, %c0_27] : memref<9x4x8xbf16, #tpu.memory_space<vmem>>, vector<1x4x8xbf16>
    %35 = vector.shape_cast %34 : vector<1x4x8xbf16> to vector<4x8xbf16>
    %cst_28 = arith.constant dense<0.000000e+00> : vector<128x8xf32>
    %36 = tpu.matmul %33, %35, %cst_28 {dimension_numbers = #tpu.dot_dimension_numbers<[1], [0], [0], [1], [0, 0, 1, 1], [], []>} : vector<128x4xbf16>, vector<4x8xbf16>, vector<128x8xf32> -> vector<128x8xf32>
    %37 = arith.addf %24, %36 : vector<128x8xf32>
    %c2_29 = arith.constant 2 : index
    %c0_30 = arith.constant 0 : index
    %c0_31 = arith.constant 0 : index
    %38 = vector.load %arg4[%c2_29, %c0_30, %c0_31] : memref<9x4x8xbf16, #tpu.memory_space<vmem>>, vector<1x4x8xbf16>
    %39 = vector.shape_cast %38 : vector<1x4x8xbf16> to vector<4x8xbf16>
    %cst_32 = arith.constant dense<0.000000e+00> : vector<128x8xf32>
    %40 = tpu.matmul %33, %39, %cst_32 {dimension_numbers = #tpu.dot_dimension_numbers<[1], [0], [0], [1], [0, 0, 1, 1], [], []>} : vector<128x4xbf16>, vector<4x8xbf16>, vector<128x8xf32> -> vector<128x8xf32>
    %41 = arith.addf %28, %40 : vector<128x8xf32>
    %c1_i32 = arith.constant 1 : i32
    %42 = arith.addi %0, %c1_i32 : i32
    %c0_33 = arith.constant 0 : index
    %43 = arith.index_cast %42 : i32 to index
    %c0_34 = arith.constant 0 : index
    %c0_35 = arith.constant 0 : index
    %44 = vector.load %arg2[%c0_33, %43, %c0_34, %c0_35] : memref<1x18x18x4xbf16, #tpu.memory_space<vmem>>, vector<1x8x16x4xbf16>
    %45 = vector.shape_cast %44 : vector<1x8x16x4xbf16> to vector<8x16x4xbf16>
    %46 = vector.shape_cast %45 : vector<8x16x4xbf16> to vector<128x4xbf16>
    %c3 = arith.constant 3 : index
    %c0_36 = arith.constant 0 : index
    %c0_37 = arith.constant 0 : index
    %47 = vector.load %arg3[%c3, %c0_36, %c0_37] : memref<9x4x8xbf16, #tpu.memory_space<vmem>>, vector<1x4x8xbf16>
    %48 = vector.shape_cast %47 : vector<1x4x8xbf16> to vector<4x8xbf16>
    %cst_38 = arith.constant dense<0.000000e+00> : vector<128x8xf32>
    %49 = tpu.matmul %46, %48, %cst_38 {dimension_numbers = #tpu.dot_dimension_numbers<[1], [0], [0], [1], [0, 0, 1, 1], [], []>} : vector<128x4xbf16>, vector<4x8xbf16>, vector<128x8xf32> -> vector<128x8xf32>
    %50 = arith.addf %37, %49 : vector<128x8xf32>
    %c3_39 = arith.constant 3 : index
    %c0_40 = arith.constant 0 : index
    %c0_41 = arith.constant 0 : index
    %51 = vector.load %arg4[%c3_39, %c0_40, %c0_41] : memref<9x4x8xbf16, #tpu.memory_space<vmem>>, vector<1x4x8xbf16>
    %52 = vector.shape_cast %51 : vector<1x4x8xbf16> to vector<4x8xbf16>
    %cst_42 = arith.constant dense<0.000000e+00> : vector<128x8xf32>
    %53 = tpu.matmul %46, %52, %cst_42 {dimension_numbers = #tpu.dot_dimension_numbers<[1], [0], [0], [1], [0, 0, 1, 1], [], []>} : vector<128x4xbf16>, vector<4x8xbf16>, vector<128x8xf32> -> vector<128x8xf32>
    %54 = arith.addf %41, %53 : vector<128x8xf32>
    %c1_i32_43 = arith.constant 1 : i32
    %55 = arith.addi %0, %c1_i32_43 : i32
    %c0_44 = arith.constant 0 : index
    %56 = arith.index_cast %55 : i32 to index
    %c1_45 = arith.constant 1 : index
    %c0_46 = arith.constant 0 : index
    %57 = vector.load %arg2[%c0_44, %56, %c1_45, %c0_46] : memref<1x18x18x4xbf16, #tpu.memory_space<vmem>>, vector<1x8x16x4xbf16>
    %58 = vector.shape_cast %57 : vector<1x8x16x4xbf16> to vector<8x16x4xbf16>
    %59 = vector.shape_cast %58 : vector<8x16x4xbf16> to vector<128x4xbf16>
    %c4 = arith.constant 4 : index
    %c0_47 = arith.constant 0 : index
    %c0_48 = arith.constant 0 : index
    %60 = vector.load %arg3[%c4, %c0_47, %c0_48] : memref<9x4x8xbf16, #tpu.memory_space<vmem>>, vector<1x4x8xbf16>
    %61 = vector.shape_cast %60 : vector<1x4x8xbf16> to vector<4x8xbf16>
    %cst_49 = arith.constant dense<0.000000e+00> : vector<128x8xf32>
    %62 = tpu.matmul %59, %61, %cst_49 {dimension_numbers = #tpu.dot_dimension_numbers<[1], [0], [0], [1], [0, 0, 1, 1], [], []>} : vector<128x4xbf16>, vector<4x8xbf16>, vector<128x8xf32> -> vector<128x8xf32>
    %63 = arith.addf %50, %62 : vector<128x8xf32>
    %c4_50 = arith.constant 4 : index
    %c0_51 = arith.constant 0 : index
    %c0_52 = arith.constant 0 : index
    %64 = vector.load %arg4[%c4_50, %c0_51, %c0_52] : memref<9x4x8xbf16, #tpu.memory_space<vmem>>, vector<1x4x8xbf16>
    %65 = vector.shape_cast %64 : vector<1x4x8xbf16> to vector<4x8xbf16>
    %cst_53 = arith.constant dense<0.000000e+00> : vector<128x8xf32>
    %66 = tpu.matmul %59, %65, %cst_53 {dimension_numbers = #tpu.dot_dimension_numbers<[1], [0], [0], [1], [0, 0, 1, 1], [], []>} : vector<128x4xbf16>, vector<4x8xbf16>, vector<128x8xf32> -> vector<128x8xf32>
    %67 = arith.addf %54, %66 : vector<128x8xf32>
    %c1_i32_54 = arith.constant 1 : i32
    %68 = arith.addi %0, %c1_i32_54 : i32
    %c0_55 = arith.constant 0 : index
    %69 = arith.index_cast %68 : i32 to index
    %c2_56 = arith.constant 2 : index
    %c0_57 = arith.constant 0 : index
    %70 = vector.load %arg2[%c0_55, %69, %c2_56, %c0_57] : memref<1x18x18x4xbf16, #tpu.memory_space<vmem>>, vector<1x8x16x4xbf16>
    %71 = vector.shape_cast %70 : vector<1x8x16x4xbf16> to vector<8x16x4xbf16>
    %72 = vector.shape_cast %71 : vector<8x16x4xbf16> to vector<128x4xbf16>
    %c5 = arith.constant 5 : index
    %c0_58 = arith.constant 0 : index
    %c0_59 = arith.constant 0 : index
    %73 = vector.load %arg3[%c5, %c0_58, %c0_59] : memref<9x4x8xbf16, #tpu.memory_space<vmem>>, vector<1x4x8xbf16>
    %74 = vector.shape_cast %73 : vector<1x4x8xbf16> to vector<4x8xbf16>
    %cst_60 = arith.constant dense<0.000000e+00> : vector<128x8xf32>
    %75 = tpu.matmul %72, %74, %cst_60 {dimension_numbers = #tpu.dot_dimension_numbers<[1], [0], [0], [1], [0, 0, 1, 1], [], []>} : vector<128x4xbf16>, vector<4x8xbf16>, vector<128x8xf32> -> vector<128x8xf32>
    %76 = arith.addf %63, %75 : vector<128x8xf32>
    %c5_61 = arith.constant 5 : index
    %c0_62 = arith.constant 0 : index
    %c0_63 = arith.constant 0 : index
    %77 = vector.load %arg4[%c5_61, %c0_62, %c0_63] : memref<9x4x8xbf16, #tpu.memory_space<vmem>>, vector<1x4x8xbf16>
    %78 = vector.shape_cast %77 : vector<1x4x8xbf16> to vector<4x8xbf16>
    %cst_64 = arith.constant dense<0.000000e+00> : vector<128x8xf32>
    %79 = tpu.matmul %72, %78, %cst_64 {dimension_numbers = #tpu.dot_dimension_numbers<[1], [0], [0], [1], [0, 0, 1, 1], [], []>} : vector<128x4xbf16>, vector<4x8xbf16>, vector<128x8xf32> -> vector<128x8xf32>
    %80 = arith.addf %67, %79 : vector<128x8xf32>
    %c2_i32 = arith.constant 2 : i32
    %81 = arith.addi %0, %c2_i32 : i32
    %c0_65 = arith.constant 0 : index
    %82 = arith.index_cast %81 : i32 to index
    %c0_66 = arith.constant 0 : index
    %c0_67 = arith.constant 0 : index
    %83 = vector.load %arg2[%c0_65, %82, %c0_66, %c0_67] : memref<1x18x18x4xbf16, #tpu.memory_space<vmem>>, vector<1x8x16x4xbf16>
    %84 = vector.shape_cast %83 : vector<1x8x16x4xbf16> to vector<8x16x4xbf16>
    %85 = vector.shape_cast %84 : vector<8x16x4xbf16> to vector<128x4xbf16>
    %c6 = arith.constant 6 : index
    %c0_68 = arith.constant 0 : index
    %c0_69 = arith.constant 0 : index
    %86 = vector.load %arg3[%c6, %c0_68, %c0_69] : memref<9x4x8xbf16, #tpu.memory_space<vmem>>, vector<1x4x8xbf16>
    %87 = vector.shape_cast %86 : vector<1x4x8xbf16> to vector<4x8xbf16>
    %cst_70 = arith.constant dense<0.000000e+00> : vector<128x8xf32>
    %88 = tpu.matmul %85, %87, %cst_70 {dimension_numbers = #tpu.dot_dimension_numbers<[1], [0], [0], [1], [0, 0, 1, 1], [], []>} : vector<128x4xbf16>, vector<4x8xbf16>, vector<128x8xf32> -> vector<128x8xf32>
    %89 = arith.addf %76, %88 : vector<128x8xf32>
    %c6_71 = arith.constant 6 : index
    %c0_72 = arith.constant 0 : index
    %c0_73 = arith.constant 0 : index
    %90 = vector.load %arg4[%c6_71, %c0_72, %c0_73] : memref<9x4x8xbf16, #tpu.memory_space<vmem>>, vector<1x4x8xbf16>
    %91 = vector.shape_cast %90 : vector<1x4x8xbf16> to vector<4x8xbf16>
    %cst_74 = arith.constant dense<0.000000e+00> : vector<128x8xf32>
    %92 = tpu.matmul %85, %91, %cst_74 {dimension_numbers = #tpu.dot_dimension_numbers<[1], [0], [0], [1], [0, 0, 1, 1], [], []>} : vector<128x4xbf16>, vector<4x8xbf16>, vector<128x8xf32> -> vector<128x8xf32>
    %93 = arith.addf %80, %92 : vector<128x8xf32>
    %c2_i32_75 = arith.constant 2 : i32
    %94 = arith.addi %0, %c2_i32_75 : i32
    %c0_76 = arith.constant 0 : index
    %95 = arith.index_cast %94 : i32 to index
    %c1_77 = arith.constant 1 : index
    %c0_78 = arith.constant 0 : index
    %96 = vector.load %arg2[%c0_76, %95, %c1_77, %c0_78] : memref<1x18x18x4xbf16, #tpu.memory_space<vmem>>, vector<1x8x16x4xbf16>
    %97 = vector.shape_cast %96 : vector<1x8x16x4xbf16> to vector<8x16x4xbf16>
    %98 = vector.shape_cast %97 : vector<8x16x4xbf16> to vector<128x4xbf16>
    %c7 = arith.constant 7 : index
    %c0_79 = arith.constant 0 : index
    %c0_80 = arith.constant 0 : index
    %99 = vector.load %arg3[%c7, %c0_79, %c0_80] : memref<9x4x8xbf16, #tpu.memory_space<vmem>>, vector<1x4x8xbf16>
    %100 = vector.shape_cast %99 : vector<1x4x8xbf16> to vector<4x8xbf16>
    %cst_81 = arith.constant dense<0.000000e+00> : vector<128x8xf32>
    %101 = tpu.matmul %98, %100, %cst_81 {dimension_numbers = #tpu.dot_dimension_numbers<[1], [0], [0], [1], [0, 0, 1, 1], [], []>} : vector<128x4xbf16>, vector<4x8xbf16>, vector<128x8xf32> -> vector<128x8xf32>
    %102 = arith.addf %89, %101 : vector<128x8xf32>
    %c7_82 = arith.constant 7 : index
    %c0_83 = arith.constant 0 : index
    %c0_84 = arith.constant 0 : index
    %103 = vector.load %arg4[%c7_82, %c0_83, %c0_84] : memref<9x4x8xbf16, #tpu.memory_space<vmem>>, vector<1x4x8xbf16>
    %104 = vector.shape_cast %103 : vector<1x4x8xbf16> to vector<4x8xbf16>
    %cst_85 = arith.constant dense<0.000000e+00> : vector<128x8xf32>
    %105 = tpu.matmul %98, %104, %cst_85 {dimension_numbers = #tpu.dot_dimension_numbers<[1], [0], [0], [1], [0, 0, 1, 1], [], []>} : vector<128x4xbf16>, vector<4x8xbf16>, vector<128x8xf32> -> vector<128x8xf32>
    %106 = arith.addf %93, %105 : vector<128x8xf32>
    %c2_i32_86 = arith.constant 2 : i32
    %107 = arith.addi %0, %c2_i32_86 : i32
    %c0_87 = arith.constant 0 : index
    %108 = arith.index_cast %107 : i32 to index
    %c2_88 = arith.constant 2 : index
    %c0_89 = arith.constant 0 : index
    %109 = vector.load %arg2[%c0_87, %108, %c2_88, %c0_89] : memref<1x18x18x4xbf16, #tpu.memory_space<vmem>>, vector<1x8x16x4xbf16>
    %110 = vector.shape_cast %109 : vector<1x8x16x4xbf16> to vector<8x16x4xbf16>
    %111 = vector.shape_cast %110 : vector<8x16x4xbf16> to vector<128x4xbf16>
    %c8 = arith.constant 8 : index
    %c0_90 = arith.constant 0 : index
    %c0_91 = arith.constant 0 : index
    %112 = vector.load %arg3[%c8, %c0_90, %c0_91] : memref<9x4x8xbf16, #tpu.memory_space<vmem>>, vector<1x4x8xbf16>
    %113 = vector.shape_cast %112 : vector<1x4x8xbf16> to vector<4x8xbf16>
    %cst_92 = arith.constant dense<0.000000e+00> : vector<128x8xf32>
    %114 = tpu.matmul %111, %113, %cst_92 {dimension_numbers = #tpu.dot_dimension_numbers<[1], [0], [0], [1], [0, 0, 1, 1], [], []>} : vector<128x4xbf16>, vector<4x8xbf16>, vector<128x8xf32> -> vector<128x8xf32>
    %115 = arith.addf %102, %114 : vector<128x8xf32>
    %c8_93 = arith.constant 8 : index
    %c0_94 = arith.constant 0 : index
    %c0_95 = arith.constant 0 : index
    %116 = vector.load %arg4[%c8_93, %c0_94, %c0_95] : memref<9x4x8xbf16, #tpu.memory_space<vmem>>, vector<1x4x8xbf16>
    %117 = vector.shape_cast %116 : vector<1x4x8xbf16> to vector<4x8xbf16>
    %cst_96 = arith.constant dense<0.000000e+00> : vector<128x8xf32>
    %118 = tpu.matmul %111, %117, %cst_96 {dimension_numbers = #tpu.dot_dimension_numbers<[1], [0], [0], [1], [0, 0, 1, 1], [], []>} : vector<128x4xbf16>, vector<4x8xbf16>, vector<128x8xf32> -> vector<128x8xf32>
    %119 = arith.addf %106, %118 : vector<128x8xf32>
    %c0_97 = arith.constant 0 : index
    %c0_98 = arith.constant 0 : index
    %120 = vector.load %arg5[%c0_97, %c0_98] : memref<1x8xf32, #tpu.memory_space<vmem>>, vector<1x8xf32>
    %121 = vector.broadcast %120 : vector<1x8xf32> to vector<128x8xf32>
    %122 = arith.addf %115, %121 : vector<128x8xf32>
    %c0_99 = arith.constant 0 : index
    %c0_100 = arith.constant 0 : index
    %123 = vector.load %arg6[%c0_99, %c0_100] : memref<1x8xf32, #tpu.memory_space<vmem>>, vector<1x8xf32>
    %124 = vector.broadcast %123 : vector<1x8xf32> to vector<128x8xf32>
    %125 = arith.addf %119, %124 : vector<128x8xf32>
    %126 = arith.maximumf %122, %125 : vector<128x8xf32>
    %127 = vector.shape_cast %126 : vector<128x8xf32> to vector<1x8x16x8xf32>
    %c0_101 = arith.constant 0 : index
    %c0_102 = arith.constant 0 : index
    %c0_103 = arith.constant 0 : index
    %c0_104 = arith.constant 0 : index
    %128 = vector.load %arg7[%c0_101, %c0_102, %c0_103, %c0_104] : memref<1x8x16x8xf32, #tpu.memory_space<vmem>>, vector<1x8x16x8xf32>
    tpu.vector_store %arg7[%c0_101, %c0_102, %c0_103, %c0_104], %127 {strides = array<i32>} : memref<1x8x16x8xf32, #tpu.memory_space<vmem>>, vector<1x8x16x8xf32>,
    return
  }
  func.func @transform_0(%arg0: i32, %arg1: i32) -> (i32, i32, i32, i32) {
    %c0_i32 = arith.constant 0 : i32
    %c0_i32_0 = arith.constant 0 : i32
    %c0_i32_1 = arith.constant 0 : i32
    %c0_i32_2 = arith.constant 0 : i32
    return %arg0, %c0_i32, %c0_i32_0, %c0_i32_1 : i32, i32, i32, i32
  }
  func.func @transform_1(%arg0: i32, %arg1: i32) -> (i32, i32, i32) {
    %c0_i32 = arith.constant 0 : i32
    %c0_i32_0 = arith.constant 0 : i32
    %c0_i32_1 = arith.constant 0 : i32
    %c0_i32_2 = arith.constant 0 : i32
    return %c0_i32, %c0_i32_0, %c0_i32_1 : i32, i32, i32
  }
  func.func @transform_2(%arg0: i32, %arg1: i32) -> (i32, i32, i32) {
    %c0_i32 = arith.constant 0 : i32
    %c0_i32_0 = arith.constant 0 : i32
    %c0_i32_1 = arith.constant 0 : i32
    %c0_i32_2 = arith.constant 0 : i32
    return %c0_i32, %c0_i32_0, %c0_i32_1 : i32, i32, i32
  }
  func.func @transform_3(%arg0: i32, %arg1: i32) -> (i32, i32) {
    %c0_i32 = arith.constant 0 : i32
    %c0_i32_0 = arith.constant 0 : i32
    %c0_i32_1 = arith.constant 0 : i32
    return %c0_i32, %c0_i32_0 : i32, i32
  }
  func.func @transform_4(%arg0: i32, %arg1: i32) -> (i32, i32) {
    %c0_i32 = arith.constant 0 : i32
    %c0_i32_0 = arith.constant 0 : i32
    %c0_i32_1 = arith.constant 0 : i32
    return %c0_i32, %c0_i32_0 : i32, i32
  }
  func.func @transform_5(%arg0: i32, %arg1: i32) -> (i32, i32, i32, i32) {
    %c0_i32 = arith.constant 0 : i32
    %c0_i32_0 = arith.constant 0 : i32
    %c0_i32_1 = arith.constant 0 : i32
    return %arg0, %arg1, %c0_i32, %c0_i32_0 : i32, i32, i32, i32
  }
}

</mosaic_0001>

<llo_original>
// kernel: group_forward.2
$region0: #{group_forward.2}
  #allocation0 [shape = 'u32[]', space=smem, size = 0x4, offset = 0x4, fixed_abs, tag = 'smem constant byte address 0x4 - core index']
  #allocation1 [shape = 'u32[144,128]{1,0:T(1,128)}', space=vmem, size = 0x12000, scoped, tag = 'internal scratch']
  %s0 = inlined_call_operand.vmem [shape: bf16[512,4], index: 0, kind: input, shape index: {}]
  %s1 = inlined_call_operand.vmem [shape: bf16[4,4], index: 1, kind: input, shape index: {}]
  %s2 = inlined_call_operand.vmem [shape: bf16[4,4], index: 2, kind: input, shape index: {}]
  %s3 = inlined_call_operand.vmem [shape: f32[1,4], index: 3, kind: input, shape index: {}]
  %s4 = inlined_call_operand.vmem [shape: f32[1,4], index: 4, kind: input, shape index: {}]
  %s5 = inlined_call_operand.vmem [shape: bf16[512,4], index: 5, kind: output, shape index: {}]
  %s6 = sld [smem:[#allocation0]]
  $region30: #{group_forward.2} parent=0
    _
  %s8 = ssub.s32 1, %s6
  %s9 = scalar_select 0, %s8, %s6
  // Predicated region
  $region2: #{group_forward.2} parent=0 // pred_check
    _
  $region3: #{group_forward.2} parent=0 // pred_check_branch
    %11 = sbr.rel (0) target = $region5
  $region4: #{group_forward.2} parent=0 // pred_region
    _
  $region5: #{group_forward.2} parent=0 // pred_fallthru
    _
  // Predicated region
  $region6: #{group_forward.2} parent=0 // pred_check
    _
  $region7: #{group_forward.2} parent=0 // pred_check_branch
    %13 = sbr.rel (0) target = $region9
  $region8: #{group_forward.2} parent=0 // pred_region
    _
  $region9: #{group_forward.2} parent=0 // pred_fallthru
    _
  // Predicated region
  $region10: #{group_forward.2} parent=0 // pred_check
    _
  $region11: #{group_forward.2} parent=0 // pred_check_branch
    %15 = sbr.rel (0) target = $region13
  $region12: #{group_forward.2} parent=0 // pred_region
    _
  $region13: #{group_forward.2} parent=0 // pred_fallthru
    _
  // Predicated region
  $region14: #{group_forward.2} parent=0 // pred_check
    _
  $region15: #{group_forward.2} parent=0 // pred_check_branch
    %17 = sbr.rel (0) target = $region17
  $region16: #{group_forward.2} parent=0 // pred_region
    _
  $region17: #{group_forward.2} parent=0 // pred_fallthru
    _
  // Predicated region
  $region18: #{group_forward.2} parent=0 // pred_check
    _
  $region19: #{group_forward.2} parent=0 // pred_check_branch
    %19 = sbr.rel (0) target = $region21
  $region20: #{group_forward.2} parent=0 // pred_region
    _
  $region21: #{group_forward.2} parent=0 // pred_fallthru
    _
  %v21 = vld [vmem:[%s0] sm:$0xf]
  %v22 = vld [vmem:[%s0 + $0x4] sm:$0xf]
  %v23 = vld [vmem:[%s0 + $0x8] sm:$0xf]
  %v24 = vld [vmem:[%s0 + $0xc] sm:$0xf]
  %v25 = vld [vmem:[%s0 + $0x10] sm:$0xf]
  %v26 = vld [vmem:[%s0 + $0x14] sm:$0xf]
  %v27 = vld [vmem:[%s0 + $0x18] sm:$0xf]
  %v28 = vld [vmem:[%s0 + $0x1c] sm:$0xf]
  %v29 = vld [vmem:[%s0 + $0x20] sm:$0xf]
  %v30 = vld [vmem:[%s0 + $0x24] sm:$0xf]
  %v31 = vld [vmem:[%s0 + $0x28] sm:$0xf]
  %v32 = vld [vmem:[%s0 + $0x2c] sm:$0xf]
  %v33 = vld [vmem:[%s0 + $0x30] sm:$0xf]
  %v34 = vld [vmem:[%s0 + $0x34] sm:$0xf]
  %v35 = vld [vmem:[%s0 + $0x38] sm:$0xf]
  %v36 = vld [vmem:[%s0 + $0x3c] sm:$0xf]
  %v37 = vld [vmem:[%s0 + $0x40] sm:$0xf]
  %v38 = vld [vmem:[%s0 + $0x44] sm:$0xf]
  %v39 = vld [vmem:[%s0 + $0x48] sm:$0xf]
  %v40 = vld [vmem:[%s0 + $0x4c] sm:$0xf]
  %v41 = vld [vmem:[%s0 + $0x50] sm:$0xf]
  %v42 = vld [vmem:[%s0 + $0x54] sm:$0xf]
  %v43 = vld [vmem:[%s0 + $0x58] sm:$0xf]
  %v44 = vld [vmem:[%s0 + $0x5c] sm:$0xf]
  %v45 = vld [vmem:[%s0 + $0x60] sm:$0xf]
  %v46 = vld [vmem:[%s0 + $0x64] sm:$0xf]
  %v47 = vld [vmem:[%s0 + $0x68] sm:$0xf]
  %v48 = vld [vmem:[%s0 + $0x6c] sm:$0xf]
  %v49 = vld [vmem:[%s0 + $0x70] sm:$0xf]
  %v50 = vld [vmem:[%s0 + $0x74] sm:$0xf]
  %v51 = vld [vmem:[%s0 + $0x78] sm:$0xf]
  %v52 = vld [vmem:[%s0 + $0x7c] sm:$0xf]
  %v53 = vld [vmem:[%s0 + $0x80] sm:$0xf]
  %v54 = vld [vmem:[%s0 + $0x84] sm:$0xf]
  %v55 = vld [vmem:[%s0 + $0x88] sm:$0xf]
  %v56 = vld [vmem:[%s0 + $0x8c] sm:$0xf]
  %v57 = vld [vmem:[%s0 + $0x90] sm:$0xf]
  %v58 = vld [vmem:[%s0 + $0x94] sm:$0xf]
  %v59 = vld [vmem:[%s0 + $0x98] sm:$0xf]
  %v60 = vld [vmem:[%s0 + $0x9c] sm:$0xf]
  %v61 = vld [vmem:[%s0 + $0xa0] sm:$0xf]
  %v62 = vld [vmem:[%s0 + $0xa4] sm:$0xf]
  %v63 = vld [vmem:[%s0 + $0xa8] sm:$0xf]
  %v64 = vld [vmem:[%s0 + $0xac] sm:$0xf]
  %v65 = vld [vmem:[%s0 + $0xb0] sm:$0xf]
  %v66 = vld [vmem:[%s0 + $0xb4] sm:$0xf]
  %v67 = vld [vmem:[%s0 + $0xb8] sm:$0xf]
  %v68 = vld [vmem:[%s0 + $0xbc] sm:$0xf]
  %v69 = vld [vmem:[%s0 + $0xc0] sm:$0xf]
  %v70 = vld [vmem:[%s0 + $0xc4] sm:$0xf]
  %v71 = vld [vmem:[%s0 + $0xc8] sm:$0xf]
  %v72 = vld [vmem:[%s0 + $0xcc] sm:$0xf]
  %v73 = vld [vmem:[%s0 + $0xd0] sm:$0xf]
  %v74 = vld [vmem:[%s0 + $0xd4] sm:$0xf]
  %v75 = vld [vmem:[%s0 + $0xd8] sm:$0xf]
  %v76 = vld [vmem:[%s0 + $0xdc] sm:$0xf]
  %v77 = vld [vmem:[%s0 + $0xe0] sm:$0xf]
  %v78 = vld [vmem:[%s0 + $0xe4] sm:$0xf]
  %v79 = vld [vmem:[%s0 + $0xe8] sm:$0xf]
  %v80 = vld [vmem:[%s0 + $0xec] sm:$0xf]
  %v81 = vld [vmem:[%s0 + $0xf0] sm:$0xf]
  %v82 = vld [vmem:[%s0 + $0xf4] sm:$0xf]
  %v83 = vld [vmem:[%s0 + $0xf8] sm:$0xf]
  %v84 = vld [vmem:[%s0 + $0xfc] sm:$0xf]
  %v85 = vld [vmem:[%s1] sm:$0x3]
  %v86 = vld [vmem:[%s3] sm:$0x1]
  %v88 = vlaneseq
  %v89 = vshrl.u32 %v88, 7
  %v90 = vsub.s32 0, %v89
  %v91 = vrot.slane %v86, %v90
  %v157 = vunpack.c.l.b16 %v21
  %v158 = vunpack.c.l.b16 %v22
  %v159 = vunpack.c.l.b16 %v23
  %v160 = vunpack.c.l.b16 %v24
  %v161 = vunpack.c.l.b16 %v25
  %v162 = vunpack.c.l.b16 %v26
  %v163 = vunpack.c.l.b16 %v27
  %v164 = vunpack.c.l.b16 %v28
  %v165 = vunpack.c.l.b16 %v29
  %v166 = vunpack.c.l.b16 %v30
  %v167 = vunpack.c.l.b16 %v31
  %v168 = vunpack.c.l.b16 %v32
  %v169 = vunpack.c.l.b16 %v33
  %v170 = vunpack.c.l.b16 %v34
  %v171 = vunpack.c.l.b16 %v35
  %v172 = vunpack.c.l.b16 %v36
  %v173 = vunpack.c.l.b16 %v37
  %v174 = vunpack.c.l.b16 %v38
  %v175 = vunpack.c.l.b16 %v39
  %v176 = vunpack.c.l.b16 %v40
  %v177 = vunpack.c.l.b16 %v41
  %v178 = vunpack.c.l.b16 %v42
  %v179 = vunpack.c.l.b16 %v43
  %v180 = vunpack.c.l.b16 %v44
  %v181 = vunpack.c.l.b16 %v45
  %v182 = vunpack.c.l.b16 %v46
  %v183 = vunpack.c.l.b16 %v47
  %v184 = vunpack.c.l.b16 %v48
  %v185 = vunpack.c.l.b16 %v49
  %v186 = vunpack.c.l.b16 %v50
  %v187 = vunpack.c.l.b16 %v51
  %v188 = vunpack.c.l.b16 %v52
  %v189 = vunpack.c.l.b16 %v53
  %v190 = vunpack.c.l.b16 %v54
  %v191 = vunpack.c.l.b16 %v55
  %v192 = vunpack.c.l.b16 %v56
  %v193 = vunpack.c.l.b16 %v57
  %v194 = vunpack.c.l.b16 %v58
  %v195 = vunpack.c.l.b16 %v59
  %v196 = vunpack.c.l.b16 %v60
  %v197 = vunpack.c.l.b16 %v61
  %v198 = vunpack.c.l.b16 %v62
  %v199 = vunpack.c.l.b16 %v63
  %v200 = vunpack.c.l.b16 %v64
  %v201 = vunpack.c.l.b16 %v65
  %v202 = vunpack.c.l.b16 %v66
  %v203 = vunpack.c.l.b16 %v67
  %v204 = vunpack.c.l.b16 %v68
  %v205 = vunpack.c.l.b16 %v69
  %v206 = vunpack.c.l.b16 %v70
  %v207 = vunpack.c.l.b16 %v71
  %v208 = vunpack.c.l.b16 %v72
  %v209 = vunpack.c.l.b16 %v73
  %v210 = vunpack.c.l.b16 %v74
  %v211 = vunpack.c.l.b16 %v75
  %v212 = vunpack.c.l.b16 %v76
  %v213 = vunpack.c.l.b16 %v77
  %v214 = vunpack.c.l.b16 %v78
  %v215 = vunpack.c.l.b16 %v79
  %v216 = vunpack.c.l.b16 %v80
  %v217 = vunpack.c.l.b16 %v81
  %v218 = vunpack.c.l.b16 %v82
  %v219 = vunpack.c.l.b16 %v83
  %v220 = vunpack.c.l.b16 %v84
  %v221 = vpack.c.b16 %v158, %v157
  %v222 = vpack.c.b16 %v160, %v159
  %v223 = vpack.c.b16 %v162, %v161
  %v224 = vpack.c.b16 %v164, %v163
  %v225 = vpack.c.b16 %v166, %v165
  %v226 = vpack.c.b16 %v168, %v167
  %v227 = vpack.c.b16 %v170, %v169
  %v228 = vpack.c.b16 %v172, %v171
  %v229 = vpack.c.b16 %v174, %v173
  %v230 = vpack.c.b16 %v176, %v175
  %v231 = vpack.c.b16 %v178, %v177
  %v232 = vpack.c.b16 %v180, %v179
  %v233 = vpack.c.b16 %v182, %v181
  %v234 = vpack.c.b16 %v184, %v183
  %v235 = vpack.c.b16 %v186, %v185
  %v236 = vpack.c.b16 %v188, %v187
  %v237 = vpack.c.b16 %v190, %v189
  %v238 = vpack.c.b16 %v192, %v191
  %v239 = vpack.c.b16 %v194, %v193
  %v240 = vpack.c.b16 %v196, %v195
  %v241 = vpack.c.b16 %v198, %v197
  %v242 = vpack.c.b16 %v200, %v199
  %v243 = vpack.c.b16 %v202, %v201
  %v244 = vpack.c.b16 %v204, %v203
  %v245 = vpack.c.b16 %v206, %v205
  %v246 = vpack.c.b16 %v208, %v207
  %v247 = vpack.c.b16 %v210, %v209
  %v248 = vpack.c.b16 %v212, %v211
  %v249 = vpack.c.b16 %v214, %v213
  %v250 = vpack.c.b16 %v216, %v215
  %v251 = vpack.c.b16 %v218, %v217
  %v252 = vpack.c.b16 %v220, %v219
  %vm253 = vcmask 31744
  %v255 = vsel %vm253, %v221, 0
  %v258 = vsel %vm253, %v222, 0
  %v261 = vsel %vm253, %v223, 0
  %v264 = vsel %vm253, %v224, 0
  %v267 = vsel %vm253, %v225, 0
  %v270 = vsel %vm253, %v226, 0
  %v273 = vsel %vm253, %v227, 0
  %v276 = vsel %vm253, %v228, 0
  %v279 = vsel %vm253, %v229, 0
  %v282 = vsel %vm253, %v230, 0
  %v285 = vsel %vm253, %v231, 0
  %v288 = vsel %vm253, %v232, 0
  %v291 = vsel %vm253, %v233, 0
  %v294 = vsel %vm253, %v234, 0
  %v297 = vsel %vm253, %v235, 0
  %v300 = vsel %vm253, %v236, 0
  %v303 = vsel %vm253, %v237, 0
  %v306 = vsel %vm253, %v238, 0
  %v309 = vsel %vm253, %v239, 0
  %v312 = vsel %vm253, %v240, 0
  %v315 = vsel %vm253, %v241, 0
  %v318 = vsel %vm253, %v242, 0
  %v321 = vsel %vm253, %v243, 0
  %v324 = vsel %vm253, %v244, 0
  %v327 = vsel %vm253, %v245, 0
  %v330 = vsel %vm253, %v246, 0
  %v333 = vsel %vm253, %v247, 0
  %v336 = vsel %vm253, %v248, 0
  %v339 = vsel %vm253, %v249, 0
  %v342 = vsel %vm253, %v250, 0
  %v345 = vsel %vm253, %v251, 0
  %v348 = vsel %vm253, %v252, 0
  %vm350 = vcmask 1041408
  %v352 = vsel %vm350, %v85, 0
  %354 = vmatprep.subr.bf16.mxu0 0
  %355 = vmatpush1.bf16.msra.mxu0 %v352
  %356 = vmatprep.subr.bf16.mxu0 0
  %357 = vmatpush1.bf16.msra.mxu0 0
  %358 = vmatprep.subr.bf16.mxu0 0
  %359 = vmatpush1.bf16.msra.mxu0 0
  %360 = vmatprep.subr.bf16.mxu0 0
  %361 = vmatpush1.bf16.msra.mxu0 0
  %362 = vmatprep.subr.bf16.mxu0 0
  %363 = vmatpush1.bf16.msra.mxu0 0
  %364 = vmatprep.subr.bf16.mxu0 0
  %365 = vmatpush1.bf16.msra.mxu0 0
  %366 = vmatprep.subr.bf16.mxu0 0
  %367 = vmatpush1.bf16.msra.mxu0 0
  %368 = vmatprep.subr.bf16.mxu0 0
  %369 = vmatpush1.bf16.msra.mxu0 0
  %370 = vmatprep.subr.bf16.mxu0 0
  %371 = vmatpush1.bf16.msra.mxu0 0
  %372 = vmatprep.subr.bf16.mxu0 0
  %373 = vmatpush1.bf16.msra.mxu0 0
  %374 = vmatprep.subr.bf16.mxu0 0
  %375 = vmatpush1.bf16.msra.mxu0 0
  %376 = vmatprep.subr.bf16.mxu0 0
  %377 = vmatpush1.bf16.msra.mxu0 0
  %378 = vmatprep.subr.bf16.mxu0 0
  %379 = vmatpush1.bf16.msra.mxu0 0
  %380 = vmatprep.subr.bf16.mxu0 0
  %381 = vmatpush1.bf16.msra.mxu0 0
  %382 = vmatprep.subr.bf16.mxu0 0
  %383 = vmatpush1.bf16.msra.mxu0 0
  %384 = vmatprep.subr.bf16.mxu0 0
  %385 = vmatpush1.bf16.msra.mxu0 0
  %386 = vmatprep.mubr.bf16.mxu0 0
  %387 = vmatmul.mubr.bf16.gmra.mrb[0].mxu0 %v255
  %v388 = vpop.f32.mrb[0].mxu0
  %v389 = vadd.f32 %v91, %v388
  %v390 = vpop.f32.mrb[0].mxu0
  %v391 = vpop.f32.mrb[0].mxu0
  %v392 = vadd.f32 %v91, %v391
  %v393 = vpop.f32.mrb[0].mxu0
  %394 = vmatprep.mubr.bf16.mxu0 0
  %395 = vmatmul.mubr.bf16.gmra.mrb[0].mxu0 %v258
  %v396 = vpop.f32.mrb[0].mxu0
  %v397 = vadd.f32 %v91, %v396
  %v398 = vpop.f32.mrb[0].mxu0
  %v399 = vpop.f32.mrb[0].mxu0
  %v400 = vadd.f32 %v91, %v399
  %v401 = vpop.f32.mrb[0].mxu0
  %402 = vmatprep.mubr.bf16.mxu0 0
  %403 = vmatmul.mubr.bf16.gmra.mrb[0].mxu0 %v261
  %v404 = vpop.f32.mrb[0].mxu0
  %v405 = vadd.f32 %v91, %v404
  %v406 = vpop.f32.mrb[0].mxu0
  %v407 = vpop.f32.mrb[0].mxu0
  %v408 = vadd.f32 %v91, %v407
  %v409 = vpop.f32.mrb[0].mxu0
  %410 = vmatprep.mubr.bf16.mxu0 0
  %411 = vmatmul.mubr.bf16.gmra.mrb[0].mxu0 %v264
  %v412 = vpop.f32.mrb[0].mxu0
  %v413 = vadd.f32 %v91, %v412
  %v414 = vpop.f32.mrb[0].mxu0
  %v415 = vpop.f32.mrb[0].mxu0
  %v416 = vadd.f32 %v91, %v415
  %v417 = vpop.f32.mrb[0].mxu0
  %418 = vmatprep.mubr.bf16.mxu0 0
  %419 = vmatmul.mubr.bf16.gmra.mrb[0].mxu0 %v267
  %v420 = vpop.f32.mrb[0].mxu0
  %v421 = vadd.f32 %v91, %v420
  %v422 = vpop.f32.mrb[0].mxu0
  %v423 = vpop.f32.mrb[0].mxu0
  %v424 = vadd.f32 %v91, %v423
  %v425 = vpop.f32.mrb[0].mxu0
  %426 = vmatprep.mubr.bf16.mxu0 0
  %427 = vmatmul.mubr.bf16.gmra.mrb[0].mxu0 %v270
  %v428 = vpop.f32.mrb[0].mxu0
  %v429 = vadd.f32 %v91, %v428
  %v430 = vpop.f32.mrb[0].mxu0
  %v431 = vpop.f32.mrb[0].mxu0
  %v432 = vadd.f32 %v91, %v431
  %v433 = vpop.f32.mrb[0].mxu0
  %434 = vmatprep.mubr.bf16.mxu0 0
  %435 = vmatmul.mubr.bf16.gmra.mrb[0].mxu0 %v273
  %v436 = vpop.f32.mrb[0].mxu0
  %v437 = vadd.f32 %v91, %v436
  %v438 = vpop.f32.mrb[0].mxu0
  %v439 = vpop.f32.mrb[0].mxu0
  %v440 = vadd.f32 %v91, %v439
  %v441 = vpop.f32.mrb[0].mxu0
  %442 = vmatprep.mubr.bf16.mxu0 0
  %443 = vmatmul.mubr.bf16.gmra.mrb[0].mxu0 %v276
  %v444 = vpop.f32.mrb[0].mxu0
  %v445 = vadd.f32 %v91, %v444
  %v446 = vpop.f32.mrb[0].mxu0
  %v447 = vpop.f32.mrb[0].mxu0
  %v448 = vadd.f32 %v91, %v447
  %v449 = vpop.f32.mrb[0].mxu0
  %450 = vmatprep.mubr.bf16.mxu0 0
  %451 = vmatmul.mubr.bf16.gmra.mrb[0].mxu0 %v279
  %v452 = vpop.f32.mrb[0].mxu0
  %v453 = vadd.f32 %v91, %v452
  %v454 = vpop.f32.mrb[0].mxu0
  %v455 = vpop.f32.mrb[0].mxu0
  %v456 = vadd.f32 %v91, %v455
  %v457 = vpop.f32.mrb[0].mxu0
  %458 = vmatprep.mubr.bf16.mxu0 0
  %459 = vmatmul.mubr.bf16.gmra.mrb[0].mxu0 %v282
  %v460 = vpop.f32.mrb[0].mxu0
  %v461 = vadd.f32 %v91, %v460
  %v462 = vpop.f32.mrb[0].mxu0
  %v463 = vpop.f32.mrb[0].mxu0
  %v464 = vadd.f32 %v91, %v463
  %v465 = vpop.f32.mrb[0].mxu0
  %466 = vmatprep.mubr.bf16.mxu0 0
  %467 = vmatmul.mubr.bf16.gmra.mrb[0].mxu0 %v285
  %v468 = vpop.f32.mrb[0].mxu0
  %v469 = vadd.f32 %v91, %v468
  %v470 = vpop.f32.mrb[0].mxu0
  %v471 = vpop.f32.mrb[0].mxu0
  %v472 = vadd.f32 %v91, %v471
  %v473 = vpop.f32.mrb[0].mxu0
  %474 = vmatprep.mubr.bf16.mxu0 0
  %475 = vmatmul.mubr.bf16.gmra.mrb[0].mxu0 %v288
  %v476 = vpop.f32.mrb[0].mxu0
  %v477 = vadd.f32 %v91, %v476
  %v478 = vpop.f32.mrb[0].mxu0
  %v479 = vpop.f32.mrb[0].mxu0
  %v480 = vadd.f32 %v91, %v479
  %v481 = vpop.f32.mrb[0].mxu0
  %482 = vmatprep.mubr.bf16.mxu0 0
  %483 = vmatmul.mubr.bf16.gmra.mrb[0].mxu0 %v291
  %v484 = vpop.f32.mrb[0].mxu0
  %v485 = vadd.f32 %v91, %v484
  %v486 = vpop.f32.mrb[0].mxu0
  %v487 = vpop.f32.mrb[0].mxu0
  %v488 = vadd.f32 %v91, %v487
  %v489 = vpop.f32.mrb[0].mxu0
  %490 = vmatprep.mubr.bf16.mxu0 0
  %491 = vmatmul.mubr.bf16.gmra.mrb[0].mxu0 %v294
  %v492 = vpop.f32.mrb[0].mxu0
  %v493 = vadd.f32 %v91, %v492
  %v494 = vpop.f32.mrb[0].mxu0
  %v495 = vpop.f32.mrb[0].mxu0
  %v496 = vadd.f32 %v91, %v495
  %v497 = vpop.f32.mrb[0].mxu0
  %498 = vmatprep.mubr.bf16.mxu0 0
  %499 = vmatmul.mubr.bf16.gmra.mrb[0].mxu0 %v297
  %v500 = vpop.f32.mrb[0].mxu0
  %v501 = vadd.f32 %v91, %v500
  %v502 = vpop.f32.mrb[0].mxu0
  %v503 = vpop.f32.mrb[0].mxu0
  %v504 = vadd.f32 %v91, %v503
  %v505 = vpop.f32.mrb[0].mxu0
  %506 = vmatprep.mubr.bf16.mxu0 0
  %507 = vmatmul.mubr.bf16.gmra.mrb[0].mxu0 %v300
  %v508 = vpop.f32.mrb[0].mxu0
  %v509 = vadd.f32 %v91, %v508
  %v510 = vpop.f32.mrb[0].mxu0
  %v511 = vpop.f32.mrb[0].mxu0
  %v512 = vadd.f32 %v91, %v511
  %v513 = vpop.f32.mrb[0].mxu0
  %514 = vmatprep.mubr.bf16.mxu0 0
  %515 = vmatmul.mubr.bf16.gmra.mrb[0].mxu0 %v303
  %v516 = vpop.f32.mrb[0].mxu0
  %v517 = vadd.f32 %v91, %v516
  %v518 = vpop.f32.mrb[0].mxu0
  %v519 = vpop.f32.mrb[0].mxu0
  %v520 = vadd.f32 %v91, %v519
  %v521 = vpop.f32.mrb[0].mxu0
  %522 = vmatprep.mubr.bf16.mxu0 0
  %523 = vmatmul.mubr.bf16.gmra.mrb[0].mxu0 %v306
  %v524 = vpop.f32.mrb[0].mxu0
  %v525 = vadd.f32 %v91, %v524
  %v526 = vpop.f32.mrb[0].mxu0
  %v527 = vpop.f32.mrb[0].mxu0
  %v528 = vadd.f32 %v91, %v527
  %v529 = vpop.f32.mrb[0].mxu0
  %530 = vmatprep.mubr.bf16.mxu0 0
  %531 = vmatmul.mubr.bf16.gmra.mrb[0].mxu0 %v309
  %v532 = vpop.f32.mrb[0].mxu0
  %v533 = vadd.f32 %v91, %v532
  %v534 = vpop.f32.mrb[0].mxu0
  %v535 = vpop.f32.mrb[0].mxu0
  %v536 = vadd.f32 %v91, %v535
  %v537 = vpop.f32.mrb[0].mxu0
  %538 = vmatprep.mubr.bf16.mxu0 0
  %539 = vmatmul.mubr.bf16.gmra.mrb[0].mxu0 %v312
  %v540 = vpop.f32.mrb[0].mxu0
  %v541 = vadd.f32 %v91, %v540
  %v542 = vpop.f32.mrb[0].mxu0
  %v543 = vpop.f32.mrb[0].mxu0
  %v544 = vadd.f32 %v91, %v543
  %v545 = vpop.f32.mrb[0].mxu0
  %546 = vmatprep.mubr.bf16.mxu0 0
  %547 = vmatmul.mubr.bf16.gmra.mrb[0].mxu0 %v315
  %v548 = vpop.f32.mrb[0].mxu0
  %v549 = vadd.f32 %v91, %v548
  %v550 = vpop.f32.mrb[0].mxu0
  %v551 = vpop.f32.mrb[0].mxu0
  %v552 = vadd.f32 %v91, %v551
  %v553 = vpop.f32.mrb[0].mxu0
  %554 = vmatprep.mubr.bf16.mxu0 0
  %555 = vmatmul.mubr.bf16.gmra.mrb[0].mxu0 %v318
  %v556 = vpop.f32.mrb[0].mxu0
  %v557 = vadd.f32 %v91, %v556
  %v558 = vpop.f32.mrb[0].mxu0
  %v559 = vpop.f32.mrb[0].mxu0
  %v560 = vadd.f32 %v91, %v559
  %v561 = vpop.f32.mrb[0].mxu0
  %562 = vmatprep.mubr.bf16.mxu0 0
  %563 = vmatmul.mubr.bf16.gmra.mrb[0].mxu0 %v321
  %v564 = vpop.f32.mrb[0].mxu0
  %v565 = vadd.f32 %v91, %v564
  %v566 = vpop.f32.mrb[0].mxu0
  %v567 = vpop.f32.mrb[0].mxu0
  %v568 = vadd.f32 %v91, %v567
  %v569 = vpop.f32.mrb[0].mxu0
  %570 = vmatprep.mubr.bf16.mxu0 0
  %571 = vmatmul.mubr.bf16.gmra.mrb[0].mxu0 %v324
  %v572 = vpop.f32.mrb[0].mxu0
  %v573 = vadd.f32 %v91, %v572
  %v574 = vpop.f32.mrb[0].mxu0
  %v575 = vpop.f32.mrb[0].mxu0
  %v576 = vadd.f32 %v91, %v575
  %v577 = vpop.f32.mrb[0].mxu0
  %578 = vmatprep.mubr.bf16.mxu0 0
  %579 = vmatmul.mubr.bf16.gmra.mrb[0].mxu0 %v327
  %v580 = vpop.f32.mrb[0].mxu0
  %v581 = vadd.f32 %v91, %v580
  %v582 = vpop.f32.mrb[0].mxu0
  %v583 = vpop.f32.mrb[0].mxu0
  %v584 = vadd.f32 %v91, %v583
  %v585 = vpop.f32.mrb[0].mxu0
  %586 = vmatprep.mubr.bf16.mxu0 0
  %587 = vmatmul.mubr.bf16.gmra.mrb[0].mxu0 %v330
  %v588 = vpop.f32.mrb[0].mxu0
  %v589 = vadd.f32 %v91, %v588
  %v590 = vpop.f32.mrb[0].mxu0
  %v591 = vpop.f32.mrb[0].mxu0
  %v592 = vadd.f32 %v91, %v591
  %v593 = vpop.f32.mrb[0].mxu0
  %594 = vmatprep.mubr.bf16.mxu0 0
  %595 = vmatmul.mubr.bf16.gmra.mrb[0].mxu0 %v333
  %v596 = vpop.f32.mrb[0].mxu0
  %v597 = vadd.f32 %v91, %v596
  %v598 = vpop.f32.mrb[0].mxu0
  %v599 = vpop.f32.mrb[0].mxu0
  %v600 = vadd.f32 %v91, %v599
  %v601 = vpop.f32.mrb[0].mxu0
  %602 = vmatprep.mubr.bf16.mxu0 0
  %603 = vmatmul.mubr.bf16.gmra.mrb[0].mxu0 %v336
  %v604 = vpop.f32.mrb[0].mxu0
  %v605 = vadd.f32 %v91, %v604
  %v606 = vpop.f32.mrb[0].mxu0
  %v607 = vpop.f32.mrb[0].mxu0
  %v608 = vadd.f32 %v91, %v607
  %v609 = vpop.f32.mrb[0].mxu0
  %610 = vmatprep.mubr.bf16.mxu0 0
  %611 = vmatmul.mubr.bf16.gmra.mrb[0].mxu0 %v339
  %v612 = vpop.f32.mrb[0].mxu0
  %v613 = vadd.f32 %v91, %v612
  %v614 = vpop.f32.mrb[0].mxu0
  %v615 = vpop.f32.mrb[0].mxu0
  %v616 = vadd.f32 %v91, %v615
  %v617 = vpop.f32.mrb[0].mxu0
  %618 = vmatprep.mubr.bf16.mxu0 0
  %619 = vmatmul.mubr.bf16.gmra.mrb[0].mxu0 %v342
  %v620 = vpop.f32.mrb[0].mxu0
  %v621 = vadd.f32 %v91, %v620
  %v622 = vpop.f32.mrb[0].mxu0
  %v623 = vpop.f32.mrb[0].mxu0
  %v624 = vadd.f32 %v91, %v623
  %v625 = vpop.f32.mrb[0].mxu0
  %626 = vmatprep.mubr.bf16.mxu0 0
  %627 = vmatmul.mubr.bf16.gmra.mrb[0].mxu0 %v345
  %v628 = vpop.f32.mrb[0].mxu0
  %v629 = vadd.f32 %v91, %v628
  %v630 = vpop.f32.mrb[0].mxu0
  %v631 = vpop.f32.mrb[0].mxu0
  %v632 = vadd.f32 %v91, %v631
  %v633 = vpop.f32.mrb[0].mxu0
  %634 = vmatprep.mubr.bf16.mxu0 0
  %635 = vmatmul.mubr.bf16.gmra.mrb[0].mxu0 %v348
  %v636 = vpop.f32.mrb[0].mxu0
  %v637 = vadd.f32 %v91, %v636
  %v638 = vpop.f32.mrb[0].mxu0
  %v639 = vpop.f32.mrb[0].mxu0
  %v640 = vadd.f32 %v91, %v639
  %v641 = vpop.f32.mrb[0].mxu0
  %642 = vdwg.mxu0
  %v643 = vld [vmem:[%s2] sm:$0x3]
  %v644 = vld [vmem:[%s4] sm:$0x1]
  %v646 = vlaneseq
  %v647 = vshrl.u32 %v646, 7
  %v648 = vsub.s32 0, %v647
  %v649 = vrot.slane %v644, %v648
  %v652 = vsel %vm350, %v643, 0
  %654 = vmatprep.subr.bf16.mxu0 0
  %655 = vmatpush1.bf16.msra.mxu0 %v652
  %656 = vmatprep.subr.bf16.mxu0 0
  %657 = vmatpush1.bf16.msra.mxu0 0
  %658 = vmatprep.subr.bf16.mxu0 0
  %659 = vmatpush1.bf16.msra.mxu0 0
  %660 = vmatprep.subr.bf16.mxu0 0
  %661 = vmatpush1.bf16.msra.mxu0 0
  %662 = vmatprep.subr.bf16.mxu0 0
  %663 = vmatpush1.bf16.msra.mxu0 0
  %664 = vmatprep.subr.bf16.mxu0 0
  %665 = vmatpush1.bf16.msra.mxu0 0
  %666 = vmatprep.subr.bf16.mxu0 0
  %667 = vmatpush1.bf16.msra.mxu0 0
  %668 = vmatprep.subr.bf16.mxu0 0
  %669 = vmatpush1.bf16.msra.mxu0 0
  %670 = vmatprep.subr.bf16.mxu0 0
  %671 = vmatpush1.bf16.msra.mxu0 0
  %672 = vmatprep.subr.bf16.mxu0 0
  %673 = vmatpush1.bf16.msra.mxu0 0
  %674 = vmatprep.subr.bf16.mxu0 0
  %675 = vmatpush1.bf16.msra.mxu0 0
  %676 = vmatprep.subr.bf16.mxu0 0
  %677 = vmatpush1.bf16.msra.mxu0 0
  %678 = vmatprep.subr.bf16.mxu0 0
  %679 = vmatpush1.bf16.msra.mxu0 0
  %680 = vmatprep.subr.bf16.mxu0 0
  %681 = vmatpush1.bf16.msra.mxu0 0
  %682 = vmatprep.subr.bf16.mxu0 0
  %683 = vmatpush1.bf16.msra.mxu0 0
  %684 = vmatprep.subr.bf16.mxu0 0
  %685 = vmatpush1.bf16.msra.mxu0 0
  %686 = vmatprep.mubr.bf16.mxu0 0
  %687 = vmatmul.mubr.bf16.gmra.mrb[0].mxu0 %v255
  %v688 = vpop.f32.mrb[0].mxu0
  %v689 = vadd.f32 %v649, %v688
  %v690 = vpop.f32.mrb[0].mxu0
  %v691 = vpop.f32.mrb[0].mxu0
  %v692 = vadd.f32 %v649, %v691
  %v693 = vpop.f32.mrb[0].mxu0
  %694 = vmatprep.mubr.bf16.mxu0 0
  %695 = vmatmul.mubr.bf16.gmra.mrb[0].mxu0 %v258
  %v696 = vpop.f32.mrb[0].mxu0
  %v697 = vadd.f32 %v649, %v696
  %v698 = vpop.f32.mrb[0].mxu0
  %v699 = vpop.f32.mrb[0].mxu0
  %v700 = vadd.f32 %v649, %v699
  %v701 = vpop.f32.mrb[0].mxu0
  %702 = vmatprep.mubr.bf16.mxu0 0
  %703 = vmatmul.mubr.bf16.gmra.mrb[0].mxu0 %v261
  %v704 = vpop.f32.mrb[0].mxu0
  %v705 = vadd.f32 %v649, %v704
  %v706 = vpop.f32.mrb[0].mxu0
  %v707 = vpop.f32.mrb[0].mxu0
  %v708 = vadd.f32 %v649, %v707
  %v709 = vpop.f32.mrb[0].mxu0
  %710 = vmatprep.mubr.bf16.mxu0 0
  %711 = vmatmul.mubr.bf16.gmra.mrb[0].mxu0 %v264
  %v712 = vpop.f32.mrb[0].mxu0
  %v713 = vadd.f32 %v649, %v712
  %v714 = vpop.f32.mrb[0].mxu0
  %v715 = vpop.f32.mrb[0].mxu0
  %v716 = vadd.f32 %v649, %v715
  %v717 = vpop.f32.mrb[0].mxu0
  %718 = vmatprep.mubr.bf16.mxu0 0
  %719 = vmatmul.mubr.bf16.gmra.mrb[0].mxu0 %v267
  %v720 = vpop.f32.mrb[0].mxu0
  %v721 = vadd.f32 %v649, %v720
  %v722 = vpop.f32.mrb[0].mxu0
  %v723 = vpop.f32.mrb[0].mxu0
  %v724 = vadd.f32 %v649, %v723
  %v725 = vpop.f32.mrb[0].mxu0
  %726 = vmatprep.mubr.bf16.mxu0 0
  %727 = vmatmul.mubr.bf16.gmra.mrb[0].mxu0 %v270
  %v728 = vpop.f32.mrb[0].mxu0
  %v729 = vadd.f32 %v649, %v728
  %v730 = vpop.f32.mrb[0].mxu0
  %v731 = vpop.f32.mrb[0].mxu0
  %v732 = vadd.f32 %v649, %v731
  %v733 = vpop.f32.mrb[0].mxu0
  %734 = vmatprep.mubr.bf16.mxu0 0
  %735 = vmatmul.mubr.bf16.gmra.mrb[0].mxu0 %v273
  %v736 = vpop.f32.mrb[0].mxu0
  %v737 = vadd.f32 %v649, %v736
  %v738 = vpop.f32.mrb[0].mxu0
  %v739 = vpop.f32.mrb[0].mxu0
  %v740 = vadd.f32 %v649, %v739
  %v741 = vpop.f32.mrb[0].mxu0
  %742 = vmatprep.mubr.bf16.mxu0 0
  %743 = vmatmul.mubr.bf16.gmra.mrb[0].mxu0 %v276
  %v744 = vpop.f32.mrb[0].mxu0
  %v745 = vadd.f32 %v649, %v744
  %v746 = vpop.f32.mrb[0].mxu0
  %v747 = vpop.f32.mrb[0].mxu0
  %v748 = vadd.f32 %v649, %v747
  %v749 = vpop.f32.mrb[0].mxu0
  %750 = vmatprep.mubr.bf16.mxu0 0
  %751 = vmatmul.mubr.bf16.gmra.mrb[0].mxu0 %v279
  %v752 = vpop.f32.mrb[0].mxu0
  %v753 = vadd.f32 %v649, %v752
  %v754 = vpop.f32.mrb[0].mxu0
  %v755 = vpop.f32.mrb[0].mxu0
  %v756 = vadd.f32 %v649, %v755
  %v757 = vpop.f32.mrb[0].mxu0
  %758 = vmatprep.mubr.bf16.mxu0 0
  %759 = vmatmul.mubr.bf16.gmra.mrb[0].mxu0 %v282
  %v760 = vpop.f32.mrb[0].mxu0
  %v761 = vadd.f32 %v649, %v760
  %v762 = vpop.f32.mrb[0].mxu0
  %v763 = vpop.f32.mrb[0].mxu0
  %v764 = vadd.f32 %v649, %v763
  %v765 = vpop.f32.mrb[0].mxu0
  %766 = vmatprep.mubr.bf16.mxu0 0
  %767 = vmatmul.mubr.bf16.gmra.mrb[0].mxu0 %v285
  %v768 = vpop.f32.mrb[0].mxu0
  %v769 = vadd.f32 %v649, %v768
  %v770 = vpop.f32.mrb[0].mxu0
  %v771 = vpop.f32.mrb[0].mxu0
  %v772 = vadd.f32 %v649, %v771
  %v773 = vpop.f32.mrb[0].mxu0
  %774 = vmatprep.mubr.bf16.mxu0 0
  %775 = vmatmul.mubr.bf16.gmra.mrb[0].mxu0 %v288
  %v776 = vpop.f32.mrb[0].mxu0
  %v777 = vadd.f32 %v649, %v776
  %v778 = vpop.f32.mrb[0].mxu0
  %v779 = vpop.f32.mrb[0].mxu0
  %v780 = vadd.f32 %v649, %v779
  %v781 = vpop.f32.mrb[0].mxu0
  %782 = vmatprep.mubr.bf16.mxu0 0
  %783 = vmatmul.mubr.bf16.gmra.mrb[0].mxu0 %v291
  %v784 = vpop.f32.mrb[0].mxu0
  %v785 = vadd.f32 %v649, %v784
  %v786 = vpop.f32.mrb[0].mxu0
  %v787 = vpop.f32.mrb[0].mxu0
  %v788 = vadd.f32 %v649, %v787
  %v789 = vpop.f32.mrb[0].mxu0
  %790 = vmatprep.mubr.bf16.mxu0 0
  %791 = vmatmul.mubr.bf16.gmra.mrb[0].mxu0 %v294
  %v792 = vpop.f32.mrb[0].mxu0
  %v793 = vadd.f32 %v649, %v792
  %v794 = vpop.f32.mrb[0].mxu0
  %v795 = vpop.f32.mrb[0].mxu0
  %v796 = vadd.f32 %v649, %v795
  %v797 = vpop.f32.mrb[0].mxu0
  %798 = vmatprep.mubr.bf16.mxu0 0
  %799 = vmatmul.mubr.bf16.gmra.mrb[0].mxu0 %v297
  %v800 = vpop.f32.mrb[0].mxu0
  %v801 = vadd.f32 %v649, %v800
  %v802 = vpop.f32.mrb[0].mxu0
  %v803 = vpop.f32.mrb[0].mxu0
  %v804 = vadd.f32 %v649, %v803
  %v805 = vpop.f32.mrb[0].mxu0
  %806 = vmatprep.mubr.bf16.mxu0 0
  %807 = vmatmul.mubr.bf16.gmra.mrb[0].mxu0 %v300
  %v808 = vpop.f32.mrb[0].mxu0
  %v809 = vadd.f32 %v649, %v808
  %v810 = vpop.f32.mrb[0].mxu0
  %v811 = vpop.f32.mrb[0].mxu0
  %v812 = vadd.f32 %v649, %v811
  %v813 = vpop.f32.mrb[0].mxu0
  %814 = vmatprep.mubr.bf16.mxu0 0
  %815 = vmatmul.mubr.bf16.gmra.mrb[0].mxu0 %v303
  %v816 = vpop.f32.mrb[0].mxu0
  %v817 = vadd.f32 %v649, %v816
  %v818 = vpop.f32.mrb[0].mxu0
  %v819 = vpop.f32.mrb[0].mxu0
  %v820 = vadd.f32 %v649, %v819
  %v821 = vpop.f32.mrb[0].mxu0
  %822 = vmatprep.mubr.bf16.mxu0 0
  %823 = vmatmul.mubr.bf16.gmra.mrb[0].mxu0 %v306
  %v824 = vpop.f32.mrb[0].mxu0
  %v825 = vadd.f32 %v649, %v824
  %v826 = vpop.f32.mrb[0].mxu0
  %v827 = vpop.f32.mrb[0].mxu0
  %v828 = vadd.f32 %v649, %v827
  %v829 = vpop.f32.mrb[0].mxu0
  %830 = vmatprep.mubr.bf16.mxu0 0
  %831 = vmatmul.mubr.bf16.gmra.mrb[0].mxu0 %v309
  %v832 = vpop.f32.mrb[0].mxu0
  %v833 = vadd.f32 %v649, %v832
  %v834 = vpop.f32.mrb[0].mxu0
  %v835 = vpop.f32.mrb[0].mxu0
  %v836 = vadd.f32 %v649, %v835
  %v837 = vpop.f32.mrb[0].mxu0
  %838 = vmatprep.mubr.bf16.mxu0 0
  %839 = vmatmul.mubr.bf16.gmra.mrb[0].mxu0 %v312
  %v840 = vpop.f32.mrb[0].mxu0
  %v841 = vadd.f32 %v649, %v840
  %v842 = vpop.f32.mrb[0].mxu0
  %v843 = vpop.f32.mrb[0].mxu0
  %v844 = vadd.f32 %v649, %v843
  %v845 = vpop.f32.mrb[0].mxu0
  %846 = vmatprep.mubr.bf16.mxu0 0
  %847 = vmatmul.mubr.bf16.gmra.mrb[0].mxu0 %v315
  %v848 = vpop.f32.mrb[0].mxu0
  %v849 = vadd.f32 %v649, %v848
  %v850 = vpop.f32.mrb[0].mxu0
  %v851 = vpop.f32.mrb[0].mxu0
  %v852 = vadd.f32 %v649, %v851
  %v853 = vpop.f32.mrb[0].mxu0
  %854 = vmatprep.mubr.bf16.mxu0 0
  %855 = vmatmul.mubr.bf16.gmra.mrb[0].mxu0 %v318
  %v856 = vpop.f32.mrb[0].mxu0
  %v857 = vadd.f32 %v649, %v856
  %v858 = vpop.f32.mrb[0].mxu0
  %v859 = vpop.f32.mrb[0].mxu0
  %v860 = vadd.f32 %v649, %v859
  %v861 = vpop.f32.mrb[0].mxu0
  %862 = vmatprep.mubr.bf16.mxu0 0
  %863 = vmatmul.mubr.bf16.gmra.mrb[0].mxu0 %v321
  %v864 = vpop.f32.mrb[0].mxu0
  %v865 = vadd.f32 %v649, %v864
  %v866 = vpop.f32.mrb[0].mxu0
  %v867 = vpop.f32.mrb[0].mxu0
  %v868 = vadd.f32 %v649, %v867
  %v869 = vpop.f32.mrb[0].mxu0
  %870 = vmatprep.mubr.bf16.mxu0 0
  %871 = vmatmul.mubr.bf16.gmra.mrb[0].mxu0 %v324
  %v872 = vpop.f32.mrb[0].mxu0
  %v873 = vadd.f32 %v649, %v872
  %v874 = vpop.f32.mrb[0].mxu0
  %v875 = vpop.f32.mrb[0].mxu0
  %v876 = vadd.f32 %v649, %v875
  %v877 = vpop.f32.mrb[0].mxu0
  %878 = vmatprep.mubr.bf16.mxu0 0
  %879 = vmatmul.mubr.bf16.gmra.mrb[0].mxu0 %v327
  %v880 = vpop.f32.mrb[0].mxu0
  %v881 = vadd.f32 %v649, %v880
  %v882 = vpop.f32.mrb[0].mxu0
  %v883 = vpop.f32.mrb[0].mxu0
  %v884 = vadd.f32 %v649, %v883
  %v885 = vpop.f32.mrb[0].mxu0
  %886 = vmatprep.mubr.bf16.mxu0 0
  %887 = vmatmul.mubr.bf16.gmra.mrb[0].mxu0 %v330
  %v888 = vpop.f32.mrb[0].mxu0
  %v889 = vadd.f32 %v649, %v888
  %v890 = vpop.f32.mrb[0].mxu0
  %v891 = vpop.f32.mrb[0].mxu0
  %v892 = vadd.f32 %v649, %v891
  %v893 = vpop.f32.mrb[0].mxu0
  %894 = vmatprep.mubr.bf16.mxu0 0
  %895 = vmatmul.mubr.bf16.gmra.mrb[0].mxu0 %v333
  %v896 = vpop.f32.mrb[0].mxu0
  %v897 = vadd.f32 %v649, %v896
  %v898 = vpop.f32.mrb[0].mxu0
  %v899 = vpop.f32.mrb[0].mxu0
  %v900 = vadd.f32 %v649, %v899
  %v901 = vpop.f32.mrb[0].mxu0
  %902 = vmatprep.mubr.bf16.mxu0 0
  %903 = vmatmul.mubr.bf16.gmra.mrb[0].mxu0 %v336
  %v904 = vpop.f32.mrb[0].mxu0
  %v905 = vadd.f32 %v649, %v904
  %v906 = vpop.f32.mrb[0].mxu0
  %v907 = vpop.f32.mrb[0].mxu0
  %v908 = vadd.f32 %v649, %v907
  %v909 = vpop.f32.mrb[0].mxu0
  %910 = vmatprep.mubr.bf16.mxu0 0
  %911 = vmatmul.mubr.bf16.gmra.mrb[0].mxu0 %v339
  %v912 = vpop.f32.mrb[0].mxu0
  %v913 = vadd.f32 %v649, %v912
  %v914 = vpop.f32.mrb[0].mxu0
  %v915 = vpop.f32.mrb[0].mxu0
  %v916 = vadd.f32 %v649, %v915
  %v917 = vpop.f32.mrb[0].mxu0
  %918 = vmatprep.mubr.bf16.mxu0 0
  %919 = vmatmul.mubr.bf16.gmra.mrb[0].mxu0 %v342
  %v920 = vpop.f32.mrb[0].mxu0
  %v921 = vadd.f32 %v649, %v920
  %v922 = vpop.f32.mrb[0].mxu0
  %v923 = vpop.f32.mrb[0].mxu0
  %v924 = vadd.f32 %v649, %v923
  %v925 = vpop.f32.mrb[0].mxu0
  %926 = vmatprep.mubr.bf16.mxu0 0
  %927 = vmatmul.mubr.bf16.gmra.mrb[0].mxu0 %v345
  %v928 = vpop.f32.mrb[0].mxu0
  %v929 = vadd.f32 %v649, %v928
  %v930 = vpop.f32.mrb[0].mxu0
  %v931 = vpop.f32.mrb[0].mxu0
  %v932 = vadd.f32 %v649, %v931
  %v933 = vpop.f32.mrb[0].mxu0
  %934 = vmatprep.mubr.bf16.mxu0 0
  %935 = vmatmul.mubr.bf16.gmra.mrb[0].mxu0 %v348
  %v936 = vpop.f32.mrb[0].mxu0
  %v937 = vadd.f32 %v649, %v936
  %v938 = vpop.f32.mrb[0].mxu0
  %v939 = vpop.f32.mrb[0].mxu0
  %v940 = vadd.f32 %v649, %v939
  %v941 = vpop.f32.mrb[0].mxu0
  %942 = vdwg.mxu0
  %v943 = vmax.f32 %v389, %v689
  %v944 = vmax.f32 %v392, %v692
  %v945 = vmax.f32 %v397, %v697
  %v946 = vmax.f32 %v400, %v700
  %v947 = vmax.f32 %v405, %v705
  %v948 = vmax.f32 %v408, %v708
  %v949 = vmax.f32 %v413, %v713
  %v950 = vmax.f32 %v416, %v716
  %v951 = vmax.f32 %v421, %v721
  %v952 = vmax.f32 %v424, %v724
  %v953 = vmax.f32 %v429, %v729
  %v954 = vmax.f32 %v432, %v732
  %v955 = vmax.f32 %v437, %v737
  %v956 = vmax.f32 %v440, %v740
  %v957 = vmax.f32 %v445, %v745
  %v958 = vmax.f32 %v448, %v748
  %v959 = vmax.f32 %v453, %v753
  %v960 = vmax.f32 %v456, %v756
  %v961 = vmax.f32 %v461, %v761
  %v962 = vmax.f32 %v464, %v764
  %v963 = vmax.f32 %v469, %v769
  %v964 = vmax.f32 %v472, %v772
  %v965 = vmax.f32 %v477, %v777
  %v966 = vmax.f32 %v480, %v780
  %v967 = vmax.f32 %v485, %v785
  %v968 = vmax.f32 %v488, %v788
  %v969 = vmax.f32 %v493, %v793
  %v970 = vmax.f32 %v496, %v796
  %v971 = vmax.f32 %v501, %v801
  %v972 = vmax.f32 %v504, %v804
  %v973 = vmax.f32 %v509, %v809
  %v974 = vmax.f32 %v512, %v812
  %v975 = vmax.f32 %v517, %v817
  %v976 = vmax.f32 %v520, %v820
  %v977 = vmax.f32 %v525, %v825
  %v978 = vmax.f32 %v528, %v828
  %v979 = vmax.f32 %v533, %v833
  %v980 = vmax.f32 %v536, %v836
  %v981 = vmax.f32 %v541, %v841
  %v982 = vmax.f32 %v544, %v844
  %v983 = vmax.f32 %v549, %v849
  %v984 = vmax.f32 %v552, %v852
  %v985 = vmax.f32 %v557, %v857
  %v986 = vmax.f32 %v560, %v860
  %v987 = vmax.f32 %v565, %v865
  %v988 = vmax.f32 %v568, %v868
  %v989 = vmax.f32 %v573, %v873
  %v990 = vmax.f32 %v576, %v876
  %v991 = vmax.f32 %v581, %v881
  %v992 = vmax.f32 %v584, %v884
  %v993 = vmax.f32 %v589, %v889
  %v994 = vmax.f32 %v592, %v892
  %v995 = vmax.f32 %v597, %v897
  %v996 = vmax.f32 %v600, %v900
  %v997 = vmax.f32 %v605, %v905
  %v998 = vmax.f32 %v608, %v908
  %v999 = vmax.f32 %v613, %v913
  %v1000 = vmax.f32 %v616, %v916
  %v1001 = vmax.f32 %v621, %v921
  %v1002 = vmax.f32 %v624, %v924
  %v1003 = vmax.f32 %v629, %v929
  %v1004 = vmax.f32 %v632, %v932
  %v1005 = vmax.f32 %v637, %v937
  %v1006 = vmax.f32 %v640, %v940
  %v1007 = vpack.c.bf16 %v944, %v943
  %v1008 = vpack.c.bf16 %v946, %v945
  %v1009 = vpack.c.bf16 %v948, %v947
  %v1010 = vpack.c.bf16 %v950, %v949
  %v1011 = vpack.c.bf16 %v952, %v951
  %v1012 = vpack.c.bf16 %v954, %v953
  %v1013 = vpack.c.bf16 %v956, %v955
  %v1014 = vpack.c.bf16 %v958, %v957
  %v1015 = vpack.c.bf16 %v960, %v959
  %v1016 = vpack.c.bf16 %v962, %v961
  %v1017 = vpack.c.bf16 %v964, %v963
  %v1018 = vpack.c.bf16 %v966, %v965
  %v1019 = vpack.c.bf16 %v968, %v967
  %v1020 = vpack.c.bf16 %v970, %v969
  %v1021 = vpack.c.bf16 %v972, %v971
  %v1022 = vpack.c.bf16 %v974, %v973
  %v1023 = vpack.c.bf16 %v976, %v975
  %v1024 = vpack.c.bf16 %v978, %v977
  %v1025 = vpack.c.bf16 %v980, %v979
  %v1026 = vpack.c.bf16 %v982, %v981
  %v1027 = vpack.c.bf16 %v984, %v983
  %v1028 = vpack.c.bf16 %v986, %v985
  %v1029 = vpack.c.bf16 %v988, %v987
  %v1030 = vpack.c.bf16 %v990, %v989
  %v1031 = vpack.c.bf16 %v992, %v991
  %v1032 = vpack.c.bf16 %v994, %v993
  %v1033 = vpack.c.bf16 %v996, %v995
  %v1034 = vpack.c.bf16 %v998, %v997
  %v1035 = vpack.c.bf16 %v1000, %v999
  %v1036 = vpack.c.bf16 %v1002, %v1001
  %v1037 = vpack.c.bf16 %v1004, %v1003
  %v1038 = vpack.c.bf16 %v1006, %v1005
  %v1071 = vunpack.c.l.b16 %v1007
  %v1072 = vunpack.c.h.b16 %v1007
  %v1073 = vunpack.c.l.b16 %v1008
  %v1074 = vunpack.c.h.b16 %v1008
  %v1075 = vunpack.c.l.b16 %v1009
  %v1076 = vunpack.c.h.b16 %v1009
  %v1077 = vunpack.c.l.b16 %v1010
  %v1078 = vunpack.c.h.b16 %v1010
  %v1079 = vunpack.c.l.b16 %v1011
  %v1080 = vunpack.c.h.b16 %v1011
  %v1081 = vunpack.c.l.b16 %v1012
  %v1082 = vunpack.c.h.b16 %v1012
  %v1083 = vunpack.c.l.b16 %v1013
  %v1084 = vunpack.c.h.b16 %v1013
  %v1085 = vunpack.c.l.b16 %v1014
  %v1086 = vunpack.c.h.b16 %v1014
  %v1087 = vunpack.c.l.b16 %v1015
  %v1088 = vunpack.c.h.b16 %v1015
  %v1089 = vunpack.c.l.b16 %v1016
  %v1090 = vunpack.c.h.b16 %v1016
  %v1091 = vunpack.c.l.b16 %v1017
  %v1092 = vunpack.c.h.b16 %v1017
  %v1093 = vunpack.c.l.b16 %v1018
  %v1094 = vunpack.c.h.b16 %v1018
  %v1095 = vunpack.c.l.b16 %v1019
  %v1096 = vunpack.c.h.b16 %v1019
  %v1097 = vunpack.c.l.b16 %v1020
  %v1098 = vunpack.c.h.b16 %v1020
  %v1099 = vunpack.c.l.b16 %v1021
  %v1100 = vunpack.c.h.b16 %v1021
  %v1101 = vunpack.c.l.b16 %v1022
  %v1102 = vunpack.c.h.b16 %v1022
  %v1103 = vunpack.c.l.b16 %v1023
  %v1104 = vunpack.c.h.b16 %v1023
  %v1105 = vunpack.c.l.b16 %v1024
  %v1106 = vunpack.c.h.b16 %v1024
  %v1107 = vunpack.c.l.b16 %v1025
  %v1108 = vunpack.c.h.b16 %v1025
  %v1109 = vunpack.c.l.b16 %v1026
  %v1110 = vunpack.c.h.b16 %v1026
  %v1111 = vunpack.c.l.b16 %v1027
  %v1112 = vunpack.c.h.b16 %v1027
  %v1113 = vunpack.c.l.b16 %v1028
  %v1114 = vunpack.c.h.b16 %v1028
  %v1115 = vunpack.c.l.b16 %v1029
  %v1116 = vunpack.c.h.b16 %v1029
  %v1117 = vunpack.c.l.b16 %v1030
  %v1118 = vunpack.c.h.b16 %v1030
  %v1119 = vunpack.c.l.b16 %v1031
  %v1120 = vunpack.c.h.b16 %v1031
  %v1121 = vunpack.c.l.b16 %v1032
  %v1122 = vunpack.c.h.b16 %v1032
  %v1123 = vunpack.c.l.b16 %v1033
  %v1124 = vunpack.c.h.b16 %v1033
  %v1125 = vunpack.c.l.b16 %v1034
  %v1126 = vunpack.c.h.b16 %v1034
  %v1127 = vunpack.c.l.b16 %v1035
  %v1128 = vunpack.c.h.b16 %v1035
  %v1129 = vunpack.c.l.b16 %v1036
  %v1130 = vunpack.c.h.b16 %v1036
  %v1131 = vunpack.c.l.b16 %v1037
  %v1132 = vunpack.c.h.b16 %v1037
  %v1133 = vunpack.c.l.b16 %v1038
  %v1134 = vunpack.c.h.b16 %v1038
  %v1135 = vpack.c.b16 %v1071, %v1071
  %v1136 = vpack.c.b16 %v1072, %v1072
  %v1137 = vpack.c.b16 %v1073, %v1073
  %v1138 = vpack.c.b16 %v1074, %v1074
  %v1139 = vpack.c.b16 %v1075, %v1075
  %v1140 = vpack.c.b16 %v1076, %v1076
  %v1141 = vpack.c.b16 %v1077, %v1077
  %v1142 = vpack.c.b16 %v1078, %v1078
  %v1143 = vpack.c.b16 %v1079, %v1079
  %v1144 = vpack.c.b16 %v1080, %v1080
  %v1145 = vpack.c.b16 %v1081, %v1081
  %v1146 = vpack.c.b16 %v1082, %v1082
  %v1147 = vpack.c.b16 %v1083, %v1083
  %v1148 = vpack.c.b16 %v1084, %v1084
  %v1149 = vpack.c.b16 %v1085, %v1085
  %v1150 = vpack.c.b16 %v1086, %v1086
  %v1151 = vpack.c.b16 %v1087, %v1087
  %v1152 = vpack.c.b16 %v1088, %v1088
  %v1153 = vpack.c.b16 %v1089, %v1089
  %v1154 = vpack.c.b16 %v1090, %v1090
  %v1155 = vpack.c.b16 %v1091, %v1091
  %v1156 = vpack.c.b16 %v1092, %v1092
  %v1157 = vpack.c.b16 %v1093, %v1093
  %v1158 = vpack.c.b16 %v1094, %v1094
  %v1159 = vpack.c.b16 %v1095, %v1095
  %v1160 = vpack.c.b16 %v1096, %v1096
  %v1161 = vpack.c.b16 %v1097, %v1097
  %v1162 = vpack.c.b16 %v1098, %v1098
  %v1163 = vpack.c.b16 %v1099, %v1099
  %v1164 = vpack.c.b16 %v1100, %v1100
  %v1165 = vpack.c.b16 %v1101, %v1101
  %v1166 = vpack.c.b16 %v1102, %v1102
  %v1167 = vpack.c.b16 %v1103, %v1103
  %v1168 = vpack.c.b16 %v1104, %v1104
  %v1169 = vpack.c.b16 %v1105, %v1105
  %v1170 = vpack.c.b16 %v1106, %v1106
  %v1171 = vpack.c.b16 %v1107, %v1107
  %v1172 = vpack.c.b16 %v1108, %v1108
  %v1173 = vpack.c.b16 %v1109, %v1109
  %v1174 = vpack.c.b16 %v1110, %v1110
  %v1175 = vpack.c.b16 %v1111, %v1111
  %v1176 = vpack.c.b16 %v1112, %v1112
  %v1177 = vpack.c.b16 %v1113, %v1113
  %v1178 = vpack.c.b16 %v1114, %v1114
  %v1179 = vpack.c.b16 %v1115, %v1115
  %v1180 = vpack.c.b16 %v1116, %v1116
  %v1181 = vpack.c.b16 %v1117, %v1117
  %v1182 = vpack.c.b16 %v1118, %v1118
  %v1183 = vpack.c.b16 %v1119, %v1119
  %v1184 = vpack.c.b16 %v1120, %v1120
  %v1185 = vpack.c.b16 %v1121, %v1121
  %v1186 = vpack.c.b16 %v1122, %v1122
  %v1187 = vpack.c.b16 %v1123, %v1123
  %v1188 = vpack.c.b16 %v1124, %v1124
  %v1189 = vpack.c.b16 %v1125, %v1125
  %v1190 = vpack.c.b16 %v1126, %v1126
  %v1191 = vpack.c.b16 %v1127, %v1127
  %v1192 = vpack.c.b16 %v1128, %v1128
  %v1193 = vpack.c.b16 %v1129, %v1129
  %v1194 = vpack.c.b16 %v1130, %v1130
  %v1195 = vpack.c.b16 %v1131, %v1131
  %v1196 = vpack.c.b16 %v1132, %v1132
  %v1197 = vpack.c.b16 %v1133, %v1133
  %v1198 = vpack.c.b16 %v1134, %v1134
  %vm1263 = vcmask 27648
  %1264 = vst.msk [vmem:[%s5] sm:$0xf] %vm1263, %v1135
  %1265 = vst.msk [vmem:[%s5 + $0x4] sm:$0xf] %vm1263, %v1136
  %1266 = vst.msk [vmem:[%s5 + $0x8] sm:$0xf] %vm1263, %v1137
  %1267 = vst.msk [vmem:[%s5 + $0xc] sm:$0xf] %vm1263, %v1138
  %1268 = vst.msk [vmem:[%s5 + $0x10] sm:$0xf] %vm1263, %v1139
  %1269 = vst.msk [vmem:[%s5 + $0x14] sm:$0xf] %vm1263, %v1140
  %1270 = vst.msk [vmem:[%s5 + $0x18] sm:$0xf] %vm1263, %v1141
  %1271 = vst.msk [vmem:[%s5 + $0x1c] sm:$0xf] %vm1263, %v1142
  %1272 = vst.msk [vmem:[%s5 + $0x20] sm:$0xf] %vm1263, %v1143
  %1273 = vst.msk [vmem:[%s5 + $0x24] sm:$0xf] %vm1263, %v1144
  %1274 = vst.msk [vmem:[%s5 + $0x28] sm:$0xf] %vm1263, %v1145
  %1275 = vst.msk [vmem:[%s5 + $0x2c] sm:$0xf] %vm1263, %v1146
  %1276 = vst.msk [vmem:[%s5 + $0x30] sm:$0xf] %vm1263, %v1147
  %1277 = vst.msk [vmem:[%s5 + $0x34] sm:$0xf] %vm1263, %v1148
  %1278 = vst.msk [vmem:[%s5 + $0x38] sm:$0xf] %vm1263, %v1149
  %1279 = vst.msk [vmem:[%s5 + $0x3c] sm:$0xf] %vm1263, %v1150
  %1280 = vst.msk [vmem:[%s5 + $0x40] sm:$0xf] %vm1263, %v1151
  %1281 = vst.msk [vmem:[%s5 + $0x44] sm:$0xf] %vm1263, %v1152
  %1282 = vst.msk [vmem:[%s5 + $0x48] sm:$0xf] %vm1263, %v1153
  %1283 = vst.msk [vmem:[%s5 + $0x4c] sm:$0xf] %vm1263, %v1154
  %1284 = vst.msk [vmem:[%s5 + $0x50] sm:$0xf] %vm1263, %v1155
  %1285 = vst.msk [vmem:[%s5 + $0x54] sm:$0xf] %vm1263, %v1156
  %1286 = vst.msk [vmem:[%s5 + $0x58] sm:$0xf] %vm1263, %v1157
  %1287 = vst.msk [vmem:[%s5 + $0x5c] sm:$0xf] %vm1263, %v1158
  %1288 = vst.msk [vmem:[%s5 + $0x60] sm:$0xf] %vm1263, %v1159
  %1289 = vst.msk [vmem:[%s5 + $0x64] sm:$0xf] %vm1263, %v1160
  %1290 = vst.msk [vmem:[%s5 + $0x68] sm:$0xf] %vm1263, %v1161
  %1291 = vst.msk [vmem:[%s5 + $0x6c] sm:$0xf] %vm1263, %v1162
  %1292 = vst.msk [vmem:[%s5 + $0x70] sm:$0xf] %vm1263, %v1163
  %1293 = vst.msk [vmem:[%s5 + $0x74] sm:$0xf] %vm1263, %v1164
  %1294 = vst.msk [vmem:[%s5 + $0x78] sm:$0xf] %vm1263, %v1165
  %1295 = vst.msk [vmem:[%s5 + $0x7c] sm:$0xf] %vm1263, %v1166
  %1296 = vst.msk [vmem:[%s5 + $0x80] sm:$0xf] %vm1263, %v1167
  %1297 = vst.msk [vmem:[%s5 + $0x84] sm:$0xf] %vm1263, %v1168
  %1298 = vst.msk [vmem:[%s5 + $0x88] sm:$0xf] %vm1263, %v1169
  %1299 = vst.msk [vmem:[%s5 + $0x8c] sm:$0xf] %vm1263, %v1170
  %1300 = vst.msk [vmem:[%s5 + $0x90] sm:$0xf] %vm1263, %v1171
  %1301 = vst.msk [vmem:[%s5 + $0x94] sm:$0xf] %vm1263, %v1172
  %1302 = vst.msk [vmem:[%s5 + $0x98] sm:$0xf] %vm1263, %v1173
  %1303 = vst.msk [vmem:[%s5 + $0x9c] sm:$0xf] %vm1263, %v1174
  %1304 = vst.msk [vmem:[%s5 + $0xa0] sm:$0xf] %vm1263, %v1175
  %1305 = vst.msk [vmem:[%s5 + $0xa4] sm:$0xf] %vm1263, %v1176
  %1306 = vst.msk [vmem:[%s5 + $0xa8] sm:$0xf] %vm1263, %v1177
  %1307 = vst.msk [vmem:[%s5 + $0xac] sm:$0xf] %vm1263, %v1178
  %1308 = vst.msk [vmem:[%s5 + $0xb0] sm:$0xf] %vm1263, %v1179
  %1309 = vst.msk [vmem:[%s5 + $0xb4] sm:$0xf] %vm1263, %v1180
  %1310 = vst.msk [vmem:[%s5 + $0xb8] sm:$0xf] %vm1263, %v1181
  %1311 = vst.msk [vmem:[%s5 + $0xbc] sm:$0xf] %vm1263, %v1182
  %1312 = vst.msk [vmem:[%s5 + $0xc0] sm:$0xf] %vm1263, %v1183
  %1313 = vst.msk [vmem:[%s5 + $0xc4] sm:$0xf] %vm1263, %v1184
  %1314 = vst.msk [vmem:[%s5 + $0xc8] sm:$0xf] %vm1263, %v1185
  %1315 = vst.msk [vmem:[%s5 + $0xcc] sm:$0xf] %vm1263, %v1186
  %1316 = vst.msk [vmem:[%s5 + $0xd0] sm:$0xf] %vm1263, %v1187
  %1317 = vst.msk [vmem:[%s5 + $0xd4] sm:$0xf] %vm1263, %v1188
  %1318 = vst.msk [vmem:[%s5 + $0xd8] sm:$0xf] %vm1263, %v1189
  %1319 = vst.msk [vmem:[%s5 + $0xdc] sm:$0xf] %vm1263, %v1190
  %1320 = vst.msk [vmem:[%s5 + $0xe0] sm:$0xf] %vm1263, %v1191
  %1321 = vst.msk [vmem:[%s5 + $0xe4] sm:$0xf] %vm1263, %v1192
  %1322 = vst.msk [vmem:[%s5 + $0xe8] sm:$0xf] %vm1263, %v1193
  %1323 = vst.msk [vmem:[%s5 + $0xec] sm:$0xf] %vm1263, %v1194
  %1324 = vst.msk [vmem:[%s5 + $0xf0] sm:$0xf] %vm1263, %v1195
  %1325 = vst.msk [vmem:[%s5 + $0xf4] sm:$0xf] %vm1263, %v1196
  %1326 = vst.msk [vmem:[%s5 + $0xf8] sm:$0xf] %vm1263, %v1197
  %1327 = vst.msk [vmem:[%s5 + $0xfc] sm:$0xf] %vm1263, %v1198
  // Predicated region
  $region22: #{group_forward.2} parent=0 // pred_check
    _
  $region23: #{group_forward.2} parent=0 // pred_check_branch
    %1329 = sbr.rel (0) target = $region25
  $region24: #{group_forward.2} parent=0 // pred_region
    _
  $region25: #{group_forward.2} parent=0 // pred_fallthru
    _
  // Predicated region
  $region26: #{group_forward.2} parent=0 // pred_check
    _
  $region27: #{group_forward.2} parent=0 // pred_check_branch
    %1331 = sbr.rel (0) target = $region29
  $region28: #{group_forward.2} parent=0 // pred_region
    _
  $region29: #{group_forward.2} parent=0 // pred_fallthru
    _

// kernel: group_forward.3
$region0: #{group_forward.3}
  #allocation0 [shape = 'u32[]', space=smem, size = 0x4, offset = 0x4, fixed_abs, tag = 'smem constant byte address 0x4 - core index']
  #allocation1 [shape = 'u32[144,128]{1,0:T(1,128)}', space=vmem, size = 0x12000, scoped, tag = 'internal scratch']
  %s0 = inlined_call_operand.vmem [shape: bf16[2,18,18,4], index: 0, kind: input, shape index: {}]
  %s1 = inlined_call_operand.vmem [shape: bf16[9,4,8], index: 1, kind: input, shape index: {}]
  %s2 = inlined_call_operand.vmem [shape: bf16[9,4,8], index: 2, kind: input, shape index: {}]
  %s3 = inlined_call_operand.vmem [shape: f32[1,8], index: 3, kind: input, shape index: {}]
  %s4 = inlined_call_operand.vmem [shape: f32[1,8], index: 4, kind: input, shape index: {}]
  %s5 = inlined_call_operand.vmem [shape: f32[2,16,16,8], index: 5, kind: output, shape index: {}]
  %s6 = sld [smem:[#allocation0]]
  $region53: #{group_forward.3} parent=0
    _
  %s8 = ssub.s32 1, %s6
  %s9 = scalar_select 0, %s8, %s6
  loop: start=0, step=1, limit=6
  $region2: #{group_forward.3} parent=0 // loop_pre_header
    _
  $region3: #{group_forward.3} parent=0 // loop_header
    %s11 = sphi 0, %s15
    %p12 = scmp.ge.s32.totalorder %s11, 6
    %s18 = sphi 0, %s30
    %s19 = sphi 0, %s26
    %s20 = sphi 0, %s18
    %s21 = sphi 0, %s19
    %s22 = sphi 0, %s20
    %s23 = sphi 0, %s21
    %s33 = sphi 0, %s35
    %s36 = sphi 0, %s33
    %s37 = sphi 0, %s36
    %s53 = sphi 0, %s37
    %s57 = sphi 0, %s57
    %s59 = sphi 0, %s57
    %s60 = sphi 0, %s59
    %s74 = sphi 0, %s60
    %s78 = sphi 0, %s78
    %s80 = sphi 0, %s78
    %s81 = sphi 0, %s80
    %s95 = sphi 0, %s81
    %s99 = sphi 0, %s99
    %s101 = sphi 0, %s99
    %s102 = sphi 0, %s101
    %s116 = sphi 0, %s102
    %s120 = sphi 0, %s120
    %s122 = sphi 0, %s120
    %s123 = sphi 0, %s122
    %s137 = sphi 0, %s123
    %s145 = sphi 0, %s147
    %s148 = sphi 0, %s145
    %s149 = sphi 0, %s148
    %s165 = sphi 0, %s149
  $region4: #{group_forward.3} parent=0 // loop_header_branch
    %14 = sbr.rel (%p12) target = $region8
  $region5: #{group_forward.3} parent=0 // loop_body
    %s16 = ssub.s32 %s11, 1
    %s17 = ssub.s32 %s11, 2
    %s24 = sadd.s32 1, %s19
    %p25 = scmp.ge.s32.totalorder %s24, 2
    %s26 = scalar_select %p25, 0, %s24
    %s27 = sadd.s32 1, %s18
    %s28 = scalar_select %p25, %s27, %s18
    %p29 = scmp.ge.s32.totalorder %s28, 2
    %s30 = scalar_select %p29, 0, %s28
    %s31 = ssub.s32 %s18, %s30
    %p32 = scmp.eq.s32.totalorder %s31, 0
    %s34 = sadd.s32 %s33, 1
    %s35 = scalar_select %p32, %s33, %s34
    %p38 = pneg %p32
    %p39 = scmp.eq.s32.totalorder %s11, 3
    %p40 = por %p38, %p39
    %p41 = scmp.ne.s32.totalorder %s33, %s36
    %p42 = scmp.eq.s32.totalorder %s11, 0
    %p43 = por %p41, %p42
    %p44 = scmp.ne.s32.totalorder %s33, %s36
    %p45 = scmp.eq.s32.totalorder %s16, 3
    %p46 = por %p44, %p45
    %p47 = scmp.ne.s32.totalorder %s36, %s37
    %p48 = scmp.eq.s32.totalorder %s16, 0
    %p49 = por %p47, %p48
    %p50 = scmp.ne.s32.totalorder %s36, %s37
    %p51 = scmp.eq.s32.totalorder %s17, 3
    %p52 = por %p50, %p51
    %p54 = scmp.ne.s32.totalorder %s37, %s53
    %p55 = scmp.eq.s32.totalorder %s17, 0
    %p56 = por %p54, %p55
    %s58 = sadd.s32 %s57, 1
    %p61 = scmp.eq.s32.totalorder %s11, 3
    %p62 = scmp.ne.s32.totalorder %s57, %s59
    %p63 = scmp.eq.s32.totalorder %s11, 0
    %p64 = por %p62, %p63
    %p65 = scmp.ne.s32.totalorder %s57, %s59
    %p66 = scmp.eq.s32.totalorder %s16, 3
    %p67 = por %p65, %p66
    %p68 = scmp.ne.s32.totalorder %s59, %s60
    %p69 = scmp.eq.s32.totalorder %s16, 0
    %p70 = por %p68, %p69
    %p71 = scmp.ne.s32.totalorder %s59, %s60
    %p72 = scmp.eq.s32.totalorder %s17, 3
    %p73 = por %p71, %p72
    %p75 = scmp.ne.s32.totalorder %s60, %s74
    %p76 = scmp.eq.s32.totalorder %s17, 0
    %p77 = por %p75, %p76
    %s79 = sadd.s32 %s78, 1
    %p82 = scmp.eq.s32.totalorder %s11, 3
    %p83 = scmp.ne.s32.totalorder %s78, %s80
    %p84 = scmp.eq.s32.totalorder %s11, 0
    %p85 = por %p83, %p84
    %p86 = scmp.ne.s32.totalorder %s78, %s80
    %p87 = scmp.eq.s32.totalorder %s16, 3
    %p88 = por %p86, %p87
    %p89 = scmp.ne.s32.totalorder %s80, %s81
    %p90 = scmp.eq.s32.totalorder %s16, 0
    %p91 = por %p89, %p90
    %p92 = scmp.ne.s32.totalorder %s80, %s81
    %p93 = scmp.eq.s32.totalorder %s17, 3
    %p94 = por %p92, %p93
    %p96 = scmp.ne.s32.totalorder %s81, %s95
    %p97 = scmp.eq.s32.totalorder %s17, 0
    %p98 = por %p96, %p97
    %s100 = sadd.s32 %s99, 1
    %p103 = scmp.eq.s32.totalorder %s11, 3
    %p104 = scmp.ne.s32.totalorder %s99, %s101
    %p105 = scmp.eq.s32.totalorder %s11, 0
    %p106 = por %p104, %p105
    %p107 = scmp.ne.s32.totalorder %s99, %s101
    %p108 = scmp.eq.s32.totalorder %s16, 3
    %p109 = por %p107, %p108
    %p110 = scmp.ne.s32.totalorder %s101, %s102
    %p111 = scmp.eq.s32.totalorder %s16, 0
    %p112 = por %p110, %p111
    %p113 = scmp.ne.s32.totalorder %s101, %s102
    %p114 = scmp.eq.s32.totalorder %s17, 3
    %p115 = por %p113, %p114
    %p117 = scmp.ne.s32.totalorder %s102, %s116
    %p118 = scmp.eq.s32.totalorder %s17, 0
    %p119 = por %p117, %p118
    %s121 = sadd.s32 %s120, 1
    %p124 = scmp.eq.s32.totalorder %s11, 3
    %p125 = scmp.ne.s32.totalorder %s120, %s122
    %p126 = scmp.eq.s32.totalorder %s11, 0
    %p127 = por %p125, %p126
    %p128 = scmp.ne.s32.totalorder %s120, %s122
    %p129 = scmp.eq.s32.totalorder %s16, 3
    %p130 = por %p128, %p129
    %p131 = scmp.ne.s32.totalorder %s122, %s123
    %p132 = scmp.eq.s32.totalorder %s16, 0
    %p133 = por %p131, %p132
    %p134 = scmp.ne.s32.totalorder %s122, %s123
    %p135 = scmp.eq.s32.totalorder %s17, 3
    %p136 = por %p134, %p135
    %p138 = scmp.ne.s32.totalorder %s123, %s137
    %p139 = scmp.eq.s32.totalorder %s17, 0
    %p140 = por %p138, %p139
    %s141 = ssub.s32 %s18, %s30
    %s142 = ssub.s32 %s19, %s26
    %s143 = sor.u32 %s141, %s142
    %p144 = scmp.eq.s32.totalorder %s143, 0
    %s146 = sadd.s32 %s145, 1
    %s147 = scalar_select %p144, %s145, %s146
    %p150 = pneg %p144
    %p151 = scmp.eq.s32.totalorder %s11, 3
    %p152 = por %p150, %p151
    %p153 = scmp.ne.s32.totalorder %s145, %s148
    %p154 = scmp.eq.s32.totalorder %s11, 0
    %p155 = por %p153, %p154
    %p156 = scmp.ne.s32.totalorder %s145, %s148
    %p157 = scmp.eq.s32.totalorder %s16, 3
    %p158 = por %p156, %p157
    %p159 = scmp.ne.s32.totalorder %s148, %s149
    %p160 = scmp.eq.s32.totalorder %s16, 0
    %p161 = por %p159, %p160
    %p162 = scmp.ne.s32.totalorder %s148, %s149
    %p163 = scmp.eq.s32.totalorder %s17, 3
    %p164 = por %p162, %p163
    %p166 = scmp.ne.s32.totalorder %s149, %s165
    %p167 = scmp.eq.s32.totalorder %s17, 0
    %p168 = por %p166, %p167
    %p169 = scmp.le.s32.totalorder 1, %s11
    %p170 = scmp.lt.s32.totalorder %s11, 5
    %p171 = pnand %p169, %p170
    %p172 = pneg %p171
    // Predicated region
    $region9: #{group_forward.3} parent=5 // pred_check
      _
    $region10: #{group_forward.3} parent=5 // pred_check_branch
      %174 = sbr.rel (%p171) target = $region12
    $region11: #{group_forward.3} parent=5 // pred_region
      %s175 = ssub.s32 %s11, 1
      // Predicated region
      $region13: #{group_forward.3} parent=11 // pred_check
        %p176 = pneg %p70
      $region14: #{group_forward.3} parent=11 // pred_check_branch
        %178 = sbr.rel (%p176) target = $region16
      $region15: #{group_forward.3} parent=11 // pred_region
        _
      $region16: #{group_forward.3} parent=11 // pred_fallthru
        _
      // Predicated region
      $region17: #{group_forward.3} parent=11 // pred_check
        %p179 = pneg %p91
      $region18: #{group_forward.3} parent=11 // pred_check_branch
        %181 = sbr.rel (%p179) target = $region20
      $region19: #{group_forward.3} parent=11 // pred_region
        _
      $region20: #{group_forward.3} parent=11 // pred_fallthru
        _
      // Predicated region
      $region21: #{group_forward.3} parent=11 // pred_check
        %p182 = pneg %p112
      $region22: #{group_forward.3} parent=11 // pred_check_branch
        %184 = sbr.rel (%p182) target = $region24
      $region23: #{group_forward.3} parent=11 // pred_region
        _
      $region24: #{group_forward.3} parent=11 // pred_fallthru
        _
      // Predicated region
      $region25: #{group_forward.3} parent=11 // pred_check
        %p185 = pneg %p133
      $region26: #{group_forward.3} parent=11 // pred_check_branch
        %187 = sbr.rel (%p185) target = $region28
      $region27: #{group_forward.3} parent=11 // pred_region
        _
      $region28: #{group_forward.3} parent=11 // pred_fallthru
        _
    $region12: #{group_forward.3} parent=5 // pred_fallthru
      _
    %p188 = scmp.lt.s32.totalorder %s11, 4
    // Predicated region
    $region29: #{group_forward.3} parent=5 // pred_check
      %p189 = pneg %p188
    $region30: #{group_forward.3} parent=5 // pred_check_branch
      %191 = sbr.rel (%p189) target = $region32
    $region31: #{group_forward.3} parent=5 // pred_region
      // Predicated region
      $region33: #{group_forward.3} parent=31 // pred_check
        %p192 = pneg %p43
      $region34: #{group_forward.3} parent=31 // pred_check_branch
        %194 = sbr.rel (%p192) target = $region36
      $region35: #{group_forward.3} parent=31 // pred_region
        %p195 = scmp.lt.s32.totalorder %s18, 1
        %s196 = scalar_select %p195, %s18, 1
        %s197 = smul.addr %s196, 54
        %s198 = smul.addr %s197, 4
        %s199 = scalar_lea.vmem %s0, %s198
      $region36: #{group_forward.3} parent=31 // pred_fallthru
        _
    $region32: #{group_forward.3} parent=5 // pred_fallthru
      _
    %p200 = scmp.le.s32.totalorder 1, %s11
    %p201 = scmp.lt.s32.totalorder %s11, 5
    %p202 = pnand %p200, %p201
    %p203 = pneg %p202
    // Predicated region
    $region37: #{group_forward.3} parent=5 // pred_check
      _
    $region38: #{group_forward.3} parent=5 // pred_check_branch
      %205 = sbr.rel (%p202) target = $region40
    $region39: #{group_forward.3} parent=5 // pred_region
      %s206 = ssub.s32 %s11, 1
      %p207 = scmp.lt.s32.totalorder %s20, 1
      %s208 = scalar_select %p207, %s20, 1
      %s209 = smul.addr %s208, 54
      %s210 = smul.addr %s209, 4
      %s211 = scalar_lea.vmem %s0, %s210
      %p212 = pneg %p49
      %p213 = pneg %p46
      %p214 = pneg %p70
      %p215 = pneg %p67
      %p216 = pneg %p91
      %p217 = pneg %p88
      %p218 = pneg %p112
      %p219 = pneg %p109
      %p220 = pneg %p133
      %p221 = pneg %p130
      %p222 = pneg %p161
      %p223 = pneg %p158
      %s224 = smul.u32 8, %s21
      %p225 = scmp.lt.s32.totalorder %s20, 1
      %s226 = scalar_select %p225, %s20, 1
      %p227 = scmp.lt.s32.totalorder %s224, 15
      %s228 = scalar_select %p227, %s224, 15
      %s229 = smul.addr %s228, 2
      %s230 = smul.addr %s226, 32
      %s231 = sadd.s32 %s229, %s230
      %s232 = smul.addr %s231, 8
      %s233 = scalar_lea.vmem %s5, %s232
      %p234 = scmp.lt.s32.totalorder %s20, 1
      %s235 = scalar_select %p234, %s20, 1
      %s236 = smul.addr %s235, 54
      %s237 = smul.addr %s236, 4
      %s238 = scalar_lea.vmem %s0, %s237
      %s239 = smul.u32 8, %s21
      %p240 = scmp.lt.s32.totalorder %s20, 1
      %s241 = scalar_select %p240, %s20, 1
      %p242 = scmp.lt.s32.totalorder %s239, 15
      %s243 = scalar_select %p242, %s239, 15
      %s244 = smul.addr %s243, 2
      %s245 = smul.addr %s241, 32
      %s246 = sadd.s32 %s244, %s245
      %s247 = smul.addr %s246, 8
      %s248 = scalar_lea.vmem %s5, %s247
      %s249 = smul.u32 8, %s21
      %s251 = smul.u32 %s21, 8
      %s252 = smul.u32 %s251, 3
      %s253 = smul.addr %s252, 4
      %s254 = scalar_lea.vmem %s238, %s253
      %v255 = vld [vmem:[%s254] sm:$0xf]
      %v256 = vld [vmem:[%s254 + $0x4] sm:$0xf]
      %v257 = vld [vmem:[%s254 + $0xc] sm:$0xf]
      %v258 = vld [vmem:[%s254 + $0x10] sm:$0xf]
      %v259 = vld [vmem:[%s254 + $0x18] sm:$0xf]
      %v260 = vld [vmem:[%s254 + $0x1c] sm:$0xf]
      %v261 = vld [vmem:[%s254 + $0x24] sm:$0xf]
      %v262 = vld [vmem:[%s254 + $0x28] sm:$0xf]
      %v263 = vld [vmem:[%s254 + $0x30] sm:$0xf]
      %v264 = vld [vmem:[%s254 + $0x34] sm:$0xf]
      %v265 = vld [vmem:[%s254 + $0x3c] sm:$0xf]
      %v266 = vld [vmem:[%s254 + $0x40] sm:$0xf]
      %v267 = vld [vmem:[%s254 + $0x48] sm:$0xf]
      %v268 = vld [vmem:[%s254 + $0x4c] sm:$0xf]
      %v269 = vld [vmem:[%s254 + $0x54] sm:$0xf]
      %v270 = vld [vmem:[%s254 + $0x58] sm:$0xf]
      %v271 = vld [vmem:[%s1] sm:$0x3]
      %v272 = vld [vmem:[%s2] sm:$0x3]
      %v273 = vld [vmem:[%s254 + $0x8] sm:$0x1]
      %v274 = vld [vmem:[%s254 + $0x14] sm:$0x1]
      %v275 = vld [vmem:[%s254 + $0x20] sm:$0x1]
      %v276 = vld [vmem:[%s254 + $0x2c] sm:$0x1]
      %v277 = vld [vmem:[%s254 + $0x38] sm:$0x1]
      %v278 = vld [vmem:[%s254 + $0x44] sm:$0x1]
      %v279 = vld [vmem:[%s254 + $0x50] sm:$0x1]
      %v280 = vld [vmem:[%s254 + $0x5c] sm:$0x1]
      %vm281 = vsmask.f32 3328
      %vm282 = vsmask.f32 7440
      %vm283 = vmor %vm281, %vm282
      %v285 = vshrl.u32 %v255, 16
      %v287 = vrot.slane %v285, 4
      %v288 = vshll.u32 %v255, 16
      %v290 = vrot.slane %v288, 5
      %v291 = vor.u32 %v287, %v290
      %v292 = vrot.slane %v291, 4
      %v294 = vshll.u32 %v256, 16
      %v296 = vrot.slane %v294, 5
      %v297 = vsel %vm283, %v292, %v296
      %v298 = vshrl.u32 %v256, 16
      %v300 = vrot.slane %v298, 4
      %v301 = vor.u32 %v300, %v296
      %v302 = vrot.slane %v301, 4
      %v304 = vshll.u32 %v273, 16
      %v306 = vrot.slane %v304, 5
      %v307 = vsel %vm283, %v302, %v306
      %v309 = vshrl.u32 %v257, 16
      %v311 = vrot.slane %v309, 4
      %v312 = vshll.u32 %v257, 16
      %v314 = vrot.slane %v312, 5
      %v315 = vor.u32 %v311, %v314
      %v316 = vrot.slane %v315, 4
      %v318 = vshll.u32 %v258, 16
      %v320 = vrot.slane %v318, 5
      %v321 = vsel %vm283, %v316, %v320
      %v322 = vshrl.u32 %v258, 16
      %v324 = vrot.slane %v322, 4
      %v325 = vor.u32 %v324, %v320
      %v326 = vrot.slane %v325, 4
      %v328 = vshll.u32 %v274, 16
      %v330 = vrot.slane %v328, 5
      %v331 = vsel %vm283, %v326, %v330
      %v333 = vshrl.u32 %v259, 16
      %v335 = vrot.slane %v333, 4
      %v336 = vshll.u32 %v259, 16
      %v338 = vrot.slane %v336, 5
      %v339 = vor.u32 %v335, %v338
      %v340 = vrot.slane %v339, 4
      %v342 = vshll.u32 %v260, 16
      %v344 = vrot.slane %v342, 5
      %v345 = vsel %vm283, %v340, %v344
      %v346 = vshrl.u32 %v260, 16
      %v348 = vrot.slane %v346, 4
      %v349 = vor.u32 %v348, %v344
      %v350 = vrot.slane %v349, 4
      %v352 = vshll.u32 %v275, 16
      %v354 = vrot.slane %v352, 5
      %v355 = vsel %vm283, %v350, %v354
      %v357 = vshrl.u32 %v261, 16
      %v359 = vrot.slane %v357, 4
      %v360 = vshll.u32 %v261, 16
      %v362 = vrot.slane %v360, 5
      %v363 = vor.u32 %v359, %v362
      %v364 = vrot.slane %v363, 4
      %v366 = vshll.u32 %v262, 16
      %v368 = vrot.slane %v366, 5
      %v369 = vsel %vm283, %v364, %v368
      %v370 = vshrl.u32 %v262, 16
      %v372 = vrot.slane %v370, 4
      %v373 = vor.u32 %v372, %v368
      %v374 = vrot.slane %v373, 4
      %v376 = vshll.u32 %v276, 16
      %v378 = vrot.slane %v376, 5
      %v379 = vsel %vm283, %v374, %v378
      %v381 = vshrl.u32 %v263, 16
      %v383 = vrot.slane %v381, 4
      %v384 = vshll.u32 %v263, 16
      %v386 = vrot.slane %v384, 5
      %v387 = vor.u32 %v383, %v386
      %v388 = vrot.slane %v387, 4
      %v390 = vshll.u32 %v264, 16
      %v392 = vrot.slane %v390, 5
      %v393 = vsel %vm283, %v388, %v392
      %v394 = vshrl.u32 %v264, 16
      %v396 = vrot.slane %v394, 4
      %v397 = vor.u32 %v396, %v392
      %v398 = vrot.slane %v397, 4
      %v400 = vshll.u32 %v277, 16
      %v402 = vrot.slane %v400, 5
      %v403 = vsel %vm283, %v398, %v402
      %v405 = vshrl.u32 %v265, 16
      %v407 = vrot.slane %v405, 4
      %v408 = vshll.u32 %v265, 16
      %v410 = vrot.slane %v408, 5
      %v411 = vor.u32 %v407, %v410
      %v412 = vrot.slane %v411, 4
      %v414 = vshll.u32 %v266, 16
      %v416 = vrot.slane %v414, 5
      %v417 = vsel %vm283, %v412, %v416
      %v418 = vshrl.u32 %v266, 16
      %v420 = vrot.slane %v418, 4
      %v421 = vor.u32 %v420, %v416
      %v422 = vrot.slane %v421, 4
      %v424 = vshll.u32 %v278, 16
      %v426 = vrot.slane %v424, 5
      %v427 = vsel %vm283, %v422, %v426
      %v429 = vshrl.u32 %v267, 16
      %v431 = vrot.slane %v429, 4
      %v432 = vshll.u32 %v267, 16
      %v434 = vrot.slane %v432, 5
      %v435 = vor.u32 %v431, %v434
      %v436 = vrot.slane %v435, 4
      %v438 = vshll.u32 %v268, 16
      %v440 = vrot.slane %v438, 5
      %v441 = vsel %vm283, %v436, %v440
      %v442 = vshrl.u32 %v268, 16
      %v444 = vrot.slane %v442, 4
      %v445 = vor.u32 %v444, %v440
      %v446 = vrot.slane %v445, 4
      %v448 = vshll.u32 %v279, 16
      %v450 = vrot.slane %v448, 5
      %v451 = vsel %vm283, %v446, %v450
      %v453 = vshrl.u32 %v269, 16
      %v455 = vrot.slane %v453, 4
      %v456 = vshll.u32 %v269, 16
      %v458 = vrot.slane %v456, 5
      %v459 = vor.u32 %v455, %v458
      %v460 = vrot.slane %v459, 4
      %v462 = vshll.u32 %v270, 16
      %v464 = vrot.slane %v462, 5
      %v465 = vsel %vm283, %v460, %v464
      %v466 = vshrl.u32 %v270, 16
      %v468 = vrot.slane %v466, 4
      %v469 = vor.u32 %v468, %v464
      %v470 = vrot.slane %v469, 4
      %v472 = vshll.u32 %v280, 16
      %v474 = vrot.slane %v472, 5
      %v475 = vsel %vm283, %v470, %v474
      %s476 = scalar_lea.vmem %s1, 2
      %v477 = vld [vmem:[%s476] sm:$0x3]
      %v478 = vunpack.c.l.b16 %v297
      %v479 = vunpack.c.l.b16 %v307
      %v480 = vunpack.c.l.b16 %v321
      %v481 = vunpack.c.l.b16 %v331
      %v482 = vunpack.c.l.b16 %v345
      %v483 = vunpack.c.l.b16 %v355
      %v484 = vunpack.c.l.b16 %v369
      %v485 = vunpack.c.l.b16 %v379
      %v486 = vunpack.c.l.b16 %v393
      %v487 = vunpack.c.l.b16 %v403
      %v488 = vunpack.c.l.b16 %v417
      %v489 = vunpack.c.l.b16 %v427
      %v490 = vunpack.c.l.b16 %v441
      %v491 = vunpack.c.l.b16 %v451
      %v492 = vunpack.c.l.b16 %v465
      %v493 = vunpack.c.l.b16 %v475
      %v494 = vpack.c.b16 %v479, %v478
      %v495 = vpack.c.b16 %v481, %v480
      %v496 = vpack.c.b16 %v483, %v482
      %v497 = vpack.c.b16 %v485, %v484
      %v498 = vpack.c.b16 %v487, %v486
      %v499 = vpack.c.b16 %v489, %v488
      %v500 = vpack.c.b16 %v491, %v490
      %v501 = vpack.c.b16 %v493, %v492
      %vm502 = vcmask 31744
      %v504 = vsel %vm502, %v494, 0
      %v507 = vsel %vm502, %v495, 0
      %v510 = vsel %vm502, %v496, 0
      %v513 = vsel %vm502, %v497, 0
      %v516 = vsel %vm502, %v498, 0
      %v519 = vsel %vm502, %v499, 0
      %v522 = vsel %vm502, %v500, 0
      %v525 = vsel %vm502, %v501, 0
      %vm527 = vcmask 1041408
      %v529 = vsel %vm527, %v477, 0
      %531 = vmatprep.subr.bf16.mxu0 0
      %532 = vmatpush1.bf16.msra.mxu0 %v529
      %533 = vmatprep.subr.bf16.mxu0 0
      %534 = vmatpush1.bf16.msra.mxu0 0
      %535 = vmatprep.subr.bf16.mxu0 0
      %536 = vmatpush1.bf16.msra.mxu0 0
      %537 = vmatprep.subr.bf16.mxu0 0
      %538 = vmatpush1.bf16.msra.mxu0 0
      %539 = vmatprep.subr.bf16.mxu0 0
      %540 = vmatpush1.bf16.msra.mxu0 0
      %541 = vmatprep.subr.bf16.mxu0 0
      %542 = vmatpush1.bf16.msra.mxu0 0
      %543 = vmatprep.subr.bf16.mxu0 0
      %544 = vmatpush1.bf16.msra.mxu0 0
      %545 = vmatprep.subr.bf16.mxu0 0
      %546 = vmatpush1.bf16.msra.mxu0 0
      %547 = vmatprep.subr.bf16.mxu0 0
      %548 = vmatpush1.bf16.msra.mxu0 0
      %549 = vmatprep.subr.bf16.mxu0 0
      %550 = vmatpush1.bf16.msra.mxu0 0
      %551 = vmatprep.subr.bf16.mxu0 0
      %552 = vmatpush1.bf16.msra.mxu0 0
      %553 = vmatprep.subr.bf16.mxu0 0
      %554 = vmatpush1.bf16.msra.mxu0 0
      %555 = vmatprep.subr.bf16.mxu0 0
      %556 = vmatpush1.bf16.msra.mxu0 0
      %557 = vmatprep.subr.bf16.mxu0 0
      %558 = vmatpush1.bf16.msra.mxu0 0
      %559 = vmatprep.subr.bf16.mxu0 0
      %560 = vmatpush1.bf16.msra.mxu0 0
      %561 = vmatprep.subr.bf16.mxu0 0
      %562 = vmatpush1.bf16.msra.mxu0 0
      %563 = vmatprep.mubr.bf16.mxu0 0
      %564 = vmatmul.mubr.bf16.gmra.mrb[0].mxu0 %v504
      %v565 = vpop.f32.mrb[0].mxu0
      %v566 = vadd.f32 0.0, %v565
      %v567 = vpop.f32.mrb[0].mxu0
      %v568 = vpop.f32.mrb[0].mxu0
      %v569 = vadd.f32 0.0, %v568
      %v570 = vpop.f32.mrb[0].mxu0
      %571 = vmatprep.mubr.bf16.mxu0 0
      %572 = vmatmul.mubr.bf16.gmra.mrb[0].mxu0 %v507
      %v573 = vpop.f32.mrb[0].mxu0
      %v574 = vadd.f32 0.0, %v573
      %v575 = vpop.f32.mrb[0].mxu0
      %v576 = vpop.f32.mrb[0].mxu0
      %v577 = vadd.f32 0.0, %v576
      %v578 = vpop.f32.mrb[0].mxu0
      %579 = vmatprep.mubr.bf16.mxu0 0
      %580 = vmatmul.mubr.bf16.gmra.mrb[0].mxu0 %v510
      %v581 = vpop.f32.mrb[0].mxu0
      %v582 = vadd.f32 0.0, %v581
      %v583 = vpop.f32.mrb[0].mxu0
      %v584 = vpop.f32.mrb[0].mxu0
      %v585 = vadd.f32 0.0, %v584
      %v586 = vpop.f32.mrb[0].mxu0
      %587 = vmatprep.mubr.bf16.mxu0 0
      %588 = vmatmul.mubr.bf16.gmra.mrb[0].mxu0 %v513
      %v589 = vpop.f32.mrb[0].mxu0
      %v590 = vadd.f32 0.0, %v589
      %v591 = vpop.f32.mrb[0].mxu0
      %v592 = vpop.f32.mrb[0].mxu0
      %v593 = vadd.f32 0.0, %v592
      %v594 = vpop.f32.mrb[0].mxu0
      %595 = vmatprep.mubr.bf16.mxu0 0
      %596 = vmatmul.mubr.bf16.gmra.mrb[0].mxu0 %v516
      %v597 = vpop.f32.mrb[0].mxu0
      %v598 = vadd.f32 0.0, %v597
      %v599 = vpop.f32.mrb[0].mxu0
      %v600 = vpop.f32.mrb[0].mxu0
      %v601 = vadd.f32 0.0, %v600
      %v602 = vpop.f32.mrb[0].mxu0
      %603 = vmatprep.mubr.bf16.mxu0 0
      %604 = vmatmul.mubr.bf16.gmra.mrb[0].mxu0 %v519
      %v605 = vpop.f32.mrb[0].mxu0
      %v606 = vadd.f32 0.0, %v605
      %v607 = vpop.f32.mrb[0].mxu0
      %v608 = vpop.f32.mrb[0].mxu0
      %v609 = vadd.f32 0.0, %v608
      %v610 = vpop.f32.mrb[0].mxu0
      %611 = vmatprep.mubr.bf16.mxu0 0
      %612 = vmatmul.mubr.bf16.gmra.mrb[0].mxu0 %v522
      %v613 = vpop.f32.mrb[0].mxu0
      %v614 = vadd.f32 0.0, %v613
      %v615 = vpop.f32.mrb[0].mxu0
      %v616 = vpop.f32.mrb[0].mxu0
      %v617 = vadd.f32 0.0, %v616
      %v618 = vpop.f32.mrb[0].mxu0
      %619 = vmatprep.mubr.bf16.mxu0 0
      %620 = vmatmul.mubr.bf16.gmra.mrb[0].mxu0 %v525
      %v621 = vpop.f32.mrb[0].mxu0
      %v622 = vadd.f32 0.0, %v621
      %v623 = vpop.f32.mrb[0].mxu0
      %v624 = vpop.f32.mrb[0].mxu0
      %v625 = vadd.f32 0.0, %v624
      %v626 = vpop.f32.mrb[0].mxu0
      %627 = vdwg.mxu0
      %v644 = vunpack.c.l.b16 %v255
      %v645 = vunpack.c.l.b16 %v256
      %v646 = vunpack.c.l.b16 %v257
      %v647 = vunpack.c.l.b16 %v258
      %v648 = vunpack.c.l.b16 %v259
      %v649 = vunpack.c.l.b16 %v260
      %v650 = vunpack.c.l.b16 %v261
      %v651 = vunpack.c.l.b16 %v262
      %v652 = vunpack.c.l.b16 %v263
      %v653 = vunpack.c.l.b16 %v264
      %v654 = vunpack.c.l.b16 %v265
      %v655 = vunpack.c.l.b16 %v266
      %v656 = vunpack.c.l.b16 %v267
      %v657 = vunpack.c.l.b16 %v268
      %v658 = vunpack.c.l.b16 %v269
      %v659 = vunpack.c.l.b16 %v270
      %v660 = vpack.c.b16 %v645, %v644
      %v661 = vpack.c.b16 %v647, %v646
      %v662 = vpack.c.b16 %v649, %v648
      %v663 = vpack.c.b16 %v651, %v650
      %v664 = vpack.c.b16 %v653, %v652
      %v665 = vpack.c.b16 %v655, %v654
      %v666 = vpack.c.b16 %v657, %v656
      %v667 = vpack.c.b16 %v659, %v658
      %v669 = vsel %vm502, %v660, 0
      %v672 = vsel %vm502, %v661, 0
      %v675 = vsel %vm502, %v662, 0
      %v678 = vsel %vm502, %v663, 0
      %v681 = vsel %vm502, %v664, 0
      %v684 = vsel %vm502, %v665, 0
      %v687 = vsel %vm502, %v666, 0
      %v690 = vsel %vm502, %v667, 0
      %v693 = vsel %vm527, %v271, 0
      %695 = vmatprep.subr.bf16.mxu0 0
      %696 = vmatpush1.bf16.msra.mxu0 %v693
      %697 = vmatprep.subr.bf16.mxu0 0
      %698 = vmatpush1.bf16.msra.mxu0 0
      %699 = vmatprep.subr.bf16.mxu0 0
      %700 = vmatpush1.bf16.msra.mxu0 0
      %701 = vmatprep.subr.bf16.mxu0 0
      %702 = vmatpush1.bf16.msra.mxu0 0
      %703 = vmatprep.subr.bf16.mxu0 0
      %704 = vmatpush1.bf16.msra.mxu0 0
      %705 = vmatprep.subr.bf16.mxu0 0
      %706 = vmatpush1.bf16.msra.mxu0 0
      %707 = vmatprep.subr.bf16.mxu0 0
      %708 = vmatpush1.bf16.msra.mxu0 0
      %709 = vmatprep.subr.bf16.mxu0 0
      %710 = vmatpush1.bf16.msra.mxu0 0
      %711 = vmatprep.subr.bf16.mxu0 0
      %712 = vmatpush1.bf16.msra.mxu0 0
      %713 = vmatprep.subr.bf16.mxu0 0
      %714 = vmatpush1.bf16.msra.mxu0 0
      %715 = vmatprep.subr.bf16.mxu0 0
      %716 = vmatpush1.bf16.msra.mxu0 0
      %717 = vmatprep.subr.bf16.mxu0 0
      %718 = vmatpush1.bf16.msra.mxu0 0
      %719 = vmatprep.subr.bf16.mxu0 0
      %720 = vmatpush1.bf16.msra.mxu0 0
      %721 = vmatprep.subr.bf16.mxu0 0
      %722 = vmatpush1.bf16.msra.mxu0 0
      %723 = vmatprep.subr.bf16.mxu0 0
      %724 = vmatpush1.bf16.msra.mxu0 0
      %725 = vmatprep.subr.bf16.mxu0 0
      %726 = vmatpush1.bf16.msra.mxu0 0
      %727 = vmatprep.mubr.bf16.mxu0 0
      %728 = vmatmul.mubr.bf16.gmra.mrb[0].mxu0 %v669
      %v729 = vpop.f32.mrb[0].mxu0
      %v730 = vadd.f32 %v566, %v729
      %v731 = vpop.f32.mrb[0].mxu0
      %v732 = vpop.f32.mrb[0].mxu0
      %v733 = vadd.f32 %v569, %v732
      %v734 = vpop.f32.mrb[0].mxu0
      %735 = vmatprep.mubr.bf16.mxu0 0
      %736 = vmatmul.mubr.bf16.gmra.mrb[0].mxu0 %v672
      %v737 = vpop.f32.mrb[0].mxu0
      %v738 = vadd.f32 %v574, %v737
      %v739 = vpop.f32.mrb[0].mxu0
      %v740 = vpop.f32.mrb[0].mxu0
      %v741 = vadd.f32 %v577, %v740
      %v742 = vpop.f32.mrb[0].mxu0
      %743 = vmatprep.mubr.bf16.mxu0 0
      %744 = vmatmul.mubr.bf16.gmra.mrb[0].mxu0 %v675
      %v745 = vpop.f32.mrb[0].mxu0
      %v746 = vadd.f32 %v582, %v745
      %v747 = vpop.f32.mrb[0].mxu0
      %v748 = vpop.f32.mrb[0].mxu0
      %v749 = vadd.f32 %v585, %v748
      %v750 = vpop.f32.mrb[0].mxu0
      %751 = vmatprep.mubr.bf16.mxu0 0
      %752 = vmatmul.mubr.bf16.gmra.mrb[0].mxu0 %v678
      %v753 = vpop.f32.mrb[0].mxu0
      %v754 = vadd.f32 %v590, %v753
      %v755 = vpop.f32.mrb[0].mxu0
      %v756 = vpop.f32.mrb[0].mxu0
      %v757 = vadd.f32 %v593, %v756
      %v758 = vpop.f32.mrb[0].mxu0
      %759 = vmatprep.mubr.bf16.mxu0 0
      %760 = vmatmul.mubr.bf16.gmra.mrb[0].mxu0 %v681
      %v761 = vpop.f32.mrb[0].mxu0
      %v762 = vadd.f32 %v598, %v761
      %v763 = vpop.f32.mrb[0].mxu0
      %v764 = vpop.f32.mrb[0].mxu0
      %v765 = vadd.f32 %v601, %v764
      %v766 = vpop.f32.mrb[0].mxu0
      %767 = vmatprep.mubr.bf16.mxu0 0
      %768 = vmatmul.mubr.bf16.gmra.mrb[0].mxu0 %v684
      %v769 = vpop.f32.mrb[0].mxu0
      %v770 = vadd.f32 %v606, %v769
      %v771 = vpop.f32.mrb[0].mxu0
      %v772 = vpop.f32.mrb[0].mxu0
      %v773 = vadd.f32 %v609, %v772
      %v774 = vpop.f32.mrb[0].mxu0
      %775 = vmatprep.mubr.bf16.mxu0 0
      %776 = vmatmul.mubr.bf16.gmra.mrb[0].mxu0 %v687
      %v777 = vpop.f32.mrb[0].mxu0
      %v778 = vadd.f32 %v614, %v777
      %v779 = vpop.f32.mrb[0].mxu0
      %v780 = vpop.f32.mrb[0].mxu0
      %v781 = vadd.f32 %v617, %v780
      %v782 = vpop.f32.mrb[0].mxu0
      %783 = vmatprep.mubr.bf16.mxu0 0
      %784 = vmatmul.mubr.bf16.gmra.mrb[0].mxu0 %v690
      %v785 = vpop.f32.mrb[0].mxu0
      %v786 = vadd.f32 %v622, %v785
      %v787 = vpop.f32.mrb[0].mxu0
      %v788 = vpop.f32.mrb[0].mxu0
      %v789 = vadd.f32 %v625, %v788
      %v790 = vpop.f32.mrb[0].mxu0
      %791 = vdwg.mxu0
      %s792 = scalar_lea.vmem %s2, 2
      %v793 = vld [vmem:[%s792] sm:$0x3]
      %v795 = vsel %vm527, %v793, 0
      %797 = vmatprep.subr.bf16.mxu0 0
      %798 = vmatpush1.bf16.msra.mxu0 %v795
      %799 = vmatprep.subr.bf16.mxu0 0
      %800 = vmatpush1.bf16.msra.mxu0 0
      %801 = vmatprep.subr.bf16.mxu0 0
      %802 = vmatpush1.bf16.msra.mxu0 0
      %803 = vmatprep.subr.bf16.mxu0 0
      %804 = vmatpush1.bf16.msra.mxu0 0
      %805 = vmatprep.subr.bf16.mxu0 0
      %806 = vmatpush1.bf16.msra.mxu0 0
      %807 = vmatprep.subr.bf16.mxu0 0
      %808 = vmatpush1.bf16.msra.mxu0 0
      %809 = vmatprep.subr.bf16.mxu0 0
      %810 = vmatpush1.bf16.msra.mxu0 0
      %811 = vmatprep.subr.bf16.mxu0 0
      %812 = vmatpush1.bf16.msra.mxu0 0
      %813 = vmatprep.subr.bf16.mxu0 0
      %814 = vmatpush1.bf16.msra.mxu0 0
      %815 = vmatprep.subr.bf16.mxu0 0
      %816 = vmatpush1.bf16.msra.mxu0 0
      %817 = vmatprep.subr.bf16.mxu0 0
      %818 = vmatpush1.bf16.msra.mxu0 0
      %819 = vmatprep.subr.bf16.mxu0 0
      %820 = vmatpush1.bf16.msra.mxu0 0
      %821 = vmatprep.subr.bf16.mxu0 0
      %822 = vmatpush1.bf16.msra.mxu0 0
      %823 = vmatprep.subr.bf16.mxu0 0
      %824 = vmatpush1.bf16.msra.mxu0 0
      %825 = vmatprep.subr.bf16.mxu0 0
      %826 = vmatpush1.bf16.msra.mxu0 0
      %827 = vmatprep.subr.bf16.mxu0 0
      %828 = vmatpush1.bf16.msra.mxu0 0
      %829 = vmatprep.mubr.bf16.mxu0 0
      %830 = vmatmul.mubr.bf16.gmra.mrb[0].mxu0 %v504
      %v831 = vpop.f32.mrb[0].mxu0
      %v832 = vadd.f32 0.0, %v831
      %v833 = vpop.f32.mrb[0].mxu0
      %v834 = vpop.f32.mrb[0].mxu0
      %v835 = vadd.f32 0.0, %v834
      %v836 = vpop.f32.mrb[0].mxu0
      %837 = vmatprep.mubr.bf16.mxu0 0
      %838 = vmatmul.mubr.bf16.gmra.mrb[0].mxu0 %v507
      %v839 = vpop.f32.mrb[0].mxu0
      %v840 = vadd.f32 0.0, %v839
      %v841 = vpop.f32.mrb[0].mxu0
      %v842 = vpop.f32.mrb[0].mxu0
      %v843 = vadd.f32 0.0, %v842
      %v844 = vpop.f32.mrb[0].mxu0
      %845 = vmatprep.mubr.bf16.mxu0 0
      %846 = vmatmul.mubr.bf16.gmra.mrb[0].mxu0 %v510
      %v847 = vpop.f32.mrb[0].mxu0
      %v848 = vadd.f32 0.0, %v847
      %v849 = vpop.f32.mrb[0].mxu0
      %v850 = vpop.f32.mrb[0].mxu0
      %v851 = vadd.f32 0.0, %v850
      %v852 = vpop.f32.mrb[0].mxu0
      %853 = vmatprep.mubr.bf16.mxu0 0
      %854 = vmatmul.mubr.bf16.gmra.mrb[0].mxu0 %v513
      %v855 = vpop.f32.mrb[0].mxu0
      %v856 = vadd.f32 0.0, %v855
      %v857 = vpop.f32.mrb[0].mxu0
      %v858 = vpop.f32.mrb[0].mxu0
      %v859 = vadd.f32 0.0, %v858
      %v860 = vpop.f32.mrb[0].mxu0
      %861 = vmatprep.mubr.bf16.mxu0 0
      %862 = vmatmul.mubr.bf16.gmra.mrb[0].mxu0 %v516
      %v863 = vpop.f32.mrb[0].mxu0
      %v864 = vadd.f32 0.0, %v863
      %v865 = vpop.f32.mrb[0].mxu0
      %v866 = vpop.f32.mrb[0].mxu0
      %v867 = vadd.f32 0.0, %v866
      %v868 = vpop.f32.mrb[0].mxu0
      %869 = vmatprep.mubr.bf16.mxu0 0
      %870 = vmatmul.mubr.bf16.gmra.mrb[0].mxu0 %v519
      %v871 = vpop.f32.mrb[0].mxu0
      %v872 = vadd.f32 0.0, %v871
      %v873 = vpop.f32.mrb[0].mxu0
      %v874 = vpop.f32.mrb[0].mxu0
      %v875 = vadd.f32 0.0, %v874
      %v876 = vpop.f32.mrb[0].mxu0
      %877 = vmatprep.mubr.bf16.mxu0 0
      %878 = vmatmul.mubr.bf16.gmra.mrb[0].mxu0 %v522
      %v879 = vpop.f32.mrb[0].mxu0
      %v880 = vadd.f32 0.0, %v879
      %v881 = vpop.f32.mrb[0].mxu0
      %v882 = vpop.f32.mrb[0].mxu0
      %v883 = vadd.f32 0.0, %v882
      %v884 = vpop.f32.mrb[0].mxu0
      %885 = vmatprep.mubr.bf16.mxu0 0
      %886 = vmatmul.mubr.bf16.gmra.mrb[0].mxu0 %v525
      %v887 = vpop.f32.mrb[0].mxu0
      %v888 = vadd.f32 0.0, %v887
      %v889 = vpop.f32.mrb[0].mxu0
      %v890 = vpop.f32.mrb[0].mxu0
      %v891 = vadd.f32 0.0, %v890
      %v892 = vpop.f32.mrb[0].mxu0
      %893 = vdwg.mxu0
      %v895 = vsel %vm527, %v272, 0
      %897 = vmatprep.subr.bf16.mxu0 0
      %898 = vmatpush1.bf16.msra.mxu0 %v895
      %899 = vmatprep.subr.bf16.mxu0 0
      %900 = vmatpush1.bf16.msra.mxu0 0
      %901 = vmatprep.subr.bf16.mxu0 0
      %902 = vmatpush1.bf16.msra.mxu0 0
      %903 = vmatprep.subr.bf16.mxu0 0
      %904 = vmatpush1.bf16.msra.mxu0 0
      %905 = vmatprep.subr.bf16.mxu0 0
      %906 = vmatpush1.bf16.msra.mxu0 0
      %907 = vmatprep.subr.bf16.mxu0 0
      %908 = vmatpush1.bf16.msra.mxu0 0
      %909 = vmatprep.subr.bf16.mxu0 0
      %910 = vmatpush1.bf16.msra.mxu0 0
      %911 = vmatprep.subr.bf16.mxu0 0
      %912 = vmatpush1.bf16.msra.mxu0 0
      %913 = vmatprep.subr.bf16.mxu0 0
      %914 = vmatpush1.bf16.msra.mxu0 0
      %915 = vmatprep.subr.bf16.mxu0 0
      %916 = vmatpush1.bf16.msra.mxu0 0
      %917 = vmatprep.subr.bf16.mxu0 0
      %918 = vmatpush1.bf16.msra.mxu0 0
      %919 = vmatprep.subr.bf16.mxu0 0
      %920 = vmatpush1.bf16.msra.mxu0 0
      %921 = vmatprep.subr.bf16.mxu0 0
      %922 = vmatpush1.bf16.msra.mxu0 0
      %923 = vmatprep.subr.bf16.mxu0 0
      %924 = vmatpush1.bf16.msra.mxu0 0
      %925 = vmatprep.subr.bf16.mxu0 0
      %926 = vmatpush1.bf16.msra.mxu0 0
      %927 = vmatprep.subr.bf16.mxu0 0
      %928 = vmatpush1.bf16.msra.mxu0 0
      %929 = vmatprep.mubr.bf16.mxu0 0
      %930 = vmatmul.mubr.bf16.gmra.mrb[0].mxu0 %v669
      %v931 = vpop.f32.mrb[0].mxu0
      %v932 = vadd.f32 %v832, %v931
      %v933 = vpop.f32.mrb[0].mxu0
      %v934 = vpop.f32.mrb[0].mxu0
      %v935 = vadd.f32 %v835, %v934
      %v936 = vpop.f32.mrb[0].mxu0
      %937 = vmatprep.mubr.bf16.mxu0 0
      %938 = vmatmul.mubr.bf16.gmra.mrb[0].mxu0 %v672
      %v939 = vpop.f32.mrb[0].mxu0
      %v940 = vadd.f32 %v840, %v939
      %v941 = vpop.f32.mrb[0].mxu0
      %v942 = vpop.f32.mrb[0].mxu0
      %v943 = vadd.f32 %v843, %v942
      %v944 = vpop.f32.mrb[0].mxu0
      %945 = vmatprep.mubr.bf16.mxu0 0
      %946 = vmatmul.mubr.bf16.gmra.mrb[0].mxu0 %v675
      %v947 = vpop.f32.mrb[0].mxu0
      %v948 = vadd.f32 %v848, %v947
      %v949 = vpop.f32.mrb[0].mxu0
      %v950 = vpop.f32.mrb[0].mxu0
      %v951 = vadd.f32 %v851, %v950
      %v952 = vpop.f32.mrb[0].mxu0
      %953 = vmatprep.mubr.bf16.mxu0 0
      %954 = vmatmul.mubr.bf16.gmra.mrb[0].mxu0 %v678
      %v955 = vpop.f32.mrb[0].mxu0
      %v956 = vadd.f32 %v856, %v955
      %v957 = vpop.f32.mrb[0].mxu0
      %v958 = vpop.f32.mrb[0].mxu0
      %v959 = vadd.f32 %v859, %v958
      %v960 = vpop.f32.mrb[0].mxu0
      %961 = vmatprep.mubr.bf16.mxu0 0
      %962 = vmatmul.mubr.bf16.gmra.mrb[0].mxu0 %v681
      %v963 = vpop.f32.mrb[0].mxu0
      %v964 = vadd.f32 %v864, %v963
      %v965 = vpop.f32.mrb[0].mxu0
      %v966 = vpop.f32.mrb[0].mxu0
      %v967 = vadd.f32 %v867, %v966
      %v968 = vpop.f32.mrb[0].mxu0
      %969 = vmatprep.mubr.bf16.mxu0 0
      %970 = vmatmul.mubr.bf16.gmra.mrb[0].mxu0 %v684
      %v971 = vpop.f32.mrb[0].mxu0
      %v972 = vadd.f32 %v872, %v971
      %v973 = vpop.f32.mrb[0].mxu0
      %v974 = vpop.f32.mrb[0].mxu0
      %v975 = vadd.f32 %v875, %v974
      %v976 = vpop.f32.mrb[0].mxu0
      %977 = vmatprep.mubr.bf16.mxu0 0
      %978 = vmatmul.mubr.bf16.gmra.mrb[0].mxu0 %v687
      %v979 = vpop.f32.mrb[0].mxu0
      %v980 = vadd.f32 %v880, %v979
      %v981 = vpop.f32.mrb[0].mxu0
      %v982 = vpop.f32.mrb[0].mxu0
      %v983 = vadd.f32 %v883, %v982
      %v984 = vpop.f32.mrb[0].mxu0
      %985 = vmatprep.mubr.bf16.mxu0 0
      %986 = vmatmul.mubr.bf16.gmra.mrb[0].mxu0 %v690
      %v987 = vpop.f32.mrb[0].mxu0
      %v988 = vadd.f32 %v888, %v987
      %v989 = vpop.f32.mrb[0].mxu0
      %v990 = vpop.f32.mrb[0].mxu0
      %v991 = vadd.f32 %v891, %v990
      %v992 = vpop.f32.mrb[0].mxu0
      %993 = vdwg.mxu0
      %v994 = vld [vmem:[%s254] sm:$0xe]
      %v995 = vld [vmem:[%s254 + $0xc] sm:$0xe]
      %v996 = vld [vmem:[%s254 + $0x18] sm:$0xe]
      %v997 = vld [vmem:[%s254 + $0x24] sm:$0xe]
      %v998 = vld [vmem:[%s254 + $0x30] sm:$0xe]
      %v999 = vld [vmem:[%s254 + $0x3c] sm:$0xe]
      %v1000 = vld [vmem:[%s254 + $0x48] sm:$0xe]
      %v1001 = vld [vmem:[%s254 + $0x54] sm:$0xe]
      %vm1018 = vcmask 1042432
      %vm1019 = vcmask 1046532
      %vm1020 = vmor %vm1018, %vm1019
      %v1021 = vrot.slane %v994, 5
      %v1022 = vrot.slane %v1021, 4
      %v1023 = vrot.slane %v256, 5
      %v1024 = vsel %vm1020, %v1022, %v1023
      %v1025 = vrot.slane %v1023, 4
      %v1026 = vrot.slane %v273, 5
      %v1027 = vsel %vm1020, %v1025, %v1026
      %v1028 = vrot.slane %v995, 5
      %v1029 = vrot.slane %v1028, 4
      %v1030 = vrot.slane %v258, 5
      %v1031 = vsel %vm1020, %v1029, %v1030
      %v1032 = vrot.slane %v1030, 4
      %v1033 = vrot.slane %v274, 5
      %v1034 = vsel %vm1020, %v1032, %v1033
      %v1035 = vrot.slane %v996, 5
      %v1036 = vrot.slane %v1035, 4
      %v1037 = vrot.slane %v260, 5
      %v1038 = vsel %vm1020, %v1036, %v1037
      %v1039 = vrot.slane %v1037, 4
      %v1040 = vrot.slane %v275, 5
      %v1041 = vsel %vm1020, %v1039, %v1040
      %v1042 = vrot.slane %v997, 5
      %v1043 = vrot.slane %v1042, 4
      %v1044 = vrot.slane %v262, 5
      %v1045 = vsel %vm1020, %v1043, %v1044
      %v1046 = vrot.slane %v1044, 4
      %v1047 = vrot.slane %v276, 5
      %v1048 = vsel %vm1020, %v1046, %v1047
      %v1049 = vrot.slane %v998, 5
      %v1050 = vrot.slane %v1049, 4
      %v1051 = vrot.slane %v264, 5
      %v1052 = vsel %vm1020, %v1050, %v1051
      %v1053 = vrot.slane %v1051, 4
      %v1054 = vrot.slane %v277, 5
      %v1055 = vsel %vm1020, %v1053, %v1054
      %v1056 = vrot.slane %v999, 5
      %v1057 = vrot.slane %v1056, 4
      %v1058 = vrot.slane %v266, 5
      %v1059 = vsel %vm1020, %v1057, %v1058
      %v1060 = vrot.slane %v1058, 4
      %v1061 = vrot.slane %v278, 5
      %v1062 = vsel %vm1020, %v1060, %v1061
      %v1063 = vrot.slane %v1000, 5
      %v1064 = vrot.slane %v1063, 4
      %v1065 = vrot.slane %v268, 5
      %v1066 = vsel %vm1020, %v1064, %v1065
      %v1067 = vrot.slane %v1065, 4
      %v1068 = vrot.slane %v279, 5
      %v1069 = vsel %vm1020, %v1067, %v1068
      %v1070 = vrot.slane %v1001, 5
      %v1071 = vrot.slane %v1070, 4
      %v1072 = vrot.slane %v270, 5
      %v1073 = vsel %vm1020, %v1071, %v1072
      %v1074 = vrot.slane %v1072, 4
      %v1075 = vrot.slane %v280, 5
      %v1076 = vsel %vm1020, %v1074, %v1075
      %s1077 = scalar_lea.vmem %s1, 4
      %v1078 = vld [vmem:[%s1077] sm:$0x3]
      %v1079 = vunpack.c.l.b16 %v1024
      %v1080 = vunpack.c.l.b16 %v1027
      %v1081 = vunpack.c.l.b16 %v1031
      %v1082 = vunpack.c.l.b16 %v1034
      %v1083 = vunpack.c.l.b16 %v1038
      %v1084 = vunpack.c.l.b16 %v1041
      %v1085 = vunpack.c.l.b16 %v1045
      %v1086 = vunpack.c.l.b16 %v1048
      %v1087 = vunpack.c.l.b16 %v1052
      %v1088 = vunpack.c.l.b16 %v1055
      %v1089 = vunpack.c.l.b16 %v1059
      %v1090 = vunpack.c.l.b16 %v1062
      %v1091 = vunpack.c.l.b16 %v1066
      %v1092 = vunpack.c.l.b16 %v1069
      %v1093 = vunpack.c.l.b16 %v1073
      %v1094 = vunpack.c.l.b16 %v1076
      %v1095 = vpack.c.b16 %v1080, %v1079
      %v1096 = vpack.c.b16 %v1082, %v1081
      %v1097 = vpack.c.b16 %v1084, %v1083
      %v1098 = vpack.c.b16 %v1086, %v1085
      %v1099 = vpack.c.b16 %v1088, %v1087
      %v1100 = vpack.c.b16 %v1090, %v1089
      %v1101 = vpack.c.b16 %v1092, %v1091
      %v1102 = vpack.c.b16 %v1094, %v1093
      %v1104 = vsel %vm502, %v1095, 0
      %v1107 = vsel %vm502, %v1096, 0
      %v1110 = vsel %vm502, %v1097, 0
      %v1113 = vsel %vm502, %v1098, 0
      %v1116 = vsel %vm502, %v1099, 0
      %v1119 = vsel %vm502, %v1100, 0
      %v1122 = vsel %vm502, %v1101, 0
      %v1125 = vsel %vm502, %v1102, 0
      %v1128 = vsel %vm527, %v1078, 0
      %1130 = vmatprep.subr.bf16.mxu0 0
      %1131 = vmatpush1.bf16.msra.mxu0 %v1128
      %1132 = vmatprep.subr.bf16.mxu0 0
      %1133 = vmatpush1.bf16.msra.mxu0 0
      %1134 = vmatprep.subr.bf16.mxu0 0
      %1135 = vmatpush1.bf16.msra.mxu0 0
      %1136 = vmatprep.subr.bf16.mxu0 0
      %1137 = vmatpush1.bf16.msra.mxu0 0
      %1138 = vmatprep.subr.bf16.mxu0 0
      %1139 = vmatpush1.bf16.msra.mxu0 0
      %1140 = vmatprep.subr.bf16.mxu0 0
      %1141 = vmatpush1.bf16.msra.mxu0 0
      %1142 = vmatprep.subr.bf16.mxu0 0
      %1143 = vmatpush1.bf16.msra.mxu0 0
      %1144 = vmatprep.subr.bf16.mxu0 0
      %1145 = vmatpush1.bf16.msra.mxu0 0
      %1146 = vmatprep.subr.bf16.mxu0 0
      %1147 = vmatpush1.bf16.msra.mxu0 0
      %1148 = vmatprep.subr.bf16.mxu0 0
      %1149 = vmatpush1.bf16.msra.mxu0 0
      %1150 = vmatprep.subr.bf16.mxu0 0
      %1151 = vmatpush1.bf16.msra.mxu0 0
      %1152 = vmatprep.subr.bf16.mxu0 0
      %1153 = vmatpush1.bf16.msra.mxu0 0
      %1154 = vmatprep.subr.bf16.mxu0 0
      %1155 = vmatpush1.bf16.msra.mxu0 0
      %1156 = vmatprep.subr.bf16.mxu0 0
      %1157 = vmatpush1.bf16.msra.mxu0 0
      %1158 = vmatprep.subr.bf16.mxu0 0
      %1159 = vmatpush1.bf16.msra.mxu0 0
      %1160 = vmatprep.subr.bf16.mxu0 0
      %1161 = vmatpush1.bf16.msra.mxu0 0
      %1162 = vmatprep.mubr.bf16.mxu0 0
      %1163 = vmatmul.mubr.bf16.gmra.mrb[0].mxu0 %v1104
      %v1164 = vpop.f32.mrb[0].mxu0
      %v1165 = vadd.f32 0.0, %v1164
      %v1166 = vpop.f32.mrb[0].mxu0
      %v1167 = vpop.f32.mrb[0].mxu0
      %v1168 = vadd.f32 0.0, %v1167
      %v1169 = vpop.f32.mrb[0].mxu0
      %1170 = vmatprep.mubr.bf16.mxu0 0
      %1171 = vmatmul.mubr.bf16.gmra.mrb[0].mxu0 %v1107
      %v1172 = vpop.f32.mrb[0].mxu0
      %v1173 = vadd.f32 0.0, %v1172
      %v1174 = vpop.f32.mrb[0].mxu0
      %v1175 = vpop.f32.mrb[0].mxu0
      %v1176 = vadd.f32 0.0, %v1175
      %v1177 = vpop.f32.mrb[0].mxu0
      %1178 = vmatprep.mubr.bf16.mxu0 0
      %1179 = vmatmul.mubr.bf16.gmra.mrb[0].mxu0 %v1110
      %v1180 = vpop.f32.mrb[0].mxu0
      %v1181 = vadd.f32 0.0, %v1180
      %v1182 = vpop.f32.mrb[0].mxu0
      %v1183 = vpop.f32.mrb[0].mxu0
      %v1184 = vadd.f32 0.0, %v1183
      %v1185 = vpop.f32.mrb[0].mxu0
      %1186 = vmatprep.mubr.bf16.mxu0 0
      %1187 = vmatmul.mubr.bf16.gmra.mrb[0].mxu0 %v1113
      %v1188 = vpop.f32.mrb[0].mxu0
      %v1189 = vadd.f32 0.0, %v1188
      %v1190 = vpop.f32.mrb[0].mxu0
      %v1191 = vpop.f32.mrb[0].mxu0
      %v1192 = vadd.f32 0.0, %v1191
      %v1193 = vpop.f32.mrb[0].mxu0
      %1194 = vmatprep.mubr.bf16.mxu0 0
      %1195 = vmatmul.mubr.bf16.gmra.mrb[0].mxu0 %v1116
      %v1196 = vpop.f32.mrb[0].mxu0
      %v1197 = vadd.f32 0.0, %v1196
      %v1198 = vpop.f32.mrb[0].mxu0
      %v1199 = vpop.f32.mrb[0].mxu0
      %v1200 = vadd.f32 0.0, %v1199
      %v1201 = vpop.f32.mrb[0].mxu0
      %1202 = vmatprep.mubr.bf16.mxu0 0
      %1203 = vmatmul.mubr.bf16.gmra.mrb[0].mxu0 %v1119
      %v1204 = vpop.f32.mrb[0].mxu0
      %v1205 = vadd.f32 0.0, %v1204
      %v1206 = vpop.f32.mrb[0].mxu0
      %v1207 = vpop.f32.mrb[0].mxu0
      %v1208 = vadd.f32 0.0, %v1207
      %v1209 = vpop.f32.mrb[0].mxu0
      %1210 = vmatprep.mubr.bf16.mxu0 0
      %1211 = vmatmul.mubr.bf16.gmra.mrb[0].mxu0 %v1122
      %v1212 = vpop.f32.mrb[0].mxu0
      %v1213 = vadd.f32 0.0, %v1212
      %v1214 = vpop.f32.mrb[0].mxu0
      %v1215 = vpop.f32.mrb[0].mxu0
      %v1216 = vadd.f32 0.0, %v1215
      %v1217 = vpop.f32.mrb[0].mxu0
      %1218 = vmatprep.mubr.bf16.mxu0 0
      %1219 = vmatmul.mubr.bf16.gmra.mrb[0].mxu0 %v1125
      %v1220 = vpop.f32.mrb[0].mxu0
      %v1221 = vadd.f32 0.0, %v1220
      %v1222 = vpop.f32.mrb[0].mxu0
      %v1223 = vpop.f32.mrb[0].mxu0
      %v1224 = vadd.f32 0.0, %v1223
      %v1225 = vpop.f32.mrb[0].mxu0
      %1226 = vdwg.mxu0
      %v1227 = vadd.f32 %v730, %v1165
      %v1228 = vadd.f32 %v733, %v1168
      %v1229 = vadd.f32 %v738, %v1173
      %v1230 = vadd.f32 %v741, %v1176
      %v1231 = vadd.f32 %v746, %v1181
      %v1232 = vadd.f32 %v749, %v1184
      %v1233 = vadd.f32 %v754, %v1189
      %v1234 = vadd.f32 %v757, %v1192
      %v1235 = vadd.f32 %v762, %v1197
      %v1236 = vadd.f32 %v765, %v1200
      %v1237 = vadd.f32 %v770, %v1205
      %v1238 = vadd.f32 %v773, %v1208
      %v1239 = vadd.f32 %v778, %v1213
      %v1240 = vadd.f32 %v781, %v1216
      %v1241 = vadd.f32 %v786, %v1221
      %v1242 = vadd.f32 %v789, %v1224
      %s1243 = scalar_lea.vmem %s2, 4
      %v1244 = vld [vmem:[%s1243] sm:$0x3]
      %v1246 = vsel %vm527, %v1244, 0
      %1248 = vmatprep.subr.bf16.mxu0 0
      %1249 = vmatpush1.bf16.msra.mxu0 %v1246
      %1250 = vmatprep.subr.bf16.mxu0 0
      %1251 = vmatpush1.bf16.msra.mxu0 0
      %1252 = vmatprep.subr.bf16.mxu0 0
      %1253 = vmatpush1.bf16.msra.mxu0 0
      %1254 = vmatprep.subr.bf16.mxu0 0
      %1255 = vmatpush1.bf16.msra.mxu0 0
      %1256 = vmatprep.subr.bf16.mxu0 0
      %1257 = vmatpush1.bf16.msra.mxu0 0
      %1258 = vmatprep.subr.bf16.mxu0 0
      %1259 = vmatpush1.bf16.msra.mxu0 0
      %1260 = vmatprep.subr.bf16.mxu0 0
      %1261 = vmatpush1.bf16.msra.mxu0 0
      %1262 = vmatprep.subr.bf16.mxu0 0
      %1263 = vmatpush1.bf16.msra.mxu0 0
      %1264 = vmatprep.subr.bf16.mxu0 0
      %1265 = vmatpush1.bf16.msra.mxu0 0
      %1266 = vmatprep.subr.bf16.mxu0 0
      %1267 = vmatpush1.bf16.msra.mxu0 0
      %1268 = vmatprep.subr.bf16.mxu0 0
      %1269 = vmatpush1.bf16.msra.mxu0 0
      %1270 = vmatprep.subr.bf16.mxu0 0
      %1271 = vmatpush1.bf16.msra.mxu0 0
      %1272 = vmatprep.subr.bf16.mxu0 0
      %1273 = vmatpush1.bf16.msra.mxu0 0
      %1274 = vmatprep.subr.bf16.mxu0 0
      %1275 = vmatpush1.bf16.msra.mxu0 0
      %1276 = vmatprep.subr.bf16.mxu0 0
      %1277 = vmatpush1.bf16.msra.mxu0 0
      %1278 = vmatprep.subr.bf16.mxu0 0
      %1279 = vmatpush1.bf16.msra.mxu0 0
      %1280 = vmatprep.mubr.bf16.mxu0 0
      %1281 = vmatmul.mubr.bf16.gmra.mrb[0].mxu0 %v1104
      %v1282 = vpop.f32.mrb[0].mxu0
      %v1283 = vadd.f32 0.0, %v1282
      %v1284 = vpop.f32.mrb[0].mxu0
      %v1285 = vpop.f32.mrb[0].mxu0
      %v1286 = vadd.f32 0.0, %v1285
      %v1287 = vpop.f32.mrb[0].mxu0
      %1288 = vmatprep.mubr.bf16.mxu0 0
      %1289 = vmatmul.mubr.bf16.gmra.mrb[0].mxu0 %v1107
      %v1290 = vpop.f32.mrb[0].mxu0
      %v1291 = vadd.f32 0.0, %v1290
      %v1292 = vpop.f32.mrb[0].mxu0
      %v1293 = vpop.f32.mrb[0].mxu0
      %v1294 = vadd.f32 0.0, %v1293
      %v1295 = vpop.f32.mrb[0].mxu0
      %1296 = vmatprep.mubr.bf16.mxu0 0
      %1297 = vmatmul.mubr.bf16.gmra.mrb[0].mxu0 %v1110
      %v1298 = vpop.f32.mrb[0].mxu0
      %v1299 = vadd.f32 0.0, %v1298
      %v1300 = vpop.f32.mrb[0].mxu0
      %v1301 = vpop.f32.mrb[0].mxu0
      %v1302 = vadd.f32 0.0, %v1301
      %v1303 = vpop.f32.mrb[0].mxu0
      %1304 = vmatprep.mubr.bf16.mxu0 0
      %1305 = vmatmul.mubr.bf16.gmra.mrb[0].mxu0 %v1113
      %v1306 = vpop.f32.mrb[0].mxu0
      %v1307 = vadd.f32 0.0, %v1306
      %v1308 = vpop.f32.mrb[0].mxu0
      %v1309 = vpop.f32.mrb[0].mxu0
      %v1310 = vadd.f32 0.0, %v1309
      %v1311 = vpop.f32.mrb[0].mxu0
      %1312 = vmatprep.mubr.bf16.mxu0 0
      %1313 = vmatmul.mubr.bf16.gmra.mrb[0].mxu0 %v1116
      %v1314 = vpop.f32.mrb[0].mxu0
      %v1315 = vadd.f32 0.0, %v1314
      %v1316 = vpop.f32.mrb[0].mxu0
      %v1317 = vpop.f32.mrb[0].mxu0
      %v1318 = vadd.f32 0.0, %v1317
      %v1319 = vpop.f32.mrb[0].mxu0
      %1320 = vmatprep.mubr.bf16.mxu0 0
      %1321 = vmatmul.mubr.bf16.gmra.mrb[0].mxu0 %v1119
      %v1322 = vpop.f32.mrb[0].mxu0
      %v1323 = vadd.f32 0.0, %v1322
      %v1324 = vpop.f32.mrb[0].mxu0
      %v1325 = vpop.f32.mrb[0].mxu0
      %v1326 = vadd.f32 0.0, %v1325
      %v1327 = vpop.f32.mrb[0].mxu0
      %1328 = vmatprep.mubr.bf16.mxu0 0
      %1329 = vmatmul.mubr.bf16.gmra.mrb[0].mxu0 %v1122
      %v1330 = vpop.f32.mrb[0].mxu0
      %v1331 = vadd.f32 0.0, %v1330
      %v1332 = vpop.f32.mrb[0].mxu0
      %v1333 = vpop.f32.mrb[0].mxu0
      %v1334 = vadd.f32 0.0, %v1333
      %v1335 = vpop.f32.mrb[0].mxu0
      %1336 = vmatprep.mubr.bf16.mxu0 0
      %1337 = vmatmul.mubr.bf16.gmra.mrb[0].mxu0 %v1125
      %v1338 = vpop.f32.mrb[0].mxu0
      %v1339 = vadd.f32 0.0, %v1338
      %v1340 = vpop.f32.mrb[0].mxu0
      %v1341 = vpop.f32.mrb[0].mxu0
      %v1342 = vadd.f32 0.0, %v1341
      %v1343 = vpop.f32.mrb[0].mxu0
      %1344 = vdwg.mxu0
      %v1345 = vadd.f32 %v932, %v1283
      %v1346 = vadd.f32 %v935, %v1286
      %v1347 = vadd.f32 %v940, %v1291
      %v1348 = vadd.f32 %v943, %v1294
      %v1349 = vadd.f32 %v948, %v1299
      %v1350 = vadd.f32 %v951, %v1302
      %v1351 = vadd.f32 %v956, %v1307
      %v1352 = vadd.f32 %v959, %v1310
      %v1353 = vadd.f32 %v964, %v1315
      %v1354 = vadd.f32 %v967, %v1318
      %v1355 = vadd.f32 %v972, %v1323
      %v1356 = vadd.f32 %v975, %v1326
      %v1357 = vadd.f32 %v980, %v1331
      %v1358 = vadd.f32 %v983, %v1334
      %v1359 = vadd.f32 %v988, %v1339
      %v1360 = vadd.f32 %v991, %v1342
      %s1361 = sadd.s32 %s251, 1
      %s1362 = smul.u32 %s1361, 3
      %s1363 = smul.addr %s1362, 4
      %s1364 = scalar_lea.vmem %s238, %s1363
      %v1365 = vld [vmem:[%s1364] sm:$0xf]
      %v1366 = vld [vmem:[%s1364 + $0x4] sm:$0xf]
      %v1367 = vld [vmem:[%s1364 + $0xc] sm:$0xf]
      %v1368 = vld [vmem:[%s1364 + $0x10] sm:$0xf]
      %v1369 = vld [vmem:[%s1364 + $0x18] sm:$0xf]
      %v1370 = vld [vmem:[%s1364 + $0x1c] sm:$0xf]
      %v1371 = vld [vmem:[%s1364 + $0x24] sm:$0xf]
      %v1372 = vld [vmem:[%s1364 + $0x28] sm:$0xf]
      %v1373 = vld [vmem:[%s1364 + $0x30] sm:$0xf]
      %v1374 = vld [vmem:[%s1364 + $0x34] sm:$0xf]
      %v1375 = vld [vmem:[%s1364 + $0x3c] sm:$0xf]
      %v1376 = vld [vmem:[%s1364 + $0x40] sm:$0xf]
      %v1377 = vld [vmem:[%s1364 + $0x48] sm:$0xf]
      %v1378 = vld [vmem:[%s1364 + $0x4c] sm:$0xf]
      %v1379 = vld [vmem:[%s1364 + $0x54] sm:$0xf]
      %v1380 = vld [vmem:[%s1364 + $0x58] sm:$0xf]
      %s1381 = scalar_lea.vmem %s1, 6
      %v1382 = vld [vmem:[%s1381] sm:$0x3]
      %v1399 = vunpack.c.l.b16 %v1365
      %v1400 = vunpack.c.l.b16 %v1366
      %v1401 = vunpack.c.l.b16 %v1367
      %v1402 = vunpack.c.l.b16 %v1368
      %v1403 = vunpack.c.l.b16 %v1369
      %v1404 = vunpack.c.l.b16 %v1370
      %v1405 = vunpack.c.l.b16 %v1371
      %v1406 = vunpack.c.l.b16 %v1372
      %v1407 = vunpack.c.l.b16 %v1373
      %v1408 = vunpack.c.l.b16 %v1374
      %v1409 = vunpack.c.l.b16 %v1375
      %v1410 = vunpack.c.l.b16 %v1376
      %v1411 = vunpack.c.l.b16 %v1377
      %v1412 = vunpack.c.l.b16 %v1378
      %v1413 = vunpack.c.l.b16 %v1379
      %v1414 = vunpack.c.l.b16 %v1380
      %v1415 = vpack.c.b16 %v1400, %v1399
      %v1416 = vpack.c.b16 %v1402, %v1401
      %v1417 = vpack.c.b16 %v1404, %v1403
      %v1418 = vpack.c.b16 %v1406, %v1405
      %v1419 = vpack.c.b16 %v1408, %v1407
      %v1420 = vpack.c.b16 %v1410, %v1409
      %v1421 = vpack.c.b16 %v1412, %v1411
      %v1422 = vpack.c.b16 %v1414, %v1413
      %v1424 = vsel %vm502, %v1415, 0
      %v1427 = vsel %vm502, %v1416, 0
      %v1430 = vsel %vm502, %v1417, 0
      %v1433 = vsel %vm502, %v1418, 0
      %v1436 = vsel %vm502, %v1419, 0
      %v1439 = vsel %vm502, %v1420, 0
      %v1442 = vsel %vm502, %v1421, 0
      %v1445 = vsel %vm502, %v1422, 0
      %v1448 = vsel %vm527, %v1382, 0
      %1450 = vmatprep.subr.bf16.mxu0 0
      %1451 = vmatpush1.bf16.msra.mxu0 %v1448
      %1452 = vmatprep.subr.bf16.mxu0 0
      %1453 = vmatpush1.bf16.msra.mxu0 0
      %1454 = vmatprep.subr.bf16.mxu0 0
      %1455 = vmatpush1.bf16.msra.mxu0 0
      %1456 = vmatprep.subr.bf16.mxu0 0
      %1457 = vmatpush1.bf16.msra.mxu0 0
      %1458 = vmatprep.subr.bf16.mxu0 0
      %1459 = vmatpush1.bf16.msra.mxu0 0
      %1460 = vmatprep.subr.bf16.mxu0 0
      %1461 = vmatpush1.bf16.msra.mxu0 0
      %1462 = vmatprep.subr.bf16.mxu0 0
      %1463 = vmatpush1.bf16.msra.mxu0 0
      %1464 = vmatprep.subr.bf16.mxu0 0
      %1465 = vmatpush1.bf16.msra.mxu0 0
      %1466 = vmatprep.subr.bf16.mxu0 0
      %1467 = vmatpush1.bf16.msra.mxu0 0
      %1468 = vmatprep.subr.bf16.mxu0 0
      %1469 = vmatpush1.bf16.msra.mxu0 0
      %1470 = vmatprep.subr.bf16.mxu0 0
      %1471 = vmatpush1.bf16.msra.mxu0 0
      %1472 = vmatprep.subr.bf16.mxu0 0
      %1473 = vmatpush1.bf16.msra.mxu0 0
      %1474 = vmatprep.subr.bf16.mxu0 0
      %1475 = vmatpush1.bf16.msra.mxu0 0
      %1476 = vmatprep.subr.bf16.mxu0 0
      %1477 = vmatpush1.bf16.msra.mxu0 0
      %1478 = vmatprep.subr.bf16.mxu0 0
      %1479 = vmatpush1.bf16.msra.mxu0 0
      %1480 = vmatprep.subr.bf16.mxu0 0
      %1481 = vmatpush1.bf16.msra.mxu0 0
      %1482 = vmatprep.mubr.bf16.mxu0 0
      %1483 = vmatmul.mubr.bf16.gmra.mrb[0].mxu0 %v1424
      %v1484 = vpop.f32.mrb[0].mxu0
      %v1485 = vadd.f32 0.0, %v1484
      %v1486 = vpop.f32.mrb[0].mxu0
      %v1487 = vpop.f32.mrb[0].mxu0
      %v1488 = vadd.f32 0.0, %v1487
      %v1489 = vpop.f32.mrb[0].mxu0
      %1490 = vmatprep.mubr.bf16.mxu0 0
      %1491 = vmatmul.mubr.bf16.gmra.mrb[0].mxu0 %v1427
      %v1492 = vpop.f32.mrb[0].mxu0
      %v1493 = vadd.f32 0.0, %v1492
      %v1494 = vpop.f32.mrb[0].mxu0
      %v1495 = vpop.f32.mrb[0].mxu0
      %v1496 = vadd.f32 0.0, %v1495
      %v1497 = vpop.f32.mrb[0].mxu0
      %1498 = vmatprep.mubr.bf16.mxu0 0
      %1499 = vmatmul.mubr.bf16.gmra.mrb[0].mxu0 %v1430
      %v1500 = vpop.f32.mrb[0].mxu0
      %v1501 = vadd.f32 0.0, %v1500
      %v1502 = vpop.f32.mrb[0].mxu0
      %v1503 = vpop.f32.mrb[0].mxu0
      %v1504 = vadd.f32 0.0, %v1503
      %v1505 = vpop.f32.mrb[0].mxu0
      %1506 = vmatprep.mubr.bf16.mxu0 0
      %1507 = vmatmul.mubr.bf16.gmra.mrb[0].mxu0 %v1433
      %v1508 = vpop.f32.mrb[0].mxu0
      %v1509 = vadd.f32 0.0, %v1508
      %v1510 = vpop.f32.mrb[0].mxu0
      %v1511 = vpop.f32.mrb[0].mxu0
      %v1512 = vadd.f32 0.0, %v1511
      %v1513 = vpop.f32.mrb[0].mxu0
      %1514 = vmatprep.mubr.bf16.mxu0 0
      %1515 = vmatmul.mubr.bf16.gmra.mrb[0].mxu0 %v1436
      %v1516 = vpop.f32.mrb[0].mxu0
      %v1517 = vadd.f32 0.0, %v1516
      %v1518 = vpop.f32.mrb[0].mxu0
      %v1519 = vpop.f32.mrb[0].mxu0
      %v1520 = vadd.f32 0.0, %v1519
      %v1521 = vpop.f32.mrb[0].mxu0
      %1522 = vmatprep.mubr.bf16.mxu0 0
      %1523 = vmatmul.mubr.bf16.gmra.mrb[0].mxu0 %v1439
      %v1524 = vpop.f32.mrb[0].mxu0
      %v1525 = vadd.f32 0.0, %v1524
      %v1526 = vpop.f32.mrb[0].mxu0
      %v1527 = vpop.f32.mrb[0].mxu0
      %v1528 = vadd.f32 0.0, %v1527
      %v1529 = vpop.f32.mrb[0].mxu0
      %1530 = vmatprep.mubr.bf16.mxu0 0
      %1531 = vmatmul.mubr.bf16.gmra.mrb[0].mxu0 %v1442
      %v1532 = vpop.f32.mrb[0].mxu0
      %v1533 = vadd.f32 0.0, %v1532
      %v1534 = vpop.f32.mrb[0].mxu0
      %v1535 = vpop.f32.mrb[0].mxu0
      %v1536 = vadd.f32 0.0, %v1535
      %v1537 = vpop.f32.mrb[0].mxu0
      %1538 = vmatprep.mubr.bf16.mxu0 0
      %1539 = vmatmul.mubr.bf16.gmra.mrb[0].mxu0 %v1445
      %v1540 = vpop.f32.mrb[0].mxu0
      %v1541 = vadd.f32 0.0, %v1540
      %v1542 = vpop.f32.mrb[0].mxu0
      %v1543 = vpop.f32.mrb[0].mxu0
      %v1544 = vadd.f32 0.0, %v1543
      %v1545 = vpop.f32.mrb[0].mxu0
      %1546 = vdwg.mxu0
      %v1547 = vadd.f32 %v1227, %v1485
      %v1548 = vadd.f32 %v1228, %v1488
      %v1549 = vadd.f32 %v1229, %v1493
      %v1550 = vadd.f32 %v1230, %v1496
      %v1551 = vadd.f32 %v1231, %v1501
      %v1552 = vadd.f32 %v1232, %v1504
      %v1553 = vadd.f32 %v1233, %v1509
      %v1554 = vadd.f32 %v1234, %v1512
      %v1555 = vadd.f32 %v1235, %v1517
      %v1556 = vadd.f32 %v1236, %v1520
      %v1557 = vadd.f32 %v1237, %v1525
      %v1558 = vadd.f32 %v1238, %v1528
      %v1559 = vadd.f32 %v1239, %v1533
      %v1560 = vadd.f32 %v1240, %v1536
      %v1561 = vadd.f32 %v1241, %v1541
      %v1562 = vadd.f32 %v1242, %v1544
      %s1563 = scalar_lea.vmem %s2, 6
      %v1564 = vld [vmem:[%s1563] sm:$0x3]
      %v1566 = vsel %vm527, %v1564, 0
      %1568 = vmatprep.subr.bf16.mxu0 0
      %1569 = vmatpush1.bf16.msra.mxu0 %v1566
      %1570 = vmatprep.subr.bf16.mxu0 0
      %1571 = vmatpush1.bf16.msra.mxu0 0
      %1572 = vmatprep.subr.bf16.mxu0 0
      %1573 = vmatpush1.bf16.msra.mxu0 0
      %1574 = vmatprep.subr.bf16.mxu0 0
      %1575 = vmatpush1.bf16.msra.mxu0 0
      %1576 = vmatprep.subr.bf16.mxu0 0
      %1577 = vmatpush1.bf16.msra.mxu0 0
      %1578 = vmatprep.subr.bf16.mxu0 0
      %1579 = vmatpush1.bf16.msra.mxu0 0
      %1580 = vmatprep.subr.bf16.mxu0 0
      %1581 = vmatpush1.bf16.msra.mxu0 0
      %1582 = vmatprep.subr.bf16.mxu0 0
      %1583 = vmatpush1.bf16.msra.mxu0 0
      %1584 = vmatprep.subr.bf16.mxu0 0
      %1585 = vmatpush1.bf16.msra.mxu0 0
      %1586 = vmatprep.subr.bf16.mxu0 0
      %1587 = vmatpush1.bf16.msra.mxu0 0
      %1588 = vmatprep.subr.bf16.mxu0 0
      %1589 = vmatpush1.bf16.msra.mxu0 0
      %1590 = vmatprep.subr.bf16.mxu0 0
      %1591 = vmatpush1.bf16.msra.mxu0 0
      %1592 = vmatprep.subr.bf16.mxu0 0
      %1593 = vmatpush1.bf16.msra.mxu0 0
      %1594 = vmatprep.subr.bf16.mxu0 0
      %1595 = vmatpush1.bf16.msra.mxu0 0
      %1596 = vmatprep.subr.bf16.mxu0 0
      %1597 = vmatpush1.bf16.msra.mxu0 0
      %1598 = vmatprep.subr.bf16.mxu0 0
      %1599 = vmatpush1.bf16.msra.mxu0 0
      %1600 = vmatprep.mubr.bf16.mxu0 0
      %1601 = vmatmul.mubr.bf16.gmra.mrb[0].mxu0 %v1424
      %v1602 = vpop.f32.mrb[0].mxu0
      %v1603 = vadd.f32 0.0, %v1602
      %v1604 = vpop.f32.mrb[0].mxu0
      %v1605 = vpop.f32.mrb[0].mxu0
      %v1606 = vadd.f32 0.0, %v1605
      %v1607 = vpop.f32.mrb[0].mxu0
      %1608 = vmatprep.mubr.bf16.mxu0 0
      %1609 = vmatmul.mubr.bf16.gmra.mrb[0].mxu0 %v1427
      %v1610 = vpop.f32.mrb[0].mxu0
      %v1611 = vadd.f32 0.0, %v1610
      %v1612 = vpop.f32.mrb[0].mxu0
      %v1613 = vpop.f32.mrb[0].mxu0
      %v1614 = vadd.f32 0.0, %v1613
      %v1615 = vpop.f32.mrb[0].mxu0
      %1616 = vmatprep.mubr.bf16.mxu0 0
      %1617 = vmatmul.mubr.bf16.gmra.mrb[0].mxu0 %v1430
      %v1618 = vpop.f32.mrb[0].mxu0
      %v1619 = vadd.f32 0.0, %v1618
      %v1620 = vpop.f32.mrb[0].mxu0
      %v1621 = vpop.f32.mrb[0].mxu0
      %v1622 = vadd.f32 0.0, %v1621
      %v1623 = vpop.f32.mrb[0].mxu0
      %1624 = vmatprep.mubr.bf16.mxu0 0
      %1625 = vmatmul.mubr.bf16.gmra.mrb[0].mxu0 %v1433
      %v1626 = vpop.f32.mrb[0].mxu0
      %v1627 = vadd.f32 0.0, %v1626
      %v1628 = vpop.f32.mrb[0].mxu0
      %v1629 = vpop.f32.mrb[0].mxu0
      %v1630 = vadd.f32 0.0, %v1629
      %v1631 = vpop.f32.mrb[0].mxu0
      %1632 = vmatprep.mubr.bf16.mxu0 0
      %1633 = vmatmul.mubr.bf16.gmra.mrb[0].mxu0 %v1436
      %v1634 = vpop.f32.mrb[0].mxu0
      %v1635 = vadd.f32 0.0, %v1634
      %v1636 = vpop.f32.mrb[0].mxu0
      %v1637 = vpop.f32.mrb[0].mxu0
      %v1638 = vadd.f32 0.0, %v1637
      %v1639 = vpop.f32.mrb[0].mxu0
      %1640 = vmatprep.mubr.bf16.mxu0 0
      %1641 = vmatmul.mubr.bf16.gmra.mrb[0].mxu0 %v1439
      %v1642 = vpop.f32.mrb[0].mxu0
      %v1643 = vadd.f32 0.0, %v1642
      %v1644 = vpop.f32.mrb[0].mxu0
      %v1645 = vpop.f32.mrb[0].mxu0
      %v1646 = vadd.f32 0.0, %v1645
      %v1647 = vpop.f32.mrb[0].mxu0
      %1648 = vmatprep.mubr.bf16.mxu0 0
      %1649 = vmatmul.mubr.bf16.gmra.mrb[0].mxu0 %v1442
      %v1650 = vpop.f32.mrb[0].mxu0
      %v1651 = vadd.f32 0.0, %v1650
      %v1652 = vpop.f32.mrb[0].mxu0
      %v1653 = vpop.f32.mrb[0].mxu0
      %v1654 = vadd.f32 0.0, %v1653
      %v1655 = vpop.f32.mrb[0].mxu0
      %1656 = vmatprep.mubr.bf16.mxu0 0
      %1657 = vmatmul.mubr.bf16.gmra.mrb[0].mxu0 %v1445
      %v1658 = vpop.f32.mrb[0].mxu0
      %v1659 = vadd.f32 0.0, %v1658
      %v1660 = vpop.f32.mrb[0].mxu0
      %v1661 = vpop.f32.mrb[0].mxu0
      %v1662 = vadd.f32 0.0, %v1661
      %v1663 = vpop.f32.mrb[0].mxu0
      %1664 = vdwg.mxu0
      %v1665 = vadd.f32 %v1345, %v1603
      %v1666 = vadd.f32 %v1346, %v1606
      %v1667 = vadd.f32 %v1347, %v1611
      %v1668 = vadd.f32 %v1348, %v1614
      %v1669 = vadd.f32 %v1349, %v1619
      %v1670 = vadd.f32 %v1350, %v1622
      %v1671 = vadd.f32 %v1351, %v1627
      %v1672 = vadd.f32 %v1352, %v1630
      %v1673 = vadd.f32 %v1353, %v1635
      %v1674 = vadd.f32 %v1354, %v1638
      %v1675 = vadd.f32 %v1355, %v1643
      %v1676 = vadd.f32 %v1356, %v1646
      %v1677 = vadd.f32 %v1357, %v1651
      %v1678 = vadd.f32 %v1358, %v1654
      %v1679 = vadd.f32 %v1359, %v1659
      %v1680 = vadd.f32 %v1360, %v1662
      %v1681 = vld [vmem:[%s1364] sm:$0xf]
      %v1682 = vld [vmem:[%s1364 + $0x4] sm:$0xf]
      %v1683 = vld [vmem:[%s1364 + $0x8] sm:$0x1]
      %v1684 = vld [vmem:[%s1364 + $0xc] sm:$0xf]
      %v1685 = vld [vmem:[%s1364 + $0x10] sm:$0xf]
      %v1686 = vld [vmem:[%s1364 + $0x14] sm:$0x1]
      %v1687 = vld [vmem:[%s1364 + $0x18] sm:$0xf]
      %v1688 = vld [vmem:[%s1364 + $0x1c] sm:$0xf]
      %v1689 = vld [vmem:[%s1364 + $0x20] sm:$0x1]
      %v1690 = vld [vmem:[%s1364 + $0x24] sm:$0xf]
      %v1691 = vld [vmem:[%s1364 + $0x28] sm:$0xf]
      %v1692 = vld [vmem:[%s1364 + $0x2c] sm:$0x1]
      %v1693 = vld [vmem:[%s1364 + $0x30] sm:$0xf]
      %v1694 = vld [vmem:[%s1364 + $0x34] sm:$0xf]
      %v1695 = vld [vmem:[%s1364 + $0x38] sm:$0x1]
      %v1696 = vld [vmem:[%s1364 + $0x3c] sm:$0xf]
      %v1697 = vld [vmem:[%s1364 + $0x40] sm:$0xf]
      %v1698 = vld [vmem:[%s1364 + $0x44] sm:$0x1]
      %v1699 = vld [vmem:[%s1364 + $0x48] sm:$0xf]
      %v1700 = vld [vmem:[%s1364 + $0x4c] sm:$0xf]
      %v1701 = vld [vmem:[%s1364 + $0x50] sm:$0x1]
      %v1702 = vld [vmem:[%s1364 + $0x54] sm:$0xf]
      %v1703 = vld [vmem:[%s1364 + $0x58] sm:$0xf]
      %v1704 = vld [vmem:[%s1364 + $0x5c] sm:$0x1]
      %v1706 = vshrl.u32 %v1681, 16
      %v1708 = vrot.slane %v1706, 4
      %v1709 = vshll.u32 %v1681, 16
      %v1711 = vrot.slane %v1709, 5
      %v1712 = vor.u32 %v1708, %v1711
      %v1713 = vrot.slane %v1712, 4
      %v1715 = vshll.u32 %v1682, 16
      %v1717 = vrot.slane %v1715, 5
      %v1718 = vsel %vm283, %v1713, %v1717
      %v1719 = vshrl.u32 %v1682, 16
      %v1721 = vrot.slane %v1719, 4
      %v1722 = vor.u32 %v1721, %v1717
      %v1723 = vrot.slane %v1722, 4
      %v1725 = vshll.u32 %v1683, 16
      %v1727 = vrot.slane %v1725, 5
      %v1728 = vsel %vm283, %v1723, %v1727
      %v1730 = vshrl.u32 %v1684, 16
      %v1732 = vrot.slane %v1730, 4
      %v1733 = vshll.u32 %v1684, 16
      %v1735 = vrot.slane %v1733, 5
      %v1736 = vor.u32 %v1732, %v1735
      %v1737 = vrot.slane %v1736, 4
      %v1739 = vshll.u32 %v1685, 16
      %v1741 = vrot.slane %v1739, 5
      %v1742 = vsel %vm283, %v1737, %v1741
      %v1743 = vshrl.u32 %v1685, 16
      %v1745 = vrot.slane %v1743, 4
      %v1746 = vor.u32 %v1745, %v1741
      %v1747 = vrot.slane %v1746, 4
      %v1749 = vshll.u32 %v1686, 16
      %v1751 = vrot.slane %v1749, 5
      %v1752 = vsel %vm283, %v1747, %v1751
      %v1754 = vshrl.u32 %v1687, 16
      %v1756 = vrot.slane %v1754, 4
      %v1757 = vshll.u32 %v1687, 16
      %v1759 = vrot.slane %v1757, 5
      %v1760 = vor.u32 %v1756, %v1759
      %v1761 = vrot.slane %v1760, 4
      %v1763 = vshll.u32 %v1688, 16
      %v1765 = vrot.slane %v1763, 5
      %v1766 = vsel %vm283, %v1761, %v1765
      %v1767 = vshrl.u32 %v1688, 16
      %v1769 = vrot.slane %v1767, 4
      %v1770 = vor.u32 %v1769, %v1765
      %v1771 = vrot.slane %v1770, 4
      %v1773 = vshll.u32 %v1689, 16
      %v1775 = vrot.slane %v1773, 5
      %v1776 = vsel %vm283, %v1771, %v1775
      %v1778 = vshrl.u32 %v1690, 16
      %v1780 = vrot.slane %v1778, 4
      %v1781 = vshll.u32 %v1690, 16
      %v1783 = vrot.slane %v1781, 5
      %v1784 = vor.u32 %v1780, %v1783
      %v1785 = vrot.slane %v1784, 4
      %v1787 = vshll.u32 %v1691, 16
      %v1789 = vrot.slane %v1787, 5
      %v1790 = vsel %vm283, %v1785, %v1789
      %v1791 = vshrl.u32 %v1691, 16
      %v1793 = vrot.slane %v1791, 4
      %v1794 = vor.u32 %v1793, %v1789
      %v1795 = vrot.slane %v1794, 4
      %v1797 = vshll.u32 %v1692, 16
      %v1799 = vrot.slane %v1797, 5
      %v1800 = vsel %vm283, %v1795, %v1799
      %v1802 = vshrl.u32 %v1693, 16
      %v1804 = vrot.slane %v1802, 4
      %v1805 = vshll.u32 %v1693, 16
      %v1807 = vrot.slane %v1805, 5
      %v1808 = vor.u32 %v1804, %v1807
      %v1809 = vrot.slane %v1808, 4
      %v1811 = vshll.u32 %v1694, 16
      %v1813 = vrot.slane %v1811, 5
      %v1814 = vsel %vm283, %v1809, %v1813
      %v1815 = vshrl.u32 %v1694, 16
      %v1817 = vrot.slane %v1815, 4
      %v1818 = vor.u32 %v1817, %v1813
      %v1819 = vrot.slane %v1818, 4
      %v1821 = vshll.u32 %v1695, 16
      %v1823 = vrot.slane %v1821, 5
      %v1824 = vsel %vm283, %v1819, %v1823
      %v1826 = vshrl.u32 %v1696, 16
      %v1828 = vrot.slane %v1826, 4
      %v1829 = vshll.u32 %v1696, 16
      %v1831 = vrot.slane %v1829, 5
      %v1832 = vor.u32 %v1828, %v1831
      %v1833 = vrot.slane %v1832, 4
      %v1835 = vshll.u32 %v1697, 16
      %v1837 = vrot.slane %v1835, 5
      %v1838 = vsel %vm283, %v1833, %v1837
      %v1839 = vshrl.u32 %v1697, 16
      %v1841 = vrot.slane %v1839, 4
      %v1842 = vor.u32 %v1841, %v1837
      %v1843 = vrot.slane %v1842, 4
      %v1845 = vshll.u32 %v1698, 16
      %v1847 = vrot.slane %v1845, 5
      %v1848 = vsel %vm283, %v1843, %v1847
      %v1850 = vshrl.u32 %v1699, 16
      %v1852 = vrot.slane %v1850, 4
      %v1853 = vshll.u32 %v1699, 16
      %v1855 = vrot.slane %v1853, 5
      %v1856 = vor.u32 %v1852, %v1855
      %v1857 = vrot.slane %v1856, 4
      %v1859 = vshll.u32 %v1700, 16
      %v1861 = vrot.slane %v1859, 5
      %v1862 = vsel %vm283, %v1857, %v1861
      %v1863 = vshrl.u32 %v1700, 16
      %v1865 = vrot.slane %v1863, 4
      %v1866 = vor.u32 %v1865, %v1861
      %v1867 = vrot.slane %v1866, 4
      %v1869 = vshll.u32 %v1701, 16
      %v1871 = vrot.slane %v1869, 5
      %v1872 = vsel %vm283, %v1867, %v1871
      %v1874 = vshrl.u32 %v1702, 16
      %v1876 = vrot.slane %v1874, 4
      %v1877 = vshll.u32 %v1702, 16
      %v1879 = vrot.slane %v1877, 5
      %v1880 = vor.u32 %v1876, %v1879
      %v1881 = vrot.slane %v1880, 4
      %v1883 = vshll.u32 %v1703, 16
      %v1885 = vrot.slane %v1883, 5
      %v1886 = vsel %vm283, %v1881, %v1885
      %v1887 = vshrl.u32 %v1703, 16
      %v1889 = vrot.slane %v1887, 4
      %v1890 = vor.u32 %v1889, %v1885
      %v1891 = vrot.slane %v1890, 4
      %v1893 = vshll.u32 %v1704, 16
      %v1895 = vrot.slane %v1893, 5
      %v1896 = vsel %vm283, %v1891, %v1895
      %s1897 = scalar_lea.vmem %s1, 8
      %v1898 = vld [vmem:[%s1897] sm:$0x3]
      %v1899 = vunpack.c.l.b16 %v1718
      %v1900 = vunpack.c.l.b16 %v1728
      %v1901 = vunpack.c.l.b16 %v1742
      %v1902 = vunpack.c.l.b16 %v1752
      %v1903 = vunpack.c.l.b16 %v1766
      %v1904 = vunpack.c.l.b16 %v1776
      %v1905 = vunpack.c.l.b16 %v1790
      %v1906 = vunpack.c.l.b16 %v1800
      %v1907 = vunpack.c.l.b16 %v1814
      %v1908 = vunpack.c.l.b16 %v1824
      %v1909 = vunpack.c.l.b16 %v1838
      %v1910 = vunpack.c.l.b16 %v1848
      %v1911 = vunpack.c.l.b16 %v1862
      %v1912 = vunpack.c.l.b16 %v1872
      %v1913 = vunpack.c.l.b16 %v1886
      %v1914 = vunpack.c.l.b16 %v1896
      %v1915 = vpack.c.b16 %v1900, %v1899
      %v1916 = vpack.c.b16 %v1902, %v1901
      %v1917 = vpack.c.b16 %v1904, %v1903
      %v1918 = vpack.c.b16 %v1906, %v1905
      %v1919 = vpack.c.b16 %v1908, %v1907
      %v1920 = vpack.c.b16 %v1910, %v1909
      %v1921 = vpack.c.b16 %v1912, %v1911
      %v1922 = vpack.c.b16 %v1914, %v1913
      %v1924 = vsel %vm502, %v1915, 0
      %v1927 = vsel %vm502, %v1916, 0
      %v1930 = vsel %vm502, %v1917, 0
      %v1933 = vsel %vm502, %v1918, 0
      %v1936 = vsel %vm502, %v1919, 0
      %v1939 = vsel %vm502, %v1920, 0
      %v1942 = vsel %vm502, %v1921, 0
      %v1945 = vsel %vm502, %v1922, 0
      %v1948 = vsel %vm527, %v1898, 0
      %1950 = vmatprep.subr.bf16.mxu0 0
      %1951 = vmatpush1.bf16.msra.mxu0 %v1948
      %1952 = vmatprep.subr.bf16.mxu0 0
      %1953 = vmatpush1.bf16.msra.mxu0 0
      %1954 = vmatprep.subr.bf16.mxu0 0
      %1955 = vmatpush1.bf16.msra.mxu0 0
      %1956 = vmatprep.subr.bf16.mxu0 0
      %1957 = vmatpush1.bf16.msra.mxu0 0
      %1958 = vmatprep.subr.bf16.mxu0 0
      %1959 = vmatpush1.bf16.msra.mxu0 0
      %1960 = vmatprep.subr.bf16.mxu0 0
      %1961 = vmatpush1.bf16.msra.mxu0 0
      %1962 = vmatprep.subr.bf16.mxu0 0
      %1963 = vmatpush1.bf16.msra.mxu0 0
      %1964 = vmatprep.subr.bf16.mxu0 0
      %1965 = vmatpush1.bf16.msra.mxu0 0
      %1966 = vmatprep.subr.bf16.mxu0 0
      %1967 = vmatpush1.bf16.msra.mxu0 0
      %1968 = vmatprep.subr.bf16.mxu0 0
      %1969 = vmatpush1.bf16.msra.mxu0 0
      %1970 = vmatprep.subr.bf16.mxu0 0
      %1971 = vmatpush1.bf16.msra.mxu0 0
      %1972 = vmatprep.subr.bf16.mxu0 0
      %1973 = vmatpush1.bf16.msra.mxu0 0
      %1974 = vmatprep.subr.bf16.mxu0 0
      %1975 = vmatpush1.bf16.msra.mxu0 0
      %1976 = vmatprep.subr.bf16.mxu0 0
      %1977 = vmatpush1.bf16.msra.mxu0 0
      %1978 = vmatprep.subr.bf16.mxu0 0
      %1979 = vmatpush1.bf16.msra.mxu0 0
      %1980 = vmatprep.subr.bf16.mxu0 0
      %1981 = vmatpush1.bf16.msra.mxu0 0
      %1982 = vmatprep.mubr.bf16.mxu0 0
      %1983 = vmatmul.mubr.bf16.gmra.mrb[0].mxu0 %v1924
      %v1984 = vpop.f32.mrb[0].mxu0
      %v1985 = vadd.f32 0.0, %v1984
      %v1986 = vpop.f32.mrb[0].mxu0
      %v1987 = vpop.f32.mrb[0].mxu0
      %v1988 = vadd.f32 0.0, %v1987
      %v1989 = vpop.f32.mrb[0].mxu0
      %1990 = vmatprep.mubr.bf16.mxu0 0
      %1991 = vmatmul.mubr.bf16.gmra.mrb[0].mxu0 %v1927
      %v1992 = vpop.f32.mrb[0].mxu0
      %v1993 = vadd.f32 0.0, %v1992
      %v1994 = vpop.f32.mrb[0].mxu0
      %v1995 = vpop.f32.mrb[0].mxu0
      %v1996 = vadd.f32 0.0, %v1995
      %v1997 = vpop.f32.mrb[0].mxu0
      %1998 = vmatprep.mubr.bf16.mxu0 0
      %1999 = vmatmul.mubr.bf16.gmra.mrb[0].mxu0 %v1930
      %v2000 = vpop.f32.mrb[0].mxu0
      %v2001 = vadd.f32 0.0, %v2000
      %v2002 = vpop.f32.mrb[0].mxu0
      %v2003 = vpop.f32.mrb[0].mxu0
      %v2004 = vadd.f32 0.0, %v2003
      %v2005 = vpop.f32.mrb[0].mxu0
      %2006 = vmatprep.mubr.bf16.mxu0 0
      %2007 = vmatmul.mubr.bf16.gmra.mrb[0].mxu0 %v1933
      %v2008 = vpop.f32.mrb[0].mxu0
      %v2009 = vadd.f32 0.0, %v2008
      %v2010 = vpop.f32.mrb[0].mxu0
      %v2011 = vpop.f32.mrb[0].mxu0
      %v2012 = vadd.f32 0.0, %v2011
      %v2013 = vpop.f32.mrb[0].mxu0
      %2014 = vmatprep.mubr.bf16.mxu0 0
      %2015 = vmatmul.mubr.bf16.gmra.mrb[0].mxu0 %v1936
      %v2016 = vpop.f32.mrb[0].mxu0
      %v2017 = vadd.f32 0.0, %v2016
      %v2018 = vpop.f32.mrb[0].mxu0
      %v2019 = vpop.f32.mrb[0].mxu0
      %v2020 = vadd.f32 0.0, %v2019
      %v2021 = vpop.f32.mrb[0].mxu0
      %2022 = vmatprep.mubr.bf16.mxu0 0
      %2023 = vmatmul.mubr.bf16.gmra.mrb[0].mxu0 %v1939
      %v2024 = vpop.f32.mrb[0].mxu0
      %v2025 = vadd.f32 0.0, %v2024
      %v2026 = vpop.f32.mrb[0].mxu0
      %v2027 = vpop.f32.mrb[0].mxu0
      %v2028 = vadd.f32 0.0, %v2027
      %v2029 = vpop.f32.mrb[0].mxu0
      %2030 = vmatprep.mubr.bf16.mxu0 0
      %2031 = vmatmul.mubr.bf16.gmra.mrb[0].mxu0 %v1942
      %v2032 = vpop.f32.mrb[0].mxu0
      %v2033 = vadd.f32 0.0, %v2032
      %v2034 = vpop.f32.mrb[0].mxu0
      %v2035 = vpop.f32.mrb[0].mxu0
      %v2036 = vadd.f32 0.0, %v2035
      %v2037 = vpop.f32.mrb[0].mxu0
      %2038 = vmatprep.mubr.bf16.mxu0 0
      %2039 = vmatmul.mubr.bf16.gmra.mrb[0].mxu0 %v1945
      %v2040 = vpop.f32.mrb[0].mxu0
      %v2041 = vadd.f32 0.0, %v2040
      %v2042 = vpop.f32.mrb[0].mxu0
      %v2043 = vpop.f32.mrb[0].mxu0
      %v2044 = vadd.f32 0.0, %v2043
      %v2045 = vpop.f32.mrb[0].mxu0
      %2046 = vdwg.mxu0
      %v2047 = vadd.f32 %v1547, %v1985
      %v2048 = vadd.f32 %v1548, %v1988
      %v2049 = vadd.f32 %v1549, %v1993
      %v2050 = vadd.f32 %v1550, %v1996
      %v2051 = vadd.f32 %v1551, %v2001
      %v2052 = vadd.f32 %v1552, %v2004
      %v2053 = vadd.f32 %v1553, %v2009
      %v2054 = vadd.f32 %v1554, %v2012
      %v2055 = vadd.f32 %v1555, %v2017
      %v2056 = vadd.f32 %v1556, %v2020
      %v2057 = vadd.f32 %v1557, %v2025
      %v2058 = vadd.f32 %v1558, %v2028
      %v2059 = vadd.f32 %v1559, %v2033
      %v2060 = vadd.f32 %v1560, %v2036
      %v2061 = vadd.f32 %v1561, %v2041
      %v2062 = vadd.f32 %v1562, %v2044
      %s2063 = scalar_lea.vmem %s2, 8
      %v2064 = vld [vmem:[%s2063] sm:$0x3]
      %v2066 = vsel %vm527, %v2064, 0
      %2068 = vmatprep.subr.bf16.mxu0 0
      %2069 = vmatpush1.bf16.msra.mxu0 %v2066
      %2070 = vmatprep.subr.bf16.mxu0 0
      %2071 = vmatpush1.bf16.msra.mxu0 0
      %2072 = vmatprep.subr.bf16.mxu0 0
      %2073 = vmatpush1.bf16.msra.mxu0 0
      %2074 = vmatprep.subr.bf16.mxu0 0
      %2075 = vmatpush1.bf16.msra.mxu0 0
      %2076 = vmatprep.subr.bf16.mxu0 0
      %2077 = vmatpush1.bf16.msra.mxu0 0
      %2078 = vmatprep.subr.bf16.mxu0 0
      %2079 = vmatpush1.bf16.msra.mxu0 0
      %2080 = vmatprep.subr.bf16.mxu0 0
      %2081 = vmatpush1.bf16.msra.mxu0 0
      %2082 = vmatprep.subr.bf16.mxu0 0
      %2083 = vmatpush1.bf16.msra.mxu0 0
      %2084 = vmatprep.subr.bf16.mxu0 0
      %2085 = vmatpush1.bf16.msra.mxu0 0
      %2086 = vmatprep.subr.bf16.mxu0 0
      %2087 = vmatpush1.bf16.msra.mxu0 0
      %2088 = vmatprep.subr.bf16.mxu0 0
      %2089 = vmatpush1.bf16.msra.mxu0 0
      %2090 = vmatprep.subr.bf16.mxu0 0
      %2091 = vmatpush1.bf16.msra.mxu0 0
      %2092 = vmatprep.subr.bf16.mxu0 0
      %2093 = vmatpush1.bf16.msra.mxu0 0
      %2094 = vmatprep.subr.bf16.mxu0 0
      %2095 = vmatpush1.bf16.msra.mxu0 0
      %2096 = vmatprep.subr.bf16.mxu0 0
      %2097 = vmatpush1.bf16.msra.mxu0 0
      %2098 = vmatprep.subr.bf16.mxu0 0
      %2099 = vmatpush1.bf16.msra.mxu0 0
      %2100 = vmatprep.mubr.bf16.mxu0 0
      %2101 = vmatmul.mubr.bf16.gmra.mrb[0].mxu0 %v1924
      %v2102 = vpop.f32.mrb[0].mxu0
      %v2103 = vadd.f32 0.0, %v2102
      %v2104 = vpop.f32.mrb[0].mxu0
      %v2105 = vpop.f32.mrb[0].mxu0
      %v2106 = vadd.f32 0.0, %v2105
      %v2107 = vpop.f32.mrb[0].mxu0
      %2108 = vmatprep.mubr.bf16.mxu0 0
      %2109 = vmatmul.mubr.bf16.gmra.mrb[0].mxu0 %v1927
      %v2110 = vpop.f32.mrb[0].mxu0
      %v2111 = vadd.f32 0.0, %v2110
      %v2112 = vpop.f32.mrb[0].mxu0
      %v2113 = vpop.f32.mrb[0].mxu0
      %v2114 = vadd.f32 0.0, %v2113
      %v2115 = vpop.f32.mrb[0].mxu0
      %2116 = vmatprep.mubr.bf16.mxu0 0
      %2117 = vmatmul.mubr.bf16.gmra.mrb[0].mxu0 %v1930
      %v2118 = vpop.f32.mrb[0].mxu0
      %v2119 = vadd.f32 0.0, %v2118
      %v2120 = vpop.f32.mrb[0].mxu0
      %v2121 = vpop.f32.mrb[0].mxu0
      %v2122 = vadd.f32 0.0, %v2121
      %v2123 = vpop.f32.mrb[0].mxu0
      %2124 = vmatprep.mubr.bf16.mxu0 0
      %2125 = vmatmul.mubr.bf16.gmra.mrb[0].mxu0 %v1933
      %v2126 = vpop.f32.mrb[0].mxu0
      %v2127 = vadd.f32 0.0, %v2126
      %v2128 = vpop.f32.mrb[0].mxu0
      %v2129 = vpop.f32.mrb[0].mxu0
      %v2130 = vadd.f32 0.0, %v2129
      %v2131 = vpop.f32.mrb[0].mxu0
      %2132 = vmatprep.mubr.bf16.mxu0 0
      %2133 = vmatmul.mubr.bf16.gmra.mrb[0].mxu0 %v1936
      %v2134 = vpop.f32.mrb[0].mxu0
      %v2135 = vadd.f32 0.0, %v2134
      %v2136 = vpop.f32.mrb[0].mxu0
      %v2137 = vpop.f32.mrb[0].mxu0
      %v2138 = vadd.f32 0.0, %v2137
      %v2139 = vpop.f32.mrb[0].mxu0
      %2140 = vmatprep.mubr.bf16.mxu0 0
      %2141 = vmatmul.mubr.bf16.gmra.mrb[0].mxu0 %v1939
      %v2142 = vpop.f32.mrb[0].mxu0
      %v2143 = vadd.f32 0.0, %v2142
      %v2144 = vpop.f32.mrb[0].mxu0
      %v2145 = vpop.f32.mrb[0].mxu0
      %v2146 = vadd.f32 0.0, %v2145
      %v2147 = vpop.f32.mrb[0].mxu0
      %2148 = vmatprep.mubr.bf16.mxu0 0
      %2149 = vmatmul.mubr.bf16.gmra.mrb[0].mxu0 %v1942
      %v2150 = vpop.f32.mrb[0].mxu0
      %v2151 = vadd.f32 0.0, %v2150
      %v2152 = vpop.f32.mrb[0].mxu0
      %v2153 = vpop.f32.mrb[0].mxu0
      %v2154 = vadd.f32 0.0, %v2153
      %v2155 = vpop.f32.mrb[0].mxu0
      %2156 = vmatprep.mubr.bf16.mxu0 0
      %2157 = vmatmul.mubr.bf16.gmra.mrb[0].mxu0 %v1945
      %v2158 = vpop.f32.mrb[0].mxu0
      %v2159 = vadd.f32 0.0, %v2158
      %v2160 = vpop.f32.mrb[0].mxu0
      %v2161 = vpop.f32.mrb[0].mxu0
      %v2162 = vadd.f32 0.0, %v2161
      %v2163 = vpop.f32.mrb[0].mxu0
      %2164 = vdwg.mxu0
      %v2165 = vadd.f32 %v1665, %v2103
      %v2166 = vadd.f32 %v1666, %v2106
      %v2167 = vadd.f32 %v1667, %v2111
      %v2168 = vadd.f32 %v1668, %v2114
      %v2169 = vadd.f32 %v1669, %v2119
      %v2170 = vadd.f32 %v1670, %v2122
      %v2171 = vadd.f32 %v1671, %v2127
      %v2172 = vadd.f32 %v1672, %v2130
      %v2173 = vadd.f32 %v1673, %v2135
      %v2174 = vadd.f32 %v1674, %v2138
      %v2175 = vadd.f32 %v1675, %v2143
      %v2176 = vadd.f32 %v1676, %v2146
      %v2177 = vadd.f32 %v1677, %v2151
      %v2178 = vadd.f32 %v1678, %v2154
      %v2179 = vadd.f32 %v1679, %v2159
      %v2180 = vadd.f32 %v1680, %v2162
      %v2181 = vld [vmem:[%s1364] sm:$0xe]
      %v2182 = vld [vmem:[%s1364 + $0xc] sm:$0xe]
      %v2183 = vld [vmem:[%s1364 + $0x18] sm:$0xe]
      %v2184 = vld [vmem:[%s1364 + $0x24] sm:$0xe]
      %v2185 = vld [vmem:[%s1364 + $0x30] sm:$0xe]
      %v2186 = vld [vmem:[%s1364 + $0x3c] sm:$0xe]
      %v2187 = vld [vmem:[%s1364 + $0x48] sm:$0xe]
      %v2188 = vld [vmem:[%s1364 + $0x54] sm:$0xe]
      %v2213 = vrot.slane %v2181, 5
      %v2214 = vrot.slane %v2213, 4
      %v2215 = vrot.slane %v1682, 5
      %v2216 = vsel %vm1020, %v2214, %v2215
      %v2217 = vrot.slane %v2215, 4
      %v2218 = vrot.slane %v1683, 5
      %v2219 = vsel %vm1020, %v2217, %v2218
      %v2220 = vrot.slane %v2182, 5
      %v2221 = vrot.slane %v2220, 4
      %v2222 = vrot.slane %v1685, 5
      %v2223 = vsel %vm1020, %v2221, %v2222
      %v2224 = vrot.slane %v2222, 4
      %v2225 = vrot.slane %v1686, 5
      %v2226 = vsel %vm1020, %v2224, %v2225
      %v2227 = vrot.slane %v2183, 5
      %v2228 = vrot.slane %v2227, 4
      %v2229 = vrot.slane %v1688, 5
      %v2230 = vsel %vm1020, %v2228, %v2229
      %v2231 = vrot.slane %v2229, 4
      %v2232 = vrot.slane %v1689, 5
      %v2233 = vsel %vm1020, %v2231, %v2232
      %v2234 = vrot.slane %v2184, 5
      %v2235 = vrot.slane %v2234, 4
      %v2236 = vrot.slane %v1691, 5
      %v2237 = vsel %vm1020, %v2235, %v2236
      %v2238 = vrot.slane %v2236, 4
      %v2239 = vrot.slane %v1692, 5
      %v2240 = vsel %vm1020, %v2238, %v2239
      %v2241 = vrot.slane %v2185, 5
      %v2242 = vrot.slane %v2241, 4
      %v2243 = vrot.slane %v1694, 5
      %v2244 = vsel %vm1020, %v2242, %v2243
      %v2245 = vrot.slane %v2243, 4
      %v2246 = vrot.slane %v1695, 5
      %v2247 = vsel %vm1020, %v2245, %v2246
      %v2248 = vrot.slane %v2186, 5
      %v2249 = vrot.slane %v2248, 4
      %v2250 = vrot.slane %v1697, 5
      %v2251 = vsel %vm1020, %v2249, %v2250
      %v2252 = vrot.slane %v2250, 4
      %v2253 = vrot.slane %v1698, 5
      %v2254 = vsel %vm1020, %v2252, %v2253
      %v2255 = vrot.slane %v2187, 5
      %v2256 = vrot.slane %v2255, 4
      %v2257 = vrot.slane %v1700, 5
      %v2258 = vsel %vm1020, %v2256, %v2257
      %v2259 = vrot.slane %v2257, 4
      %v2260 = vrot.slane %v1701, 5
      %v2261 = vsel %vm1020, %v2259, %v2260
      %v2262 = vrot.slane %v2188, 5
      %v2263 = vrot.slane %v2262, 4
      %v2264 = vrot.slane %v1703, 5
      %v2265 = vsel %vm1020, %v2263, %v2264
      %v2266 = vrot.slane %v2264, 4
      %v2267 = vrot.slane %v1704, 5
      %v2268 = vsel %vm1020, %v2266, %v2267
      %s2269 = scalar_lea.vmem %s1, 10
      %v2270 = vld [vmem:[%s2269] sm:$0x3]
      %v2271 = vunpack.c.l.b16 %v2216
      %v2272 = vunpack.c.l.b16 %v2219
      %v2273 = vunpack.c.l.b16 %v2223
      %v2274 = vunpack.c.l.b16 %v2226
      %v2275 = vunpack.c.l.b16 %v2230
      %v2276 = vunpack.c.l.b16 %v2233
      %v2277 = vunpack.c.l.b16 %v2237
      %v2278 = vunpack.c.l.b16 %v2240
      %v2279 = vunpack.c.l.b16 %v2244
      %v2280 = vunpack.c.l.b16 %v2247
      %v2281 = vunpack.c.l.b16 %v2251
      %v2282 = vunpack.c.l.b16 %v2254
      %v2283 = vunpack.c.l.b16 %v2258
      %v2284 = vunpack.c.l.b16 %v2261
      %v2285 = vunpack.c.l.b16 %v2265
      %v2286 = vunpack.c.l.b16 %v2268
      %v2287 = vpack.c.b16 %v2272, %v2271
      %v2288 = vpack.c.b16 %v2274, %v2273
      %v2289 = vpack.c.b16 %v2276, %v2275
      %v2290 = vpack.c.b16 %v2278, %v2277
      %v2291 = vpack.c.b16 %v2280, %v2279
      %v2292 = vpack.c.b16 %v2282, %v2281
      %v2293 = vpack.c.b16 %v2284, %v2283
      %v2294 = vpack.c.b16 %v2286, %v2285
      %v2296 = vsel %vm502, %v2287, 0
      %v2299 = vsel %vm502, %v2288, 0
      %v2302 = vsel %vm502, %v2289, 0
      %v2305 = vsel %vm502, %v2290, 0
      %v2308 = vsel %vm502, %v2291, 0
      %v2311 = vsel %vm502, %v2292, 0
      %v2314 = vsel %vm502, %v2293, 0
      %v2317 = vsel %vm502, %v2294, 0
      %v2320 = vsel %vm527, %v2270, 0
      %2322 = vmatprep.subr.bf16.mxu0 0
      %2323 = vmatpush1.bf16.msra.mxu0 %v2320
      %2324 = vmatprep.subr.bf16.mxu0 0
      %2325 = vmatpush1.bf16.msra.mxu0 0
      %2326 = vmatprep.subr.bf16.mxu0 0
      %2327 = vmatpush1.bf16.msra.mxu0 0
      %2328 = vmatprep.subr.bf16.mxu0 0
      %2329 = vmatpush1.bf16.msra.mxu0 0
      %2330 = vmatprep.subr.bf16.mxu0 0
      %2331 = vmatpush1.bf16.msra.mxu0 0
      %2332 = vmatprep.subr.bf16.mxu0 0
      %2333 = vmatpush1.bf16.msra.mxu0 0
      %2334 = vmatprep.subr.bf16.mxu0 0
      %2335 = vmatpush1.bf16.msra.mxu0 0
      %2336 = vmatprep.subr.bf16.mxu0 0
      %2337 = vmatpush1.bf16.msra.mxu0 0
      %2338 = vmatprep.subr.bf16.mxu0 0
      %2339 = vmatpush1.bf16.msra.mxu0 0
      %2340 = vmatprep.subr.bf16.mxu0 0
      %2341 = vmatpush1.bf16.msra.mxu0 0
      %2342 = vmatprep.subr.bf16.mxu0 0
      %2343 = vmatpush1.bf16.msra.mxu0 0
      %2344 = vmatprep.subr.bf16.mxu0 0
      %2345 = vmatpush1.bf16.msra.mxu0 0
      %2346 = vmatprep.subr.bf16.mxu0 0
      %2347 = vmatpush1.bf16.msra.mxu0 0
      %2348 = vmatprep.subr.bf16.mxu0 0
      %2349 = vmatpush1.bf16.msra.mxu0 0
      %2350 = vmatprep.subr.bf16.mxu0 0
      %2351 = vmatpush1.bf16.msra.mxu0 0
      %2352 = vmatprep.subr.bf16.mxu0 0
      %2353 = vmatpush1.bf16.msra.mxu0 0
      %2354 = vmatprep.mubr.bf16.mxu0 0
      %2355 = vmatmul.mubr.bf16.gmra.mrb[0].mxu0 %v2296
      %v2356 = vpop.f32.mrb[0].mxu0
      %v2357 = vadd.f32 0.0, %v2356
      %v2358 = vpop.f32.mrb[0].mxu0
      %v2359 = vpop.f32.mrb[0].mxu0
      %v2360 = vadd.f32 0.0, %v2359
      %v2361 = vpop.f32.mrb[0].mxu0
      %2362 = vmatprep.mubr.bf16.mxu0 0
      %2363 = vmatmul.mubr.bf16.gmra.mrb[0].mxu0 %v2299
      %v2364 = vpop.f32.mrb[0].mxu0
      %v2365 = vadd.f32 0.0, %v2364
      %v2366 = vpop.f32.mrb[0].mxu0
      %v2367 = vpop.f32.mrb[0].mxu0
      %v2368 = vadd.f32 0.0, %v2367
      %v2369 = vpop.f32.mrb[0].mxu0
      %2370 = vmatprep.mubr.bf16.mxu0 0
      %2371 = vmatmul.mubr.bf16.gmra.mrb[0].mxu0 %v2302
      %v2372 = vpop.f32.mrb[0].mxu0
      %v2373 = vadd.f32 0.0, %v2372
      %v2374 = vpop.f32.mrb[0].mxu0
      %v2375 = vpop.f32.mrb[0].mxu0
      %v2376 = vadd.f32 0.0, %v2375
      %v2377 = vpop.f32.mrb[0].mxu0
      %2378 = vmatprep.mubr.bf16.mxu0 0
      %2379 = vmatmul.mubr.bf16.gmra.mrb[0].mxu0 %v2305
      %v2380 = vpop.f32.mrb[0].mxu0
      %v2381 = vadd.f32 0.0, %v2380
      %v2382 = vpop.f32.mrb[0].mxu0
      %v2383 = vpop.f32.mrb[0].mxu0
      %v2384 = vadd.f32 0.0, %v2383
      %v2385 = vpop.f32.mrb[0].mxu0
      %2386 = vmatprep.mubr.bf16.mxu0 0
      %2387 = vmatmul.mubr.bf16.gmra.mrb[0].mxu0 %v2308
      %v2388 = vpop.f32.mrb[0].mxu0
      %v2389 = vadd.f32 0.0, %v2388
      %v2390 = vpop.f32.mrb[0].mxu0
      %v2391 = vpop.f32.mrb[0].mxu0
      %v2392 = vadd.f32 0.0, %v2391
      %v2393 = vpop.f32.mrb[0].mxu0
      %2394 = vmatprep.mubr.bf16.mxu0 0
      %2395 = vmatmul.mubr.bf16.gmra.mrb[0].mxu0 %v2311
      %v2396 = vpop.f32.mrb[0].mxu0
      %v2397 = vadd.f32 0.0, %v2396
      %v2398 = vpop.f32.mrb[0].mxu0
      %v2399 = vpop.f32.mrb[0].mxu0
      %v2400 = vadd.f32 0.0, %v2399
      %v2401 = vpop.f32.mrb[0].mxu0
      %2402 = vmatprep.mubr.bf16.mxu0 0
      %2403 = vmatmul.mubr.bf16.gmra.mrb[0].mxu0 %v2314
      %v2404 = vpop.f32.mrb[0].mxu0
      %v2405 = vadd.f32 0.0, %v2404
      %v2406 = vpop.f32.mrb[0].mxu0
      %v2407 = vpop.f32.mrb[0].mxu0
      %v2408 = vadd.f32 0.0, %v2407
      %v2409 = vpop.f32.mrb[0].mxu0
      %2410 = vmatprep.mubr.bf16.mxu0 0
      %2411 = vmatmul.mubr.bf16.gmra.mrb[0].mxu0 %v2317
      %v2412 = vpop.f32.mrb[0].mxu0
      %v2413 = vadd.f32 0.0, %v2412
      %v2414 = vpop.f32.mrb[0].mxu0
      %v2415 = vpop.f32.mrb[0].mxu0
      %v2416 = vadd.f32 0.0, %v2415
      %v2417 = vpop.f32.mrb[0].mxu0
      %2418 = vdwg.mxu0
      %v2419 = vadd.f32 %v2047, %v2357
      %v2420 = vadd.f32 %v2048, %v2360
      %v2421 = vadd.f32 %v2049, %v2365
      %v2422 = vadd.f32 %v2050, %v2368
      %v2423 = vadd.f32 %v2051, %v2373
      %v2424 = vadd.f32 %v2052, %v2376
      %v2425 = vadd.f32 %v2053, %v2381
      %v2426 = vadd.f32 %v2054, %v2384
      %v2427 = vadd.f32 %v2055, %v2389
      %v2428 = vadd.f32 %v2056, %v2392
      %v2429 = vadd.f32 %v2057, %v2397
      %v2430 = vadd.f32 %v2058, %v2400
      %v2431 = vadd.f32 %v2059, %v2405
      %v2432 = vadd.f32 %v2060, %v2408
      %v2433 = vadd.f32 %v2061, %v2413
      %v2434 = vadd.f32 %v2062, %v2416
      %s2435 = scalar_lea.vmem %s2, 10
      %v2436 = vld [vmem:[%s2435] sm:$0x3]
      %v2438 = vsel %vm527, %v2436, 0
      %2440 = vmatprep.subr.bf16.mxu0 0
      %2441 = vmatpush1.bf16.msra.mxu0 %v2438
      %2442 = vmatprep.subr.bf16.mxu0 0
      %2443 = vmatpush1.bf16.msra.mxu0 0
      %2444 = vmatprep.subr.bf16.mxu0 0
      %2445 = vmatpush1.bf16.msra.mxu0 0
      %2446 = vmatprep.subr.bf16.mxu0 0
      %2447 = vmatpush1.bf16.msra.mxu0 0
      %2448 = vmatprep.subr.bf16.mxu0 0
      %2449 = vmatpush1.bf16.msra.mxu0 0
      %2450 = vmatprep.subr.bf16.mxu0 0
      %2451 = vmatpush1.bf16.msra.mxu0 0
      %2452 = vmatprep.subr.bf16.mxu0 0
      %2453 = vmatpush1.bf16.msra.mxu0 0
      %2454 = vmatprep.subr.bf16.mxu0 0
      %2455 = vmatpush1.bf16.msra.mxu0 0
      %2456 = vmatprep.subr.bf16.mxu0 0
      %2457 = vmatpush1.bf16.msra.mxu0 0
      %2458 = vmatprep.subr.bf16.mxu0 0
      %2459 = vmatpush1.bf16.msra.mxu0 0
      %2460 = vmatprep.subr.bf16.mxu0 0
      %2461 = vmatpush1.bf16.msra.mxu0 0
      %2462 = vmatprep.subr.bf16.mxu0 0
      %2463 = vmatpush1.bf16.msra.mxu0 0
      %2464 = vmatprep.subr.bf16.mxu0 0
      %2465 = vmatpush1.bf16.msra.mxu0 0
      %2466 = vmatprep.subr.bf16.mxu0 0
      %2467 = vmatpush1.bf16.msra.mxu0 0
      %2468 = vmatprep.subr.bf16.mxu0 0
      %2469 = vmatpush1.bf16.msra.mxu0 0
      %2470 = vmatprep.subr.bf16.mxu0 0
      %2471 = vmatpush1.bf16.msra.mxu0 0
      %2472 = vmatprep.mubr.bf16.mxu0 0
      %2473 = vmatmul.mubr.bf16.gmra.mrb[0].mxu0 %v2296
      %v2474 = vpop.f32.mrb[0].mxu0
      %v2475 = vadd.f32 0.0, %v2474
      %v2476 = vpop.f32.mrb[0].mxu0
      %v2477 = vpop.f32.mrb[0].mxu0
      %v2478 = vadd.f32 0.0, %v2477
      %v2479 = vpop.f32.mrb[0].mxu0
      %2480 = vmatprep.mubr.bf16.mxu0 0
      %2481 = vmatmul.mubr.bf16.gmra.mrb[0].mxu0 %v2299
      %v2482 = vpop.f32.mrb[0].mxu0
      %v2483 = vadd.f32 0.0, %v2482
      %v2484 = vpop.f32.mrb[0].mxu0
      %v2485 = vpop.f32.mrb[0].mxu0
      %v2486 = vadd.f32 0.0, %v2485
      %v2487 = vpop.f32.mrb[0].mxu0
      %2488 = vmatprep.mubr.bf16.mxu0 0
      %2489 = vmatmul.mubr.bf16.gmra.mrb[0].mxu0 %v2302
      %v2490 = vpop.f32.mrb[0].mxu0
      %v2491 = vadd.f32 0.0, %v2490
      %v2492 = vpop.f32.mrb[0].mxu0
      %v2493 = vpop.f32.mrb[0].mxu0
      %v2494 = vadd.f32 0.0, %v2493
      %v2495 = vpop.f32.mrb[0].mxu0
      %2496 = vmatprep.mubr.bf16.mxu0 0
      %2497 = vmatmul.mubr.bf16.gmra.mrb[0].mxu0 %v2305
      %v2498 = vpop.f32.mrb[0].mxu0
      %v2499 = vadd.f32 0.0, %v2498
      %v2500 = vpop.f32.mrb[0].mxu0
      %v2501 = vpop.f32.mrb[0].mxu0
      %v2502 = vadd.f32 0.0, %v2501
      %v2503 = vpop.f32.mrb[0].mxu0
      %2504 = vmatprep.mubr.bf16.mxu0 0
      %2505 = vmatmul.mubr.bf16.gmra.mrb[0].mxu0 %v2308
      %v2506 = vpop.f32.mrb[0].mxu0
      %v2507 = vadd.f32 0.0, %v2506
      %v2508 = vpop.f32.mrb[0].mxu0
      %v2509 = vpop.f32.mrb[0].mxu0
      %v2510 = vadd.f32 0.0, %v2509
      %v2511 = vpop.f32.mrb[0].mxu0
      %2512 = vmatprep.mubr.bf16.mxu0 0
      %2513 = vmatmul.mubr.bf16.gmra.mrb[0].mxu0 %v2311
      %v2514 = vpop.f32.mrb[0].mxu0
      %v2515 = vadd.f32 0.0, %v2514
      %v2516 = vpop.f32.mrb[0].mxu0
      %v2517 = vpop.f32.mrb[0].mxu0
      %v2518 = vadd.f32 0.0, %v2517
      %v2519 = vpop.f32.mrb[0].mxu0
      %2520 = vmatprep.mubr.bf16.mxu0 0
      %2521 = vmatmul.mubr.bf16.gmra.mrb[0].mxu0 %v2314
      %v2522 = vpop.f32.mrb[0].mxu0
      %v2523 = vadd.f32 0.0, %v2522
      %v2524 = vpop.f32.mrb[0].mxu0
      %v2525 = vpop.f32.mrb[0].mxu0
      %v2526 = vadd.f32 0.0, %v2525
      %v2527 = vpop.f32.mrb[0].mxu0
      %2528 = vmatprep.mubr.bf16.mxu0 0
      %2529 = vmatmul.mubr.bf16.gmra.mrb[0].mxu0 %v2317
      %v2530 = vpop.f32.mrb[0].mxu0
      %v2531 = vadd.f32 0.0, %v2530
      %v2532 = vpop.f32.mrb[0].mxu0
      %v2533 = vpop.f32.mrb[0].mxu0
      %v2534 = vadd.f32 0.0, %v2533
      %v2535 = vpop.f32.mrb[0].mxu0
      %2536 = vdwg.mxu0
      %v2537 = vadd.f32 %v2165, %v2475
      %v2538 = vadd.f32 %v2166, %v2478
      %v2539 = vadd.f32 %v2167, %v2483
      %v2540 = vadd.f32 %v2168, %v2486
      %v2541 = vadd.f32 %v2169, %v2491
      %v2542 = vadd.f32 %v2170, %v2494
      %v2543 = vadd.f32 %v2171, %v2499
      %v2544 = vadd.f32 %v2172, %v2502
      %v2545 = vadd.f32 %v2173, %v2507
      %v2546 = vadd.f32 %v2174, %v2510
      %v2547 = vadd.f32 %v2175, %v2515
      %v2548 = vadd.f32 %v2176, %v2518
      %v2549 = vadd.f32 %v2177, %v2523
      %v2550 = vadd.f32 %v2178, %v2526
      %v2551 = vadd.f32 %v2179, %v2531
      %v2552 = vadd.f32 %v2180, %v2534
      %s2553 = sadd.s32 %s251, 2
      %s2554 = smul.u32 %s2553, 3
      %s2555 = smul.addr %s2554, 4
      %s2556 = scalar_lea.vmem %s238, %s2555
      %v2557 = vld [vmem:[%s2556] sm:$0xf]
      %v2558 = vld [vmem:[%s2556 + $0x4] sm:$0xf]
      %v2559 = vld [vmem:[%s2556 + $0xc] sm:$0xf]
      %v2560 = vld [vmem:[%s2556 + $0x10] sm:$0xf]
      %v2561 = vld [vmem:[%s2556 + $0x18] sm:$0xf]
      %v2562 = vld [vmem:[%s2556 + $0x1c] sm:$0xf]
      %v2563 = vld [vmem:[%s2556 + $0x24] sm:$0xf]
      %v2564 = vld [vmem:[%s2556 + $0x28] sm:$0xf]
      %v2565 = vld [vmem:[%s2556 + $0x30] sm:$0xf]
      %v2566 = vld [vmem:[%s2556 + $0x34] sm:$0xf]
      %v2567 = vld [vmem:[%s2556 + $0x3c] sm:$0xf]
      %v2568 = vld [vmem:[%s2556 + $0x40] sm:$0xf]
      %v2569 = vld [vmem:[%s2556 + $0x48] sm:$0xf]
      %v2570 = vld [vmem:[%s2556 + $0x4c] sm:$0xf]
      %v2571 = vld [vmem:[%s2556 + $0x54] sm:$0xf]
      %v2572 = vld [vmem:[%s2556 + $0x58] sm:$0xf]
      %s2573 = scalar_lea.vmem %s1, 12
      %v2574 = vld [vmem:[%s2573] sm:$0x3]
      %v2591 = vunpack.c.l.b16 %v2557
      %v2592 = vunpack.c.l.b16 %v2558
      %v2593 = vunpack.c.l.b16 %v2559
      %v2594 = vunpack.c.l.b16 %v2560
      %v2595 = vunpack.c.l.b16 %v2561
      %v2596 = vunpack.c.l.b16 %v2562
      %v2597 = vunpack.c.l.b16 %v2563
      %v2598 = vunpack.c.l.b16 %v2564
      %v2599 = vunpack.c.l.b16 %v2565
      %v2600 = vunpack.c.l.b16 %v2566
      %v2601 = vunpack.c.l.b16 %v2567
      %v2602 = vunpack.c.l.b16 %v2568
      %v2603 = vunpack.c.l.b16 %v2569
      %v2604 = vunpack.c.l.b16 %v2570
      %v2605 = vunpack.c.l.b16 %v2571
      %v2606 = vunpack.c.l.b16 %v2572
      %v2607 = vpack.c.b16 %v2592, %v2591
      %v2608 = vpack.c.b16 %v2594, %v2593
      %v2609 = vpack.c.b16 %v2596, %v2595
      %v2610 = vpack.c.b16 %v2598, %v2597
      %v2611 = vpack.c.b16 %v2600, %v2599
      %v2612 = vpack.c.b16 %v2602, %v2601
      %v2613 = vpack.c.b16 %v2604, %v2603
      %v2614 = vpack.c.b16 %v2606, %v2605
      %v2616 = vsel %vm502, %v2607, 0
      %v2619 = vsel %vm502, %v2608, 0
      %v2622 = vsel %vm502, %v2609, 0
      %v2625 = vsel %vm502, %v2610, 0
      %v2628 = vsel %vm502, %v2611, 0
      %v2631 = vsel %vm502, %v2612, 0
      %v2634 = vsel %vm502, %v2613, 0
      %v2637 = vsel %vm502, %v2614, 0
      %v2640 = vsel %vm527, %v2574, 0
      %2642 = vmatprep.subr.bf16.mxu0 0
      %2643 = vmatpush1.bf16.msra.mxu0 %v2640
      %2644 = vmatprep.subr.bf16.mxu0 0
      %2645 = vmatpush1.bf16.msra.mxu0 0
      %2646 = vmatprep.subr.bf16.mxu0 0
      %2647 = vmatpush1.bf16.msra.mxu0 0
      %2648 = vmatprep.subr.bf16.mxu0 0
      %2649 = vmatpush1.bf16.msra.mxu0 0
      %2650 = vmatprep.subr.bf16.mxu0 0
      %2651 = vmatpush1.bf16.msra.mxu0 0
      %2652 = vmatprep.subr.bf16.mxu0 0
      %2653 = vmatpush1.bf16.msra.mxu0 0
      %2654 = vmatprep.subr.bf16.mxu0 0
      %2655 = vmatpush1.bf16.msra.mxu0 0
      %2656 = vmatprep.subr.bf16.mxu0 0
      %2657 = vmatpush1.bf16.msra.mxu0 0
      %2658 = vmatprep.subr.bf16.mxu0 0
      %2659 = vmatpush1.bf16.msra.mxu0 0
      %2660 = vmatprep.subr.bf16.mxu0 0
      %2661 = vmatpush1.bf16.msra.mxu0 0
      %2662 = vmatprep.subr.bf16.mxu0 0
      %2663 = vmatpush1.bf16.msra.mxu0 0
      %2664 = vmatprep.subr.bf16.mxu0 0
      %2665 = vmatpush1.bf16.msra.mxu0 0
      %2666 = vmatprep.subr.bf16.mxu0 0
      %2667 = vmatpush1.bf16.msra.mxu0 0
      %2668 = vmatprep.subr.bf16.mxu0 0
      %2669 = vmatpush1.bf16.msra.mxu0 0
      %2670 = vmatprep.subr.bf16.mxu0 0
      %2671 = vmatpush1.bf16.msra.mxu0 0
      %2672 = vmatprep.subr.bf16.mxu0 0
      %2673 = vmatpush1.bf16.msra.mxu0 0
      %2674 = vmatprep.mubr.bf16.mxu0 0
      %2675 = vmatmul.mubr.bf16.gmra.mrb[0].mxu0 %v2616
      %v2676 = vpop.f32.mrb[0].mxu0
      %v2677 = vadd.f32 0.0, %v2676
      %v2678 = vpop.f32.mrb[0].mxu0
      %v2679 = vpop.f32.mrb[0].mxu0
      %v2680 = vadd.f32 0.0, %v2679
      %v2681 = vpop.f32.mrb[0].mxu0
      %2682 = vmatprep.mubr.bf16.mxu0 0
      %2683 = vmatmul.mubr.bf16.gmra.mrb[0].mxu0 %v2619
      %v2684 = vpop.f32.mrb[0].mxu0
      %v2685 = vadd.f32 0.0, %v2684
      %v2686 = vpop.f32.mrb[0].mxu0
      %v2687 = vpop.f32.mrb[0].mxu0
      %v2688 = vadd.f32 0.0, %v2687
      %v2689 = vpop.f32.mrb[0].mxu0
      %2690 = vmatprep.mubr.bf16.mxu0 0
      %2691 = vmatmul.mubr.bf16.gmra.mrb[0].mxu0 %v2622
      %v2692 = vpop.f32.mrb[0].mxu0
      %v2693 = vadd.f32 0.0, %v2692
      %v2694 = vpop.f32.mrb[0].mxu0
      %v2695 = vpop.f32.mrb[0].mxu0
      %v2696 = vadd.f32 0.0, %v2695
      %v2697 = vpop.f32.mrb[0].mxu0
      %2698 = vmatprep.mubr.bf16.mxu0 0
      %2699 = vmatmul.mubr.bf16.gmra.mrb[0].mxu0 %v2625
      %v2700 = vpop.f32.mrb[0].mxu0
      %v2701 = vadd.f32 0.0, %v2700
      %v2702 = vpop.f32.mrb[0].mxu0
      %v2703 = vpop.f32.mrb[0].mxu0
      %v2704 = vadd.f32 0.0, %v2703
      %v2705 = vpop.f32.mrb[0].mxu0
      %2706 = vmatprep.mubr.bf16.mxu0 0
      %2707 = vmatmul.mubr.bf16.gmra.mrb[0].mxu0 %v2628
      %v2708 = vpop.f32.mrb[0].mxu0
      %v2709 = vadd.f32 0.0, %v2708
      %v2710 = vpop.f32.mrb[0].mxu0
      %v2711 = vpop.f32.mrb[0].mxu0
      %v2712 = vadd.f32 0.0, %v2711
      %v2713 = vpop.f32.mrb[0].mxu0
      %2714 = vmatprep.mubr.bf16.mxu0 0
      %2715 = vmatmul.mubr.bf16.gmra.mrb[0].mxu0 %v2631
      %v2716 = vpop.f32.mrb[0].mxu0
      %v2717 = vadd.f32 0.0, %v2716
      %v2718 = vpop.f32.mrb[0].mxu0
      %v2719 = vpop.f32.mrb[0].mxu0
      %v2720 = vadd.f32 0.0, %v2719
      %v2721 = vpop.f32.mrb[0].mxu0
      %2722 = vmatprep.mubr.bf16.mxu0 0
      %2723 = vmatmul.mubr.bf16.gmra.mrb[0].mxu0 %v2634
      %v2724 = vpop.f32.mrb[0].mxu0
      %v2725 = vadd.f32 0.0, %v2724
      %v2726 = vpop.f32.mrb[0].mxu0
      %v2727 = vpop.f32.mrb[0].mxu0
      %v2728 = vadd.f32 0.0, %v2727
      %v2729 = vpop.f32.mrb[0].mxu0
      %2730 = vmatprep.mubr.bf16.mxu0 0
      %2731 = vmatmul.mubr.bf16.gmra.mrb[0].mxu0 %v2637
      %v2732 = vpop.f32.mrb[0].mxu0
      %v2733 = vadd.f32 0.0, %v2732
      %v2734 = vpop.f32.mrb[0].mxu0
      %v2735 = vpop.f32.mrb[0].mxu0
      %v2736 = vadd.f32 0.0, %v2735
      %v2737 = vpop.f32.mrb[0].mxu0
      %2738 = vdwg.mxu0
      %v2739 = vadd.f32 %v2419, %v2677
      %v2740 = vadd.f32 %v2420, %v2680
      %v2741 = vadd.f32 %v2421, %v2685
      %v2742 = vadd.f32 %v2422, %v2688
      %v2743 = vadd.f32 %v2423, %v2693
      %v2744 = vadd.f32 %v2424, %v2696
      %v2745 = vadd.f32 %v2425, %v2701
      %v2746 = vadd.f32 %v2426, %v2704
      %v2747 = vadd.f32 %v2427, %v2709
      %v2748 = vadd.f32 %v2428, %v2712
      %v2749 = vadd.f32 %v2429, %v2717
      %v2750 = vadd.f32 %v2430, %v2720
      %v2751 = vadd.f32 %v2431, %v2725
      %v2752 = vadd.f32 %v2432, %v2728
      %v2753 = vadd.f32 %v2433, %v2733
      %v2754 = vadd.f32 %v2434, %v2736
      %s2755 = scalar_lea.vmem %s2, 12
      %v2756 = vld [vmem:[%s2755] sm:$0x3]
      %v2758 = vsel %vm527, %v2756, 0
      %2760 = vmatprep.subr.bf16.mxu0 0
      %2761 = vmatpush1.bf16.msra.mxu0 %v2758
      %2762 = vmatprep.subr.bf16.mxu0 0
      %2763 = vmatpush1.bf16.msra.mxu0 0
      %2764 = vmatprep.subr.bf16.mxu0 0
      %2765 = vmatpush1.bf16.msra.mxu0 0
      %2766 = vmatprep.subr.bf16.mxu0 0
      %2767 = vmatpush1.bf16.msra.mxu0 0
      %2768 = vmatprep.subr.bf16.mxu0 0
      %2769 = vmatpush1.bf16.msra.mxu0 0
      %2770 = vmatprep.subr.bf16.mxu0 0
      %2771 = vmatpush1.bf16.msra.mxu0 0
      %2772 = vmatprep.subr.bf16.mxu0 0
      %2773 = vmatpush1.bf16.msra.mxu0 0
      %2774 = vmatprep.subr.bf16.mxu0 0
      %2775 = vmatpush1.bf16.msra.mxu0 0
      %2776 = vmatprep.subr.bf16.mxu0 0
      %2777 = vmatpush1.bf16.msra.mxu0 0
      %2778 = vmatprep.subr.bf16.mxu0 0
      %2779 = vmatpush1.bf16.msra.mxu0 0
      %2780 = vmatprep.subr.bf16.mxu0 0
      %2781 = vmatpush1.bf16.msra.mxu0 0
      %2782 = vmatprep.subr.bf16.mxu0 0
      %2783 = vmatpush1.bf16.msra.mxu0 0
      %2784 = vmatprep.subr.bf16.mxu0 0
      %2785 = vmatpush1.bf16.msra.mxu0 0
      %2786 = vmatprep.subr.bf16.mxu0 0
      %2787 = vmatpush1.bf16.msra.mxu0 0
      %2788 = vmatprep.subr.bf16.mxu0 0
      %2789 = vmatpush1.bf16.msra.mxu0 0
      %2790 = vmatprep.subr.bf16.mxu0 0
      %2791 = vmatpush1.bf16.msra.mxu0 0
      %2792 = vmatprep.mubr.bf16.mxu0 0
      %2793 = vmatmul.mubr.bf16.gmra.mrb[0].mxu0 %v2616
      %v2794 = vpop.f32.mrb[0].mxu0
      %v2795 = vadd.f32 0.0, %v2794
      %v2796 = vpop.f32.mrb[0].mxu0
      %v2797 = vpop.f32.mrb[0].mxu0
      %v2798 = vadd.f32 0.0, %v2797
      %v2799 = vpop.f32.mrb[0].mxu0
      %2800 = vmatprep.mubr.bf16.mxu0 0
      %2801 = vmatmul.mubr.bf16.gmra.mrb[0].mxu0 %v2619
      %v2802 = vpop.f32.mrb[0].mxu0
      %v2803 = vadd.f32 0.0, %v2802
      %v2804 = vpop.f32.mrb[0].mxu0
      %v2805 = vpop.f32.mrb[0].mxu0
      %v2806 = vadd.f32 0.0, %v2805
      %v2807 = vpop.f32.mrb[0].mxu0
      %2808 = vmatprep.mubr.bf16.mxu0 0
      %2809 = vmatmul.mubr.bf16.gmra.mrb[0].mxu0 %v2622
      %v2810 = vpop.f32.mrb[0].mxu0
      %v2811 = vadd.f32 0.0, %v2810
      %v2812 = vpop.f32.mrb[0].mxu0
      %v2813 = vpop.f32.mrb[0].mxu0
      %v2814 = vadd.f32 0.0, %v2813
      %v2815 = vpop.f32.mrb[0].mxu0
      %2816 = vmatprep.mubr.bf16.mxu0 0
      %2817 = vmatmul.mubr.bf16.gmra.mrb[0].mxu0 %v2625
      %v2818 = vpop.f32.mrb[0].mxu0
      %v2819 = vadd.f32 0.0, %v2818
      %v2820 = vpop.f32.mrb[0].mxu0
      %v2821 = vpop.f32.mrb[0].mxu0
      %v2822 = vadd.f32 0.0, %v2821
      %v2823 = vpop.f32.mrb[0].mxu0
      %2824 = vmatprep.mubr.bf16.mxu0 0
      %2825 = vmatmul.mubr.bf16.gmra.mrb[0].mxu0 %v2628
      %v2826 = vpop.f32.mrb[0].mxu0
      %v2827 = vadd.f32 0.0, %v2826
      %v2828 = vpop.f32.mrb[0].mxu0
      %v2829 = vpop.f32.mrb[0].mxu0
      %v2830 = vadd.f32 0.0, %v2829
      %v2831 = vpop.f32.mrb[0].mxu0
      %2832 = vmatprep.mubr.bf16.mxu0 0
      %2833 = vmatmul.mubr.bf16.gmra.mrb[0].mxu0 %v2631
      %v2834 = vpop.f32.mrb[0].mxu0
      %v2835 = vadd.f32 0.0, %v2834
      %v2836 = vpop.f32.mrb[0].mxu0
      %v2837 = vpop.f32.mrb[0].mxu0
      %v2838 = vadd.f32 0.0, %v2837
      %v2839 = vpop.f32.mrb[0].mxu0
      %2840 = vmatprep.mubr.bf16.mxu0 0
      %2841 = vmatmul.mubr.bf16.gmra.mrb[0].mxu0 %v2634
      %v2842 = vpop.f32.mrb[0].mxu0
      %v2843 = vadd.f32 0.0, %v2842
      %v2844 = vpop.f32.mrb[0].mxu0
      %v2845 = vpop.f32.mrb[0].mxu0
      %v2846 = vadd.f32 0.0, %v2845
      %v2847 = vpop.f32.mrb[0].mxu0
      %2848 = vmatprep.mubr.bf16.mxu0 0
      %2849 = vmatmul.mubr.bf16.gmra.mrb[0].mxu0 %v2637
      %v2850 = vpop.f32.mrb[0].mxu0
      %v2851 = vadd.f32 0.0, %v2850
      %v2852 = vpop.f32.mrb[0].mxu0
      %v2853 = vpop.f32.mrb[0].mxu0
      %v2854 = vadd.f32 0.0, %v2853
      %v2855 = vpop.f32.mrb[0].mxu0
      %2856 = vdwg.mxu0
      %v2857 = vadd.f32 %v2537, %v2795
      %v2858 = vadd.f32 %v2538, %v2798
      %v2859 = vadd.f32 %v2539, %v2803
      %v2860 = vadd.f32 %v2540, %v2806
      %v2861 = vadd.f32 %v2541, %v2811
      %v2862 = vadd.f32 %v2542, %v2814
      %v2863 = vadd.f32 %v2543, %v2819
      %v2864 = vadd.f32 %v2544, %v2822
      %v2865 = vadd.f32 %v2545, %v2827
      %v2866 = vadd.f32 %v2546, %v2830
      %v2867 = vadd.f32 %v2547, %v2835
      %v2868 = vadd.f32 %v2548, %v2838
      %v2869 = vadd.f32 %v2549, %v2843
      %v2870 = vadd.f32 %v2550, %v2846
      %v2871 = vadd.f32 %v2551, %v2851
      %v2872 = vadd.f32 %v2552, %v2854
      %v2873 = vld [vmem:[%s2556] sm:$0xf]
      %v2874 = vld [vmem:[%s2556 + $0x4] sm:$0xf]
      %v2875 = vld [vmem:[%s2556 + $0x8] sm:$0x1]
      %v2876 = vld [vmem:[%s2556 + $0xc] sm:$0xf]
      %v2877 = vld [vmem:[%s2556 + $0x10] sm:$0xf]
      %v2878 = vld [vmem:[%s2556 + $0x14] sm:$0x1]
      %v2879 = vld [vmem:[%s2556 + $0x18] sm:$0xf]
      %v2880 = vld [vmem:[%s2556 + $0x1c] sm:$0xf]
      %v2881 = vld [vmem:[%s2556 + $0x20] sm:$0x1]
      %v2882 = vld [vmem:[%s2556 + $0x24] sm:$0xf]
      %v2883 = vld [vmem:[%s2556 + $0x28] sm:$0xf]
      %v2884 = vld [vmem:[%s2556 + $0x2c] sm:$0x1]
      %v2885 = vld [vmem:[%s2556 + $0x30] sm:$0xf]
      %v2886 = vld [vmem:[%s2556 + $0x34] sm:$0xf]
      %v2887 = vld [vmem:[%s2556 + $0x38] sm:$0x1]
      %v2888 = vld [vmem:[%s2556 + $0x3c] sm:$0xf]
      %v2889 = vld [vmem:[%s2556 + $0x40] sm:$0xf]
      %v2890 = vld [vmem:[%s2556 + $0x44] sm:$0x1]
      %v2891 = vld [vmem:[%s2556 + $0x48] sm:$0xf]
      %v2892 = vld [vmem:[%s2556 + $0x4c] sm:$0xf]
      %v2893 = vld [vmem:[%s2556 + $0x50] sm:$0x1]
      %v2894 = vld [vmem:[%s2556 + $0x54] sm:$0xf]
      %v2895 = vld [vmem:[%s2556 + $0x58] sm:$0xf]
      %v2896 = vld [vmem:[%s2556 + $0x5c] sm:$0x1]
      %v2898 = vshrl.u32 %v2873, 16
      %v2900 = vrot.slane %v2898, 4
      %v2901 = vshll.u32 %v2873, 16
      %v2903 = vrot.slane %v2901, 5
      %v2904 = vor.u32 %v2900, %v2903
      %v2905 = vrot.slane %v2904, 4
      %v2907 = vshll.u32 %v2874, 16
      %v2909 = vrot.slane %v2907, 5
      %v2910 = vsel %vm283, %v2905, %v2909
      %v2911 = vshrl.u32 %v2874, 16
      %v2913 = vrot.slane %v2911, 4
      %v2914 = vor.u32 %v2913, %v2909
      %v2915 = vrot.slane %v2914, 4
      %v2917 = vshll.u32 %v2875, 16
      %v2919 = vrot.slane %v2917, 5
      %v2920 = vsel %vm283, %v2915, %v2919
      %v2922 = vshrl.u32 %v2876, 16
      %v2924 = vrot.slane %v2922, 4
      %v2925 = vshll.u32 %v2876, 16
      %v2927 = vrot.slane %v2925, 5
      %v2928 = vor.u32 %v2924, %v2927
      %v2929 = vrot.slane %v2928, 4
      %v2931 = vshll.u32 %v2877, 16
      %v2933 = vrot.slane %v2931, 5
      %v2934 = vsel %vm283, %v2929, %v2933
      %v2935 = vshrl.u32 %v2877, 16
      %v2937 = vrot.slane %v2935, 4
      %v2938 = vor.u32 %v2937, %v2933
      %v2939 = vrot.slane %v2938, 4
      %v2941 = vshll.u32 %v2878, 16
      %v2943 = vrot.slane %v2941, 5
      %v2944 = vsel %vm283, %v2939, %v2943
      %v2946 = vshrl.u32 %v2879, 16
      %v2948 = vrot.slane %v2946, 4
      %v2949 = vshll.u32 %v2879, 16
      %v2951 = vrot.slane %v2949, 5
      %v2952 = vor.u32 %v2948, %v2951
      %v2953 = vrot.slane %v2952, 4
      %v2955 = vshll.u32 %v2880, 16
      %v2957 = vrot.slane %v2955, 5
      %v2958 = vsel %vm283, %v2953, %v2957
      %v2959 = vshrl.u32 %v2880, 16
      %v2961 = vrot.slane %v2959, 4
      %v2962 = vor.u32 %v2961, %v2957
      %v2963 = vrot.slane %v2962, 4
      %v2965 = vshll.u32 %v2881, 16
      %v2967 = vrot.slane %v2965, 5
      %v2968 = vsel %vm283, %v2963, %v2967
      %v2970 = vshrl.u32 %v2882, 16
      %v2972 = vrot.slane %v2970, 4
      %v2973 = vshll.u32 %v2882, 16
      %v2975 = vrot.slane %v2973, 5
      %v2976 = vor.u32 %v2972, %v2975
      %v2977 = vrot.slane %v2976, 4
      %v2979 = vshll.u32 %v2883, 16
      %v2981 = vrot.slane %v2979, 5
      %v2982 = vsel %vm283, %v2977, %v2981
      %v2983 = vshrl.u32 %v2883, 16
      %v2985 = vrot.slane %v2983, 4
      %v2986 = vor.u32 %v2985, %v2981
      %v2987 = vrot.slane %v2986, 4
      %v2989 = vshll.u32 %v2884, 16
      %v2991 = vrot.slane %v2989, 5
      %v2992 = vsel %vm283, %v2987, %v2991
      %v2994 = vshrl.u32 %v2885, 16
      %v2996 = vrot.slane %v2994, 4
      %v2997 = vshll.u32 %v2885, 16
      %v2999 = vrot.slane %v2997, 5
      %v3000 = vor.u32 %v2996, %v2999
      %v3001 = vrot.slane %v3000, 4
      %v3003 = vshll.u32 %v2886, 16
      %v3005 = vrot.slane %v3003, 5
      %v3006 = vsel %vm283, %v3001, %v3005
      %v3007 = vshrl.u32 %v2886, 16
      %v3009 = vrot.slane %v3007, 4
      %v3010 = vor.u32 %v3009, %v3005
      %v3011 = vrot.slane %v3010, 4
      %v3013 = vshll.u32 %v2887, 16
      %v3015 = vrot.slane %v3013, 5
      %v3016 = vsel %vm283, %v3011, %v3015
      %v3018 = vshrl.u32 %v2888, 16
      %v3020 = vrot.slane %v3018, 4
      %v3021 = vshll.u32 %v2888, 16
      %v3023 = vrot.slane %v3021, 5
      %v3024 = vor.u32 %v3020, %v3023
      %v3025 = vrot.slane %v3024, 4
      %v3027 = vshll.u32 %v2889, 16
      %v3029 = vrot.slane %v3027, 5
      %v3030 = vsel %vm283, %v3025, %v3029
      %v3031 = vshrl.u32 %v2889, 16
      %v3033 = vrot.slane %v3031, 4
      %v3034 = vor.u32 %v3033, %v3029
      %v3035 = vrot.slane %v3034, 4
      %v3037 = vshll.u32 %v2890, 16
      %v3039 = vrot.slane %v3037, 5
      %v3040 = vsel %vm283, %v3035, %v3039
      %v3042 = vshrl.u32 %v2891, 16
      %v3044 = vrot.slane %v3042, 4
      %v3045 = vshll.u32 %v2891, 16
      %v3047 = vrot.slane %v3045, 5
      %v3048 = vor.u32 %v3044, %v3047
      %v3049 = vrot.slane %v3048, 4
      %v3051 = vshll.u32 %v2892, 16
      %v3053 = vrot.slane %v3051, 5
      %v3054 = vsel %vm283, %v3049, %v3053
      %v3055 = vshrl.u32 %v2892, 16
      %v3057 = vrot.slane %v3055, 4
      %v3058 = vor.u32 %v3057, %v3053
      %v3059 = vrot.slane %v3058, 4
      %v3061 = vshll.u32 %v2893, 16
      %v3063 = vrot.slane %v3061, 5
      %v3064 = vsel %vm283, %v3059, %v3063
      %v3066 = vshrl.u32 %v2894, 16
      %v3068 = vrot.slane %v3066, 4
      %v3069 = vshll.u32 %v2894, 16
      %v3071 = vrot.slane %v3069, 5
      %v3072 = vor.u32 %v3068, %v3071
      %v3073 = vrot.slane %v3072, 4
      %v3075 = vshll.u32 %v2895, 16
      %v3077 = vrot.slane %v3075, 5
      %v3078 = vsel %vm283, %v3073, %v3077
      %v3079 = vshrl.u32 %v2895, 16
      %v3081 = vrot.slane %v3079, 4
      %v3082 = vor.u32 %v3081, %v3077
      %v3083 = vrot.slane %v3082, 4
      %v3085 = vshll.u32 %v2896, 16
      %v3087 = vrot.slane %v3085, 5
      %v3088 = vsel %vm283, %v3083, %v3087
      %s3089 = scalar_lea.vmem %s1, 14
      %v3090 = vld [vmem:[%s3089] sm:$0x3]
      %v3091 = vunpack.c.l.b16 %v2910
      %v3092 = vunpack.c.l.b16 %v2920
      %v3093 = vunpack.c.l.b16 %v2934
      %v3094 = vunpack.c.l.b16 %v2944
      %v3095 = vunpack.c.l.b16 %v2958
      %v3096 = vunpack.c.l.b16 %v2968
      %v3097 = vunpack.c.l.b16 %v2982
      %v3098 = vunpack.c.l.b16 %v2992
      %v3099 = vunpack.c.l.b16 %v3006
      %v3100 = vunpack.c.l.b16 %v3016
      %v3101 = vunpack.c.l.b16 %v3030
      %v3102 = vunpack.c.l.b16 %v3040
      %v3103 = vunpack.c.l.b16 %v3054
      %v3104 = vunpack.c.l.b16 %v3064
      %v3105 = vunpack.c.l.b16 %v3078
      %v3106 = vunpack.c.l.b16 %v3088
      %v3107 = vpack.c.b16 %v3092, %v3091
      %v3108 = vpack.c.b16 %v3094, %v3093
      %v3109 = vpack.c.b16 %v3096, %v3095
      %v3110 = vpack.c.b16 %v3098, %v3097
      %v3111 = vpack.c.b16 %v3100, %v3099
      %v3112 = vpack.c.b16 %v3102, %v3101
      %v3113 = vpack.c.b16 %v3104, %v3103
      %v3114 = vpack.c.b16 %v3106, %v3105
      %v3116 = vsel %vm502, %v3107, 0
      %v3119 = vsel %vm502, %v3108, 0
      %v3122 = vsel %vm502, %v3109, 0
      %v3125 = vsel %vm502, %v3110, 0
      %v3128 = vsel %vm502, %v3111, 0
      %v3131 = vsel %vm502, %v3112, 0
      %v3134 = vsel %vm502, %v3113, 0
      %v3137 = vsel %vm502, %v3114, 0
      %v3140 = vsel %vm527, %v3090, 0
      %3142 = vmatprep.subr.bf16.mxu0 0
      %3143 = vmatpush1.bf16.msra.mxu0 %v3140
      %3144 = vmatprep.subr.bf16.mxu0 0
      %3145 = vmatpush1.bf16.msra.mxu0 0
      %3146 = vmatprep.subr.bf16.mxu0 0
      %3147 = vmatpush1.bf16.msra.mxu0 0
      %3148 = vmatprep.subr.bf16.mxu0 0
      %3149 = vmatpush1.bf16.msra.mxu0 0
      %3150 = vmatprep.subr.bf16.mxu0 0
      %3151 = vmatpush1.bf16.msra.mxu0 0
      %3152 = vmatprep.subr.bf16.mxu0 0
      %3153 = vmatpush1.bf16.msra.mxu0 0
      %3154 = vmatprep.subr.bf16.mxu0 0
      %3155 = vmatpush1.bf16.msra.mxu0 0
      %3156 = vmatprep.subr.bf16.mxu0 0
      %3157 = vmatpush1.bf16.msra.mxu0 0
      %3158 = vmatprep.subr.bf16.mxu0 0
      %3159 = vmatpush1.bf16.msra.mxu0 0
      %3160 = vmatprep.subr.bf16.mxu0 0
      %3161 = vmatpush1.bf16.msra.mxu0 0
      %3162 = vmatprep.subr.bf16.mxu0 0
      %3163 = vmatpush1.bf16.msra.mxu0 0
      %3164 = vmatprep.subr.bf16.mxu0 0
      %3165 = vmatpush1.bf16.msra.mxu0 0
      %3166 = vmatprep.subr.bf16.mxu0 0
      %3167 = vmatpush1.bf16.msra.mxu0 0
      %3168 = vmatprep.subr.bf16.mxu0 0
      %3169 = vmatpush1.bf16.msra.mxu0 0
      %3170 = vmatprep.subr.bf16.mxu0 0
      %3171 = vmatpush1.bf16.msra.mxu0 0
      %3172 = vmatprep.subr.bf16.mxu0 0
      %3173 = vmatpush1.bf16.msra.mxu0 0
      %3174 = vmatprep.mubr.bf16.mxu0 0
      %3175 = vmatmul.mubr.bf16.gmra.mrb[0].mxu0 %v3116
      %v3176 = vpop.f32.mrb[0].mxu0
      %v3177 = vadd.f32 0.0, %v3176
      %v3178 = vpop.f32.mrb[0].mxu0
      %v3179 = vpop.f32.mrb[0].mxu0
      %v3180 = vadd.f32 0.0, %v3179
      %v3181 = vpop.f32.mrb[0].mxu0
      %3182 = vmatprep.mubr.bf16.mxu0 0
      %3183 = vmatmul.mubr.bf16.gmra.mrb[0].mxu0 %v3119
      %v3184 = vpop.f32.mrb[0].mxu0
      %v3185 = vadd.f32 0.0, %v3184
      %v3186 = vpop.f32.mrb[0].mxu0
      %v3187 = vpop.f32.mrb[0].mxu0
      %v3188 = vadd.f32 0.0, %v3187
      %v3189 = vpop.f32.mrb[0].mxu0
      %3190 = vmatprep.mubr.bf16.mxu0 0
      %3191 = vmatmul.mubr.bf16.gmra.mrb[0].mxu0 %v3122
      %v3192 = vpop.f32.mrb[0].mxu0
      %v3193 = vadd.f32 0.0, %v3192
      %v3194 = vpop.f32.mrb[0].mxu0
      %v3195 = vpop.f32.mrb[0].mxu0
      %v3196 = vadd.f32 0.0, %v3195
      %v3197 = vpop.f32.mrb[0].mxu0
      %3198 = vmatprep.mubr.bf16.mxu0 0
      %3199 = vmatmul.mubr.bf16.gmra.mrb[0].mxu0 %v3125
      %v3200 = vpop.f32.mrb[0].mxu0
      %v3201 = vadd.f32 0.0, %v3200
      %v3202 = vpop.f32.mrb[0].mxu0
      %v3203 = vpop.f32.mrb[0].mxu0
      %v3204 = vadd.f32 0.0, %v3203
      %v3205 = vpop.f32.mrb[0].mxu0
      %3206 = vmatprep.mubr.bf16.mxu0 0
      %3207 = vmatmul.mubr.bf16.gmra.mrb[0].mxu0 %v3128
      %v3208 = vpop.f32.mrb[0].mxu0
      %v3209 = vadd.f32 0.0, %v3208
      %v3210 = vpop.f32.mrb[0].mxu0
      %v3211 = vpop.f32.mrb[0].mxu0
      %v3212 = vadd.f32 0.0, %v3211
      %v3213 = vpop.f32.mrb[0].mxu0
      %3214 = vmatprep.mubr.bf16.mxu0 0
      %3215 = vmatmul.mubr.bf16.gmra.mrb[0].mxu0 %v3131
      %v3216 = vpop.f32.mrb[0].mxu0
      %v3217 = vadd.f32 0.0, %v3216
      %v3218 = vpop.f32.mrb[0].mxu0
      %v3219 = vpop.f32.mrb[0].mxu0
      %v3220 = vadd.f32 0.0, %v3219
      %v3221 = vpop.f32.mrb[0].mxu0
      %3222 = vmatprep.mubr.bf16.mxu0 0
      %3223 = vmatmul.mubr.bf16.gmra.mrb[0].mxu0 %v3134
      %v3224 = vpop.f32.mrb[0].mxu0
      %v3225 = vadd.f32 0.0, %v3224
      %v3226 = vpop.f32.mrb[0].mxu0
      %v3227 = vpop.f32.mrb[0].mxu0
      %v3228 = vadd.f32 0.0, %v3227
      %v3229 = vpop.f32.mrb[0].mxu0
      %3230 = vmatprep.mubr.bf16.mxu0 0
      %3231 = vmatmul.mubr.bf16.gmra.mrb[0].mxu0 %v3137
      %v3232 = vpop.f32.mrb[0].mxu0
      %v3233 = vadd.f32 0.0, %v3232
      %v3234 = vpop.f32.mrb[0].mxu0
      %v3235 = vpop.f32.mrb[0].mxu0
      %v3236 = vadd.f32 0.0, %v3235
      %v3237 = vpop.f32.mrb[0].mxu0
      %3238 = vdwg.mxu0
      %v3239 = vadd.f32 %v2739, %v3177
      %v3240 = vadd.f32 %v2740, %v3180
      %v3241 = vadd.f32 %v2741, %v3185
      %v3242 = vadd.f32 %v2742, %v3188
      %v3243 = vadd.f32 %v2743, %v3193
      %v3244 = vadd.f32 %v2744, %v3196
      %v3245 = vadd.f32 %v2745, %v3201
      %v3246 = vadd.f32 %v2746, %v3204
      %v3247 = vadd.f32 %v2747, %v3209
      %v3248 = vadd.f32 %v2748, %v3212
      %v3249 = vadd.f32 %v2749, %v3217
      %v3250 = vadd.f32 %v2750, %v3220
      %v3251 = vadd.f32 %v2751, %v3225
      %v3252 = vadd.f32 %v2752, %v3228
      %v3253 = vadd.f32 %v2753, %v3233
      %v3254 = vadd.f32 %v2754, %v3236
      %s3255 = scalar_lea.vmem %s2, 14
      %v3256 = vld [vmem:[%s3255] sm:$0x3]
      %v3258 = vsel %vm527, %v3256, 0
      %3260 = vmatprep.subr.bf16.mxu0 0
      %3261 = vmatpush1.bf16.msra.mxu0 %v3258
      %3262 = vmatprep.subr.bf16.mxu0 0
      %3263 = vmatpush1.bf16.msra.mxu0 0
      %3264 = vmatprep.subr.bf16.mxu0 0
      %3265 = vmatpush1.bf16.msra.mxu0 0
      %3266 = vmatprep.subr.bf16.mxu0 0
      %3267 = vmatpush1.bf16.msra.mxu0 0
      %3268 = vmatprep.subr.bf16.mxu0 0
      %3269 = vmatpush1.bf16.msra.mxu0 0
      %3270 = vmatprep.subr.bf16.mxu0 0
      %3271 = vmatpush1.bf16.msra.mxu0 0
      %3272 = vmatprep.subr.bf16.mxu0 0
      %3273 = vmatpush1.bf16.msra.mxu0 0
      %3274 = vmatprep.subr.bf16.mxu0 0
      %3275 = vmatpush1.bf16.msra.mxu0 0
      %3276 = vmatprep.subr.bf16.mxu0 0
      %3277 = vmatpush1.bf16.msra.mxu0 0
      %3278 = vmatprep.subr.bf16.mxu0 0
      %3279 = vmatpush1.bf16.msra.mxu0 0
      %3280 = vmatprep.subr.bf16.mxu0 0
      %3281 = vmatpush1.bf16.msra.mxu0 0
      %3282 = vmatprep.subr.bf16.mxu0 0
      %3283 = vmatpush1.bf16.msra.mxu0 0
      %3284 = vmatprep.subr.bf16.mxu0 0
      %3285 = vmatpush1.bf16.msra.mxu0 0
      %3286 = vmatprep.subr.bf16.mxu0 0
      %3287 = vmatpush1.bf16.msra.mxu0 0
      %3288 = vmatprep.subr.bf16.mxu0 0
      %3289 = vmatpush1.bf16.msra.mxu0 0
      %3290 = vmatprep.subr.bf16.mxu0 0
      %3291 = vmatpush1.bf16.msra.mxu0 0
      %3292 = vmatprep.mubr.bf16.mxu0 0
      %3293 = vmatmul.mubr.bf16.gmra.mrb[0].mxu0 %v3116
      %v3294 = vpop.f32.mrb[0].mxu0
      %v3295 = vadd.f32 0.0, %v3294
      %v3296 = vpop.f32.mrb[0].mxu0
      %v3297 = vpop.f32.mrb[0].mxu0
      %v3298 = vadd.f32 0.0, %v3297
      %v3299 = vpop.f32.mrb[0].mxu0
      %3300 = vmatprep.mubr.bf16.mxu0 0
      %3301 = vmatmul.mubr.bf16.gmra.mrb[0].mxu0 %v3119
      %v3302 = vpop.f32.mrb[0].mxu0
      %v3303 = vadd.f32 0.0, %v3302
      %v3304 = vpop.f32.mrb[0].mxu0
      %v3305 = vpop.f32.mrb[0].mxu0
      %v3306 = vadd.f32 0.0, %v3305
      %v3307 = vpop.f32.mrb[0].mxu0
      %3308 = vmatprep.mubr.bf16.mxu0 0
      %3309 = vmatmul.mubr.bf16.gmra.mrb[0].mxu0 %v3122
      %v3310 = vpop.f32.mrb[0].mxu0
      %v3311 = vadd.f32 0.0, %v3310
      %v3312 = vpop.f32.mrb[0].mxu0
      %v3313 = vpop.f32.mrb[0].mxu0
      %v3314 = vadd.f32 0.0, %v3313
      %v3315 = vpop.f32.mrb[0].mxu0
      %3316 = vmatprep.mubr.bf16.mxu0 0
      %3317 = vmatmul.mubr.bf16.gmra.mrb[0].mxu0 %v3125
      %v3318 = vpop.f32.mrb[0].mxu0
      %v3319 = vadd.f32 0.0, %v3318
      %v3320 = vpop.f32.mrb[0].mxu0
      %v3321 = vpop.f32.mrb[0].mxu0
      %v3322 = vadd.f32 0.0, %v3321
      %v3323 = vpop.f32.mrb[0].mxu0
      %3324 = vmatprep.mubr.bf16.mxu0 0
      %3325 = vmatmul.mubr.bf16.gmra.mrb[0].mxu0 %v3128
      %v3326 = vpop.f32.mrb[0].mxu0
      %v3327 = vadd.f32 0.0, %v3326
      %v3328 = vpop.f32.mrb[0].mxu0
      %v3329 = vpop.f32.mrb[0].mxu0
      %v3330 = vadd.f32 0.0, %v3329
      %v3331 = vpop.f32.mrb[0].mxu0
      %3332 = vmatprep.mubr.bf16.mxu0 0
      %3333 = vmatmul.mubr.bf16.gmra.mrb[0].mxu0 %v3131
      %v3334 = vpop.f32.mrb[0].mxu0
      %v3335 = vadd.f32 0.0, %v3334
      %v3336 = vpop.f32.mrb[0].mxu0
      %v3337 = vpop.f32.mrb[0].mxu0
      %v3338 = vadd.f32 0.0, %v3337
      %v3339 = vpop.f32.mrb[0].mxu0
      %3340 = vmatprep.mubr.bf16.mxu0 0
      %3341 = vmatmul.mubr.bf16.gmra.mrb[0].mxu0 %v3134
      %v3342 = vpop.f32.mrb[0].mxu0
      %v3343 = vadd.f32 0.0, %v3342
      %v3344 = vpop.f32.mrb[0].mxu0
      %v3345 = vpop.f32.mrb[0].mxu0
      %v3346 = vadd.f32 0.0, %v3345
      %v3347 = vpop.f32.mrb[0].mxu0
      %3348 = vmatprep.mubr.bf16.mxu0 0
      %3349 = vmatmul.mubr.bf16.gmra.mrb[0].mxu0 %v3137
      %v3350 = vpop.f32.mrb[0].mxu0
      %v3351 = vadd.f32 0.0, %v3350
      %v3352 = vpop.f32.mrb[0].mxu0
      %v3353 = vpop.f32.mrb[0].mxu0
      %v3354 = vadd.f32 0.0, %v3353
      %v3355 = vpop.f32.mrb[0].mxu0
      %3356 = vdwg.mxu0
      %v3357 = vadd.f32 %v2857, %v3295
      %v3358 = vadd.f32 %v2858, %v3298
      %v3359 = vadd.f32 %v2859, %v3303
      %v3360 = vadd.f32 %v2860, %v3306
      %v3361 = vadd.f32 %v2861, %v3311
      %v3362 = vadd.f32 %v2862, %v3314
      %v3363 = vadd.f32 %v2863, %v3319
      %v3364 = vadd.f32 %v2864, %v3322
      %v3365 = vadd.f32 %v2865, %v3327
      %v3366 = vadd.f32 %v2866, %v3330
      %v3367 = vadd.f32 %v2867, %v3335
      %v3368 = vadd.f32 %v2868, %v3338
      %v3369 = vadd.f32 %v2869, %v3343
      %v3370 = vadd.f32 %v2870, %v3346
      %v3371 = vadd.f32 %v2871, %v3351
      %v3372 = vadd.f32 %v2872, %v3354
      %v3373 = vld [vmem:[%s2556] sm:$0xe]
      %v3374 = vld [vmem:[%s2556 + $0xc] sm:$0xe]
      %v3375 = vld [vmem:[%s2556 + $0x18] sm:$0xe]
      %v3376 = vld [vmem:[%s2556 + $0x24] sm:$0xe]
      %v3377 = vld [vmem:[%s2556 + $0x30] sm:$0xe]
      %v3378 = vld [vmem:[%s2556 + $0x3c] sm:$0xe]
      %v3379 = vld [vmem:[%s2556 + $0x48] sm:$0xe]
      %v3380 = vld [vmem:[%s2556 + $0x54] sm:$0xe]
      %v3405 = vrot.slane %v3373, 5
      %v3406 = vrot.slane %v3405, 4
      %v3407 = vrot.slane %v2874, 5
      %v3408 = vsel %vm1020, %v3406, %v3407
      %v3409 = vrot.slane %v3407, 4
      %v3410 = vrot.slane %v2875, 5
      %v3411 = vsel %vm1020, %v3409, %v3410
      %v3412 = vrot.slane %v3374, 5
      %v3413 = vrot.slane %v3412, 4
      %v3414 = vrot.slane %v2877, 5
      %v3415 = vsel %vm1020, %v3413, %v3414
      %v3416 = vrot.slane %v3414, 4
      %v3417 = vrot.slane %v2878, 5
      %v3418 = vsel %vm1020, %v3416, %v3417
      %v3419 = vrot.slane %v3375, 5
      %v3420 = vrot.slane %v3419, 4
      %v3421 = vrot.slane %v2880, 5
      %v3422 = vsel %vm1020, %v3420, %v3421
      %v3423 = vrot.slane %v3421, 4
      %v3424 = vrot.slane %v2881, 5
      %v3425 = vsel %vm1020, %v3423, %v3424
      %v3426 = vrot.slane %v3376, 5
      %v3427 = vrot.slane %v3426, 4
      %v3428 = vrot.slane %v2883, 5
      %v3429 = vsel %vm1020, %v3427, %v3428
      %v3430 = vrot.slane %v3428, 4
      %v3431 = vrot.slane %v2884, 5
      %v3432 = vsel %vm1020, %v3430, %v3431
      %v3433 = vrot.slane %v3377, 5
      %v3434 = vrot.slane %v3433, 4
      %v3435 = vrot.slane %v2886, 5
      %v3436 = vsel %vm1020, %v3434, %v3435
      %v3437 = vrot.slane %v3435, 4
      %v3438 = vrot.slane %v2887, 5
      %v3439 = vsel %vm1020, %v3437, %v3438
      %v3440 = vrot.slane %v3378, 5
      %v3441 = vrot.slane %v3440, 4
      %v3442 = vrot.slane %v2889, 5
      %v3443 = vsel %vm1020, %v3441, %v3442
      %v3444 = vrot.slane %v3442, 4
      %v3445 = vrot.slane %v2890, 5
      %v3446 = vsel %vm1020, %v3444, %v3445
      %v3447 = vrot.slane %v3379, 5
      %v3448 = vrot.slane %v3447, 4
      %v3449 = vrot.slane %v2892, 5
      %v3450 = vsel %vm1020, %v3448, %v3449
      %v3451 = vrot.slane %v3449, 4
      %v3452 = vrot.slane %v2893, 5
      %v3453 = vsel %vm1020, %v3451, %v3452
      %v3454 = vrot.slane %v3380, 5
      %v3455 = vrot.slane %v3454, 4
      %v3456 = vrot.slane %v2895, 5
      %v3457 = vsel %vm1020, %v3455, %v3456
      %v3458 = vrot.slane %v3456, 4
      %v3459 = vrot.slane %v2896, 5
      %v3460 = vsel %vm1020, %v3458, %v3459
      %s3461 = scalar_lea.vmem %s1, 16
      %v3462 = vld [vmem:[%s3461] sm:$0x3]
      %v3463 = vunpack.c.l.b16 %v3408
      %v3464 = vunpack.c.l.b16 %v3411
      %v3465 = vunpack.c.l.b16 %v3415
      %v3466 = vunpack.c.l.b16 %v3418
      %v3467 = vunpack.c.l.b16 %v3422
      %v3468 = vunpack.c.l.b16 %v3425
      %v3469 = vunpack.c.l.b16 %v3429
      %v3470 = vunpack.c.l.b16 %v3432
      %v3471 = vunpack.c.l.b16 %v3436
      %v3472 = vunpack.c.l.b16 %v3439
      %v3473 = vunpack.c.l.b16 %v3443
      %v3474 = vunpack.c.l.b16 %v3446
      %v3475 = vunpack.c.l.b16 %v3450
      %v3476 = vunpack.c.l.b16 %v3453
      %v3477 = vunpack.c.l.b16 %v3457
      %v3478 = vunpack.c.l.b16 %v3460
      %v3479 = vpack.c.b16 %v3464, %v3463
      %v3480 = vpack.c.b16 %v3466, %v3465
      %v3481 = vpack.c.b16 %v3468, %v3467
      %v3482 = vpack.c.b16 %v3470, %v3469
      %v3483 = vpack.c.b16 %v3472, %v3471
      %v3484 = vpack.c.b16 %v3474, %v3473
      %v3485 = vpack.c.b16 %v3476, %v3475
      %v3486 = vpack.c.b16 %v3478, %v3477
      %v3488 = vsel %vm502, %v3479, 0
      %v3491 = vsel %vm502, %v3480, 0
      %v3494 = vsel %vm502, %v3481, 0
      %v3497 = vsel %vm502, %v3482, 0
      %v3500 = vsel %vm502, %v3483, 0
      %v3503 = vsel %vm502, %v3484, 0
      %v3506 = vsel %vm502, %v3485, 0
      %v3509 = vsel %vm502, %v3486, 0
      %v3512 = vsel %vm527, %v3462, 0
      %3514 = vmatprep.subr.bf16.mxu0 0
      %3515 = vmatpush1.bf16.msra.mxu0 %v3512
      %3516 = vmatprep.subr.bf16.mxu0 0
      %3517 = vmatpush1.bf16.msra.mxu0 0
      %3518 = vmatprep.subr.bf16.mxu0 0
      %3519 = vmatpush1.bf16.msra.mxu0 0
      %3520 = vmatprep.subr.bf16.mxu0 0
      %3521 = vmatpush1.bf16.msra.mxu0 0
      %3522 = vmatprep.subr.bf16.mxu0 0
      %3523 = vmatpush1.bf16.msra.mxu0 0
      %3524 = vmatprep.subr.bf16.mxu0 0
      %3525 = vmatpush1.bf16.msra.mxu0 0
      %3526 = vmatprep.subr.bf16.mxu0 0
      %3527 = vmatpush1.bf16.msra.mxu0 0
      %3528 = vmatprep.subr.bf16.mxu0 0
      %3529 = vmatpush1.bf16.msra.mxu0 0
      %3530 = vmatprep.subr.bf16.mxu0 0
      %3531 = vmatpush1.bf16.msra.mxu0 0
      %3532 = vmatprep.subr.bf16.mxu0 0
      %3533 = vmatpush1.bf16.msra.mxu0 0
      %3534 = vmatprep.subr.bf16.mxu0 0
      %3535 = vmatpush1.bf16.msra.mxu0 0
      %3536 = vmatprep.subr.bf16.mxu0 0
      %3537 = vmatpush1.bf16.msra.mxu0 0
      %3538 = vmatprep.subr.bf16.mxu0 0
      %3539 = vmatpush1.bf16.msra.mxu0 0
      %3540 = vmatprep.subr.bf16.mxu0 0
      %3541 = vmatpush1.bf16.msra.mxu0 0
      %3542 = vmatprep.subr.bf16.mxu0 0
      %3543 = vmatpush1.bf16.msra.mxu0 0
      %3544 = vmatprep.subr.bf16.mxu0 0
      %3545 = vmatpush1.bf16.msra.mxu0 0
      %3546 = vmatprep.mubr.bf16.mxu0 0
      %3547 = vmatmul.mubr.bf16.gmra.mrb[0].mxu0 %v3488
      %v3548 = vpop.f32.mrb[0].mxu0
      %v3549 = vadd.f32 0.0, %v3548
      %v3550 = vpop.f32.mrb[0].mxu0
      %v3551 = vpop.f32.mrb[0].mxu0
      %v3552 = vadd.f32 0.0, %v3551
      %v3553 = vpop.f32.mrb[0].mxu0
      %3554 = vmatprep.mubr.bf16.mxu0 0
      %3555 = vmatmul.mubr.bf16.gmra.mrb[0].mxu0 %v3491
      %v3556 = vpop.f32.mrb[0].mxu0
      %v3557 = vadd.f32 0.0, %v3556
      %v3558 = vpop.f32.mrb[0].mxu0
      %v3559 = vpop.f32.mrb[0].mxu0
      %v3560 = vadd.f32 0.0, %v3559
      %v3561 = vpop.f32.mrb[0].mxu0
      %3562 = vmatprep.mubr.bf16.mxu0 0
      %3563 = vmatmul.mubr.bf16.gmra.mrb[0].mxu0 %v3494
      %v3564 = vpop.f32.mrb[0].mxu0
      %v3565 = vadd.f32 0.0, %v3564
      %v3566 = vpop.f32.mrb[0].mxu0
      %v3567 = vpop.f32.mrb[0].mxu0
      %v3568 = vadd.f32 0.0, %v3567
      %v3569 = vpop.f32.mrb[0].mxu0
      %3570 = vmatprep.mubr.bf16.mxu0 0
      %3571 = vmatmul.mubr.bf16.gmra.mrb[0].mxu0 %v3497
      %v3572 = vpop.f32.mrb[0].mxu0
      %v3573 = vadd.f32 0.0, %v3572
      %v3574 = vpop.f32.mrb[0].mxu0
      %v3575 = vpop.f32.mrb[0].mxu0
      %v3576 = vadd.f32 0.0, %v3575
      %v3577 = vpop.f32.mrb[0].mxu0
      %3578 = vmatprep.mubr.bf16.mxu0 0
      %3579 = vmatmul.mubr.bf16.gmra.mrb[0].mxu0 %v3500
      %v3580 = vpop.f32.mrb[0].mxu0
      %v3581 = vadd.f32 0.0, %v3580
      %v3582 = vpop.f32.mrb[0].mxu0
      %v3583 = vpop.f32.mrb[0].mxu0
      %v3584 = vadd.f32 0.0, %v3583
      %v3585 = vpop.f32.mrb[0].mxu0
      %3586 = vmatprep.mubr.bf16.mxu0 0
      %3587 = vmatmul.mubr.bf16.gmra.mrb[0].mxu0 %v3503
      %v3588 = vpop.f32.mrb[0].mxu0
      %v3589 = vadd.f32 0.0, %v3588
      %v3590 = vpop.f32.mrb[0].mxu0
      %v3591 = vpop.f32.mrb[0].mxu0
      %v3592 = vadd.f32 0.0, %v3591
      %v3593 = vpop.f32.mrb[0].mxu0
      %3594 = vmatprep.mubr.bf16.mxu0 0
      %3595 = vmatmul.mubr.bf16.gmra.mrb[0].mxu0 %v3506
      %v3596 = vpop.f32.mrb[0].mxu0
      %v3597 = vadd.f32 0.0, %v3596
      %v3598 = vpop.f32.mrb[0].mxu0
      %v3599 = vpop.f32.mrb[0].mxu0
      %v3600 = vadd.f32 0.0, %v3599
      %v3601 = vpop.f32.mrb[0].mxu0
      %3602 = vmatprep.mubr.bf16.mxu0 0
      %3603 = vmatmul.mubr.bf16.gmra.mrb[0].mxu0 %v3509
      %v3604 = vpop.f32.mrb[0].mxu0
      %v3605 = vadd.f32 0.0, %v3604
      %v3606 = vpop.f32.mrb[0].mxu0
      %v3607 = vpop.f32.mrb[0].mxu0
      %v3608 = vadd.f32 0.0, %v3607
      %v3609 = vpop.f32.mrb[0].mxu0
      %3610 = vdwg.mxu0
      %v3611 = vadd.f32 %v3239, %v3549
      %v3612 = vadd.f32 %v3240, %v3552
      %v3613 = vadd.f32 %v3241, %v3557
      %v3614 = vadd.f32 %v3242, %v3560
      %v3615 = vadd.f32 %v3243, %v3565
      %v3616 = vadd.f32 %v3244, %v3568
      %v3617 = vadd.f32 %v3245, %v3573
      %v3618 = vadd.f32 %v3246, %v3576
      %v3619 = vadd.f32 %v3247, %v3581
      %v3620 = vadd.f32 %v3248, %v3584
      %v3621 = vadd.f32 %v3249, %v3589
      %v3622 = vadd.f32 %v3250, %v3592
      %v3623 = vadd.f32 %v3251, %v3597
      %v3624 = vadd.f32 %v3252, %v3600
      %v3625 = vadd.f32 %v3253, %v3605
      %v3626 = vadd.f32 %v3254, %v3608
      %s3627 = scalar_lea.vmem %s2, 16
      %v3628 = vld [vmem:[%s3627] sm:$0x3]
      %v3630 = vsel %vm527, %v3628, 0
      %3632 = vmatprep.subr.bf16.mxu0 0
      %3633 = vmatpush1.bf16.msra.mxu0 %v3630
      %3634 = vmatprep.subr.bf16.mxu0 0
      %3635 = vmatpush1.bf16.msra.mxu0 0
      %3636 = vmatprep.subr.bf16.mxu0 0
      %3637 = vmatpush1.bf16.msra.mxu0 0
      %3638 = vmatprep.subr.bf16.mxu0 0
      %3639 = vmatpush1.bf16.msra.mxu0 0
      %3640 = vmatprep.subr.bf16.mxu0 0
      %3641 = vmatpush1.bf16.msra.mxu0 0
      %3642 = vmatprep.subr.bf16.mxu0 0
      %3643 = vmatpush1.bf16.msra.mxu0 0
      %3644 = vmatprep.subr.bf16.mxu0 0
      %3645 = vmatpush1.bf16.msra.mxu0 0
      %3646 = vmatprep.subr.bf16.mxu0 0
      %3647 = vmatpush1.bf16.msra.mxu0 0
      %3648 = vmatprep.subr.bf16.mxu0 0
      %3649 = vmatpush1.bf16.msra.mxu0 0
      %3650 = vmatprep.subr.bf16.mxu0 0
      %3651 = vmatpush1.bf16.msra.mxu0 0
      %3652 = vmatprep.subr.bf16.mxu0 0
      %3653 = vmatpush1.bf16.msra.mxu0 0
      %3654 = vmatprep.subr.bf16.mxu0 0
      %3655 = vmatpush1.bf16.msra.mxu0 0
      %3656 = vmatprep.subr.bf16.mxu0 0
      %3657 = vmatpush1.bf16.msra.mxu0 0
      %3658 = vmatprep.subr.bf16.mxu0 0
      %3659 = vmatpush1.bf16.msra.mxu0 0
      %3660 = vmatprep.subr.bf16.mxu0 0
      %3661 = vmatpush1.bf16.msra.mxu0 0
      %3662 = vmatprep.subr.bf16.mxu0 0
      %3663 = vmatpush1.bf16.msra.mxu0 0
      %3664 = vmatprep.mubr.bf16.mxu0 0
      %3665 = vmatmul.mubr.bf16.gmra.mrb[0].mxu0 %v3488
      %v3666 = vpop.f32.mrb[0].mxu0
      %v3667 = vadd.f32 0.0, %v3666
      %v3668 = vpop.f32.mrb[0].mxu0
      %v3669 = vpop.f32.mrb[0].mxu0
      %v3670 = vadd.f32 0.0, %v3669
      %v3671 = vpop.f32.mrb[0].mxu0
      %3672 = vmatprep.mubr.bf16.mxu0 0
      %3673 = vmatmul.mubr.bf16.gmra.mrb[0].mxu0 %v3491
      %v3674 = vpop.f32.mrb[0].mxu0
      %v3675 = vadd.f32 0.0, %v3674
      %v3676 = vpop.f32.mrb[0].mxu0
      %v3677 = vpop.f32.mrb[0].mxu0
      %v3678 = vadd.f32 0.0, %v3677
      %v3679 = vpop.f32.mrb[0].mxu0
      %3680 = vmatprep.mubr.bf16.mxu0 0
      %3681 = vmatmul.mubr.bf16.gmra.mrb[0].mxu0 %v3494
      %v3682 = vpop.f32.mrb[0].mxu0
      %v3683 = vadd.f32 0.0, %v3682
      %v3684 = vpop.f32.mrb[0].mxu0
      %v3685 = vpop.f32.mrb[0].mxu0
      %v3686 = vadd.f32 0.0, %v3685
      %v3687 = vpop.f32.mrb[0].mxu0
      %3688 = vmatprep.mubr.bf16.mxu0 0
      %3689 = vmatmul.mubr.bf16.gmra.mrb[0].mxu0 %v3497
      %v3690 = vpop.f32.mrb[0].mxu0
      %v3691 = vadd.f32 0.0, %v3690
      %v3692 = vpop.f32.mrb[0].mxu0
      %v3693 = vpop.f32.mrb[0].mxu0
      %v3694 = vadd.f32 0.0, %v3693
      %v3695 = vpop.f32.mrb[0].mxu0
      %3696 = vmatprep.mubr.bf16.mxu0 0
      %3697 = vmatmul.mubr.bf16.gmra.mrb[0].mxu0 %v3500
      %v3698 = vpop.f32.mrb[0].mxu0
      %v3699 = vadd.f32 0.0, %v3698
      %v3700 = vpop.f32.mrb[0].mxu0
      %v3701 = vpop.f32.mrb[0].mxu0
      %v3702 = vadd.f32 0.0, %v3701
      %v3703 = vpop.f32.mrb[0].mxu0
      %3704 = vmatprep.mubr.bf16.mxu0 0
      %3705 = vmatmul.mubr.bf16.gmra.mrb[0].mxu0 %v3503
      %v3706 = vpop.f32.mrb[0].mxu0
      %v3707 = vadd.f32 0.0, %v3706
      %v3708 = vpop.f32.mrb[0].mxu0
      %v3709 = vpop.f32.mrb[0].mxu0
      %v3710 = vadd.f32 0.0, %v3709
      %v3711 = vpop.f32.mrb[0].mxu0
      %3712 = vmatprep.mubr.bf16.mxu0 0
      %3713 = vmatmul.mubr.bf16.gmra.mrb[0].mxu0 %v3506
      %v3714 = vpop.f32.mrb[0].mxu0
      %v3715 = vadd.f32 0.0, %v3714
      %v3716 = vpop.f32.mrb[0].mxu0
      %v3717 = vpop.f32.mrb[0].mxu0
      %v3718 = vadd.f32 0.0, %v3717
      %v3719 = vpop.f32.mrb[0].mxu0
      %3720 = vmatprep.mubr.bf16.mxu0 0
      %3721 = vmatmul.mubr.bf16.gmra.mrb[0].mxu0 %v3509
      %v3722 = vpop.f32.mrb[0].mxu0
      %v3723 = vadd.f32 0.0, %v3722
      %v3724 = vpop.f32.mrb[0].mxu0
      %v3725 = vpop.f32.mrb[0].mxu0
      %v3726 = vadd.f32 0.0, %v3725
      %v3727 = vpop.f32.mrb[0].mxu0
      %3728 = vdwg.mxu0
      %v3729 = vadd.f32 %v3357, %v3667
      %v3730 = vadd.f32 %v3358, %v3670
      %v3731 = vadd.f32 %v3359, %v3675
      %v3732 = vadd.f32 %v3360, %v3678
      %v3733 = vadd.f32 %v3361, %v3683
      %v3734 = vadd.f32 %v3362, %v3686
      %v3735 = vadd.f32 %v3363, %v3691
      %v3736 = vadd.f32 %v3364, %v3694
      %v3737 = vadd.f32 %v3365, %v3699
      %v3738 = vadd.f32 %v3366, %v3702
      %v3739 = vadd.f32 %v3367, %v3707
      %v3740 = vadd.f32 %v3368, %v3710
      %v3741 = vadd.f32 %v3369, %v3715
      %v3742 = vadd.f32 %v3370, %v3718
      %v3743 = vadd.f32 %v3371, %v3723
      %v3744 = vadd.f32 %v3372, %v3726
      %v3745 = vld [vmem:[%s3] sm:$0x1]
      %v3747 = vlaneseq
      %v3748 = vshrl.u32 %v3747, 7
      %v3749 = vsub.s32 0, %v3748
      %v3750 = vrot.slane %v3745, %v3749
      %v3752 = vadd.f32 %v3611, %v3750
      %v3753 = vadd.f32 %v3612, %v3750
      %v3754 = vadd.f32 %v3613, %v3750
      %v3755 = vadd.f32 %v3614, %v3750
      %v3756 = vadd.f32 %v3615, %v3750
      %v3757 = vadd.f32 %v3616, %v3750
      %v3758 = vadd.f32 %v3617, %v3750
      %v3759 = vadd.f32 %v3618, %v3750
      %v3760 = vadd.f32 %v3619, %v3750
      %v3761 = vadd.f32 %v3620, %v3750
      %v3762 = vadd.f32 %v3621, %v3750
      %v3763 = vadd.f32 %v3622, %v3750
      %v3764 = vadd.f32 %v3623, %v3750
      %v3765 = vadd.f32 %v3624, %v3750
      %v3766 = vadd.f32 %v3625, %v3750
      %v3767 = vadd.f32 %v3626, %v3750
      %v3768 = vld [vmem:[%s4] sm:$0x1]
      %v3770 = vlaneseq
      %v3771 = vshrl.u32 %v3770, 7
      %v3772 = vsub.s32 0, %v3771
      %v3773 = vrot.slane %v3768, %v3772
      %v3775 = vadd.f32 %v3729, %v3773
      %v3776 = vadd.f32 %v3730, %v3773
      %v3777 = vadd.f32 %v3731, %v3773
      %v3778 = vadd.f32 %v3732, %v3773
      %v3779 = vadd.f32 %v3733, %v3773
      %v3780 = vadd.f32 %v3734, %v3773
      %v3781 = vadd.f32 %v3735, %v3773
      %v3782 = vadd.f32 %v3736, %v3773
      %v3783 = vadd.f32 %v3737, %v3773
      %v3784 = vadd.f32 %v3738, %v3773
      %v3785 = vadd.f32 %v3739, %v3773
      %v3786 = vadd.f32 %v3740, %v3773
      %v3787 = vadd.f32 %v3741, %v3773
      %v3788 = vadd.f32 %v3742, %v3773
      %v3789 = vadd.f32 %v3743, %v3773
      %v3790 = vadd.f32 %v3744, %v3773
      %v3791 = vmax.f32 %v3752, %v3775
      %v3792 = vmax.f32 %v3753, %v3776
      %v3793 = vmax.f32 %v3754, %v3777
      %v3794 = vmax.f32 %v3755, %v3778
      %v3795 = vmax.f32 %v3756, %v3779
      %v3796 = vmax.f32 %v3757, %v3780
      %v3797 = vmax.f32 %v3758, %v3781
      %v3798 = vmax.f32 %v3759, %v3782
      %v3799 = vmax.f32 %v3760, %v3783
      %v3800 = vmax.f32 %v3761, %v3784
      %v3801 = vmax.f32 %v3762, %v3785
      %v3802 = vmax.f32 %v3763, %v3786
      %v3803 = vmax.f32 %v3764, %v3787
      %v3804 = vmax.f32 %v3765, %v3788
      %v3805 = vmax.f32 %v3766, %v3789
      %v3806 = vmax.f32 %v3767, %v3790
      %vm3807 = vcmask 64512
      %3808 = vst.msk [vmem:[%s248] sm:$0xff] %vm3807, %v3791
      %3809 = vst.msk [vmem:[%s248 + $0x8] sm:$0xff] %vm3807, %v3792
      %3810 = vst.msk [vmem:[%s248 + $0x10] sm:$0xff] %vm3807, %v3793
      %3811 = vst.msk [vmem:[%s248 + $0x18] sm:$0xff] %vm3807, %v3794
      %3812 = vst.msk [vmem:[%s248 + $0x20] sm:$0xff] %vm3807, %v3795
      %3813 = vst.msk [vmem:[%s248 + $0x28] sm:$0xff] %vm3807, %v3796
      %3814 = vst.msk [vmem:[%s248 + $0x30] sm:$0xff] %vm3807, %v3797
      %3815 = vst.msk [vmem:[%s248 + $0x38] sm:$0xff] %vm3807, %v3798
      %3816 = vst.msk [vmem:[%s248 + $0x40] sm:$0xff] %vm3807, %v3799
      %3817 = vst.msk [vmem:[%s248 + $0x48] sm:$0xff] %vm3807, %v3800
      %3818 = vst.msk [vmem:[%s248 + $0x50] sm:$0xff] %vm3807, %v3801
      %3819 = vst.msk [vmem:[%s248 + $0x58] sm:$0xff] %vm3807, %v3802
      %3820 = vst.msk [vmem:[%s248 + $0x60] sm:$0xff] %vm3807, %v3803
      %3821 = vst.msk [vmem:[%s248 + $0x68] sm:$0xff] %vm3807, %v3804
      %3822 = vst.msk [vmem:[%s248 + $0x70] sm:$0xff] %vm3807, %v3805
      %3823 = vst.msk [vmem:[%s248 + $0x78] sm:$0xff] %vm3807, %v3806
      %s3824 = smul.u32 8, %s21
      %p3825 = scmp.lt.s32.totalorder %s20, 1
      %s3826 = scalar_select %p3825, %s20, 1
      %p3827 = scmp.lt.s32.totalorder %s3824, 15
      %s3828 = scalar_select %p3827, %s3824, 15
      %s3829 = smul.addr %s3828, 2
      %s3830 = smul.addr %s3826, 32
      %s3831 = sadd.s32 %s3829, %s3830
      %s3832 = smul.addr %s3831, 8
      %s3833 = scalar_lea.vmem %s5, %s3832
      // Predicated region
      $region41: #{group_forward.3} parent=39 // pred_check
        %p3834 = pneg %p158
      $region42: #{group_forward.3} parent=39 // pred_check_branch
        %3836 = sbr.rel (%p3834) target = $region44
      $region43: #{group_forward.3} parent=39 // pred_region
        %s3837 = smul.u32 8, %s21
      $region44: #{group_forward.3} parent=39 // pred_fallthru
        _
    $region40: #{group_forward.3} parent=5 // pred_fallthru
      _
    %p3838 = scmp.le.s32.totalorder 2, %s11
    // Predicated region
    $region45: #{group_forward.3} parent=5 // pred_check
      %p3839 = pneg %p3838
    $region46: #{group_forward.3} parent=5 // pred_check_branch
      %3841 = sbr.rel (%p3839) target = $region48
    $region47: #{group_forward.3} parent=5 // pred_region
      %s3842 = ssub.s32 %s11, 2
      // Predicated region
      $region49: #{group_forward.3} parent=47 // pred_check
        %p3843 = pneg %p164
      $region50: #{group_forward.3} parent=47 // pred_check_branch
        %3845 = sbr.rel (%p3843) target = $region52
      $region51: #{group_forward.3} parent=47 // pred_region
        %s3846 = smul.u32 8, %s23
        %p3847 = scmp.lt.s32.totalorder %s22, 1
        %s3848 = scalar_select %p3847, %s22, 1
        %p3849 = scmp.lt.s32.totalorder %s3846, 15
        %s3850 = scalar_select %p3849, %s3846, 15
        %s3851 = smul.addr %s3850, 2
        %s3852 = smul.addr %s3848, 32
        %s3853 = sadd.s32 %s3851, %s3852
        %s3854 = smul.addr %s3853, 8
        %s3855 = scalar_lea.vmem %s5, %s3854
      $region52: #{group_forward.3} parent=47 // pred_fallthru
        _
    $region48: #{group_forward.3} parent=5 // pred_fallthru
      _
  $region6: #{group_forward.3} parent=0 // loop_footer
    %s15 = sadd.s32 1, %s11
  $region7: #{group_forward.3} parent=0 // loop_footer_branch
    %10 = sbr.rel target = $region3
  $region8: #{group_forward.3} parent=0 // loop_exit
    _

</llo_original>
